<compile_context>
chip_gen: v7x
topology: tpu7x:2x2x1
jax: 0.10.0
libtpu: 0.0.40
codegen_flags: <defaults>
</compile_context>

<pallas_src>
import jax
import jax.numpy as jnp
from jax.experimental import pallas as pl
from jax.experimental.pallas import tpu as pltpu

NEG_SLOPE = 0.2
LANE = 128
SUBLANE = 8


def _round_up(n, m):
    return ((n + m - 1) // m) * m


def _layer_act(h, w_ref, b_ref):
    # bf16 x bf16 -> f32 accumulate on the MXU; bias add in f32; downcast to
    # bf16 before the activation so the elementwise chain runs packed.
    acc = jnp.dot(w_ref[...], h, preferred_element_type=jnp.float32)
    hb = (acc + b_ref[...]).astype(jnp.bfloat16)
    # LeakyReLU(0.2) == max(x, 0.2*x) since 0 < 0.2 < 1.
    return jnp.maximum(hb, NEG_SLOPE * hb)


def discriminator_kernel(x_ref,
                         w1_ref, b1_ref,
                         w2_ref, b2_ref,
                         w3_ref, b3_ref,
                         w4_ref, b4_ref,
                         w5_ref, b5_ref,
                         o_ref):
    # Activations are (features, TM): batch sits on the lane dimension.
    h = _layer_act(x_ref[...], w1_ref, b1_ref)   # (128, TM) bf16
    h = _layer_act(h, w2_ref, b2_ref)            # (256, TM) bf16
    h = _layer_act(h, w3_ref, b3_ref)            # (512, TM) bf16
    h = _layer_act(h, w4_ref, b4_ref)            # (256, TM) bf16
    # Final layer: rows padded to 8 sublanes in the wrapper; only row 0 real.
    logits = jnp.dot(w5_ref[...], h,
                     preferred_element_type=jnp.float32) + b5_ref[...]  # (8, TM)
    logits0 = logits[0:1, :]                     # (1, TM) -- lane-dense row
    # sigmoid = 1 / (1 + exp(-x)); exp runs on the otherwise-idle EUP.
    o_ref[...] = pl.reciprocal(1.0 + jnp.exp(-logits0), approx=False)


def discriminator_forward(x, params, *, block_batch=1024):
    """x: (B, input_size) f32.  params: list of (W, b), W in PyTorch (out, in) layout."""
    B, F = x.shape

    # Batch tile: multiple of 128 lanes; prefer >= 2 grid steps so the
    # "parallel" batch axis can shard across the two TensorCores on v7x.
    half = _round_up(-(-B // 2), LANE)           # ceil(B/2) rounded up to 128
    TM = max(LANE, min(block_batch, half))
    Bp = _round_up(B, TM)

    # Transpose to (features, batch) and cast to bf16 in the wrapper.
    xt = x.T.astype(jnp.bfloat16)
    if Bp != B:
        xt = jnp.pad(xt, ((0, 0), (0, Bp - B)))

    flat = [xt]
    n_layers = len(params)
    for i, (w, b) in enumerate(params):
        w = w.astype(jnp.bfloat16)                       # (out, in)
        b = b.reshape(-1, 1).astype(jnp.float32)         # (out, 1)
        if i == n_layers - 1 and w.shape[0] < SUBLANE:
            # Pad the 1-row final layer to 8 sublanes; row 0 is the real one.
            pad = SUBLANE - w.shape[0]
            w = jnp.pad(w, ((0, pad), (0, 0)))
            b = jnp.pad(b, ((0, pad), (0, 0)))
        flat.append(w)
        flat.append(b)

    x_spec = pl.BlockSpec((F, TM), lambda i: (0, i))
    out_spec = pl.BlockSpec((1, TM), lambda i: (0, i))
    # Weights/biases: full-array blocks at a constant index -> fetched once,
    # resident in VMEM across the whole batch grid.
    param_specs = [pl.BlockSpec(a.shape, lambda i: (0, 0)) for a in flat[1:]]

    out = pl.pallas_call(
        discriminator_kernel,
        out_shape=jax.ShapeDtypeStruct((1, Bp), jnp.float32),
        grid_spec=pltpu.PrefetchScalarGridSpec(
            num_scalar_prefetch=0,
            grid=(Bp // TM,),
            in_specs=[x_spec] + param_specs,
            out_specs=out_spec,
        ),
        compiler_params=pltpu.CompilerParams(
            dimension_semantics=("parallel",),        # megacore sharding on v7x
            vmem_limit_bytes=64 * 1024 * 1024,        # headroom for TM up to ~2048
        ),
    )(*flat)

    return out[0, :B].reshape(B, 1)


def init_params(key, input_size):
    """PyTorch nn.Linear-style init: W (out, in), b (out,), U(-k, k), k=1/sqrt(fan_in)."""
    sizes = [(input_size, 128), (128, 256), (256, 512), (512, 256), (256, 1)]
    params = []
    for (fan_in, fan_out) in sizes:
        key, kw, kb = jax.random.split(key, 3)
        bound = 1.0 / (fan_in ** 0.5)
        w = jax.random.uniform(kw, (fan_out, fan_in), jnp.float32, -bound, bound)
        b = jax.random.uniform(kb, (fan_out,), jnp.float32, -bound, bound)
        params.append((w, b))
    return params


def reference_forward(x, params):
    h = x
    for i, (w, b) in enumerate(params):
        h = h @ w.T + b
        if i < len(params) - 1:
            h = jnp.where(h > 0, h, NEG_SLOPE * h)
    return jax.nn.sigmoid(h)


if __name__ == "__main__":
    B = 300           # non-multiple of 128 -> exercises padding + 3 grid steps
    INPUT_SIZE = 32   # consistent with Discriminator(input_size)

    key = jax.random.PRNGKey(0)
    kx, kp = jax.random.split(key)
    x = jax.random.normal(kx, (B, INPUT_SIZE), jnp.float32)
    params = init_params(kp, INPUT_SIZE)

    out = discriminator_forward(x, params, block_batch=128)  # TM=128, grid=(3,)
    out = jax.block_until_ready(out)

    ref = reference_forward(x, params)
    assert out.shape == (B, 1)
    # bf16 matmuls / bf16 activations with f32 accumulation -> loose tolerance.
    assert jnp.allclose(out, ref, atol=2e-2, rtol=2e-2), (
        f"max abs err {jnp.max(jnp.abs(out - ref))}")

    print("KERNEL_OK")
</pallas_src>

<mosaic_0001>
module attributes {stable_mosaic.version = 11 : i64} {
  func.func @discriminator_kernel(%arg0: i32, %arg1: memref<32x128xbf16, #tpu.memory_space<vmem>>, %arg2: memref<128x32xbf16, #tpu.memory_space<vmem>>, %arg3: memref<128x1xf32, #tpu.memory_space<vmem>>, %arg4: memref<256x128xbf16, #tpu.memory_space<vmem>>, %arg5: memref<256x1xf32, #tpu.memory_space<vmem>>, %arg6: memref<512x256xbf16, #tpu.memory_space<vmem>>, %arg7: memref<512x1xf32, #tpu.memory_space<vmem>>, %arg8: memref<256x512xbf16, #tpu.memory_space<vmem>>, %arg9: memref<256x1xf32, #tpu.memory_space<vmem>>, %arg10: memref<8x256xbf16, #tpu.memory_space<vmem>>, %arg11: memref<8x1xf32, #tpu.memory_space<vmem>>, %arg12: memref<1x128xf32, #tpu.memory_space<vmem>>) attributes {dimension_semantics = [#tpu.dimension_semantics<parallel>], iteration_bounds = array<i64: 3>, scalar_prefetch = 0 : i64, scratch_operands = 0 : i64, tpu.core_type = #tpu.core_type<tc>, window_params = [{transform_indices = @transform_0, window_bounds = array<i64: 32, 128>}, {pipeline_mode = #tpu.pipeline_mode<synchronous>, transform_indices = @transform_1, window_bounds = array<i64: 128, 32>}, {pipeline_mode = #tpu.pipeline_mode<synchronous>, transform_indices = @transform_2, window_bounds = array<i64: 128, 1>}, {pipeline_mode = #tpu.pipeline_mode<synchronous>, transform_indices = @transform_3, window_bounds = array<i64: 256, 128>}, {pipeline_mode = #tpu.pipeline_mode<synchronous>, transform_indices = @transform_4, window_bounds = array<i64: 256, 1>}, {pipeline_mode = #tpu.pipeline_mode<synchronous>, transform_indices = @transform_5, window_bounds = array<i64: 512, 256>}, {pipeline_mode = #tpu.pipeline_mode<synchronous>, transform_indices = @transform_6, window_bounds = array<i64: 512, 1>}, {pipeline_mode = #tpu.pipeline_mode<synchronous>, transform_indices = @transform_7, window_bounds = array<i64: 256, 512>}, {pipeline_mode = #tpu.pipeline_mode<synchronous>, transform_indices = @transform_8, window_bounds = array<i64: 256, 1>}, {pipeline_mode = #tpu.pipeline_mode<synchronous>, transform_indices = @transform_9, window_bounds = array<i64: 8, 256>}, {pipeline_mode = #tpu.pipeline_mode<synchronous>, transform_indices = @transform_10, window_bounds = array<i64: 8, 1>}, {transform_indices = @transform_11, window_bounds = array<i64: 1, 128>}]} {
    %c0 = arith.constant 0 : index
    %c0_0 = arith.constant 0 : index
    %0 = vector.load %arg1[%c0, %c0_0] : memref<32x128xbf16, #tpu.memory_space<vmem>>, vector<32x128xbf16>
    %c0_1 = arith.constant 0 : index
    %c0_2 = arith.constant 0 : index
    %1 = vector.load %arg2[%c0_1, %c0_2] : memref<128x32xbf16, #tpu.memory_space<vmem>>, vector<128x32xbf16>
    %cst = arith.constant dense<0.000000e+00> : vector<128x128xf32>
    %2 = tpu.matmul %1, %0, %cst {dimension_numbers = #tpu.dot_dimension_numbers<[1], [0], [0], [1], [0, 0, 1, 1], [], []>} : vector<128x32xbf16>, vector<32x128xbf16>, vector<128x128xf32> -> vector<128x128xf32>
    %c0_3 = arith.constant 0 : index
    %c0_4 = arith.constant 0 : index
    %3 = vector.load %arg3[%c0_3, %c0_4] : memref<128x1xf32, #tpu.memory_space<vmem>>, vector<128x1xf32>
    %4 = vector.broadcast %3 : vector<128x1xf32> to vector<128x128xf32>
    %5 = arith.addf %2, %4 : vector<128x128xf32>
    %6 = arith.truncf %5 : vector<128x128xf32> to vector<128x128xbf16>
    %cst_5 = arith.constant 2.001950e-01 : bf16
    %7 = vector.broadcast %cst_5 : bf16 to vector<128x128xbf16>
    %8 = arith.mulf %7, %6 : vector<128x128xbf16>
    %9 = arith.maximumf %6, %8 : vector<128x128xbf16>
    %c0_6 = arith.constant 0 : index
    %c0_7 = arith.constant 0 : index
    %10 = vector.load %arg4[%c0_6, %c0_7] : memref<256x128xbf16, #tpu.memory_space<vmem>>, vector<256x128xbf16>
    %cst_8 = arith.constant dense<0.000000e+00> : vector<256x128xf32>
    %11 = tpu.matmul %10, %9, %cst_8 {dimension_numbers = #tpu.dot_dimension_numbers<[1], [0], [0], [1], [0, 0, 1, 1], [], []>} : vector<256x128xbf16>, vector<128x128xbf16>, vector<256x128xf32> -> vector<256x128xf32>
    %c0_9 = arith.constant 0 : index
    %c0_10 = arith.constant 0 : index
    %12 = vector.load %arg5[%c0_9, %c0_10] : memref<256x1xf32, #tpu.memory_space<vmem>>, vector<256x1xf32>
    %13 = vector.broadcast %12 : vector<256x1xf32> to vector<256x128xf32>
    %14 = arith.addf %11, %13 : vector<256x128xf32>
    %15 = arith.truncf %14 : vector<256x128xf32> to vector<256x128xbf16>
    %cst_11 = arith.constant 2.001950e-01 : bf16
    %16 = vector.broadcast %cst_11 : bf16 to vector<256x128xbf16>
    %17 = arith.mulf %16, %15 : vector<256x128xbf16>
    %18 = arith.maximumf %15, %17 : vector<256x128xbf16>
    %c0_12 = arith.constant 0 : index
    %c0_13 = arith.constant 0 : index
    %19 = vector.load %arg6[%c0_12, %c0_13] : memref<512x256xbf16, #tpu.memory_space<vmem>>, vector<512x256xbf16>
    %cst_14 = arith.constant dense<0.000000e+00> : vector<512x128xf32>
    %20 = tpu.matmul %19, %18, %cst_14 {dimension_numbers = #tpu.dot_dimension_numbers<[1], [0], [0], [1], [0, 0, 1, 1], [], []>} : vector<512x256xbf16>, vector<256x128xbf16>, vector<512x128xf32> -> vector<512x128xf32>
    %c0_15 = arith.constant 0 : index
    %c0_16 = arith.constant 0 : index
    %21 = vector.load %arg7[%c0_15, %c0_16] : memref<512x1xf32, #tpu.memory_space<vmem>>, vector<512x1xf32>
    %22 = vector.broadcast %21 : vector<512x1xf32> to vector<512x128xf32>
    %23 = arith.addf %20, %22 : vector<512x128xf32>
    %24 = arith.truncf %23 : vector<512x128xf32> to vector<512x128xbf16>
    %cst_17 = arith.constant 2.001950e-01 : bf16
    %25 = vector.broadcast %cst_17 : bf16 to vector<512x128xbf16>
    %26 = arith.mulf %25, %24 : vector<512x128xbf16>
    %27 = arith.maximumf %24, %26 : vector<512x128xbf16>
    %c0_18 = arith.constant 0 : index
    %c0_19 = arith.constant 0 : index
    %28 = vector.load %arg8[%c0_18, %c0_19] : memref<256x512xbf16, #tpu.memory_space<vmem>>, vector<256x512xbf16>
    %cst_20 = arith.constant dense<0.000000e+00> : vector<256x128xf32>
    %29 = tpu.matmul %28, %27, %cst_20 {dimension_numbers = #tpu.dot_dimension_numbers<[1], [0], [0], [1], [0, 0, 1, 1], [], []>} : vector<256x512xbf16>, vector<512x128xbf16>, vector<256x128xf32> -> vector<256x128xf32>
    %c0_21 = arith.constant 0 : index
    %c0_22 = arith.constant 0 : index
    %30 = vector.load %arg9[%c0_21, %c0_22] : memref<256x1xf32, #tpu.memory_space<vmem>>, vector<256x1xf32>
    %31 = vector.broadcast %30 : vector<256x1xf32> to vector<256x128xf32>
    %32 = arith.addf %29, %31 : vector<256x128xf32>
    %33 = arith.truncf %32 : vector<256x128xf32> to vector<256x128xbf16>
    %cst_23 = arith.constant 2.001950e-01 : bf16
    %34 = vector.broadcast %cst_23 : bf16 to vector<256x128xbf16>
    %35 = arith.mulf %34, %33 : vector<256x128xbf16>
    %36 = arith.maximumf %33, %35 : vector<256x128xbf16>
    %c0_24 = arith.constant 0 : index
    %c0_25 = arith.constant 0 : index
    %37 = vector.load %arg10[%c0_24, %c0_25] : memref<8x256xbf16, #tpu.memory_space<vmem>>, vector<8x256xbf16>
    %cst_26 = arith.constant dense<0.000000e+00> : vector<8x128xf32>
    %38 = tpu.matmul %37, %36, %cst_26 {dimension_numbers = #tpu.dot_dimension_numbers<[1], [0], [0], [1], [0, 0, 1, 1], [], []>} : vector<8x256xbf16>, vector<256x128xbf16>, vector<8x128xf32> -> vector<8x128xf32>
    %c0_27 = arith.constant 0 : index
    %c0_28 = arith.constant 0 : index
    %39 = vector.load %arg11[%c0_27, %c0_28] : memref<8x1xf32, #tpu.memory_space<vmem>>, vector<8x1xf32>
    %40 = vector.broadcast %39 : vector<8x1xf32> to vector<8x128xf32>
    %41 = arith.addf %38, %40 : vector<8x128xf32>
    %42 = vector.extract_strided_slice %41 {offsets = [0, 0], sizes = [1, 128], strides = [1, 1]} : vector<8x128xf32> to vector<1x128xf32>
    %cst_29 = arith.constant 0.000000e+00 : f32
    %43 = vector.broadcast %cst_29 : f32 to vector<1x128xf32>
    %44 = arith.subf %43, %42 : vector<1x128xf32>
    %45 = math.exp %44 : vector<1x128xf32>
    %cst_30 = arith.constant 1.000000e+00 : f32
    %46 = vector.broadcast %cst_30 : f32 to vector<1x128xf32>
    %47 = arith.addf %46, %45 : vector<1x128xf32>
    %48 = tpu.reciprocal %47 : vector<1x128xf32> -> vector<1x128xf32>
    %c0_31 = arith.constant 0 : index
    %c0_32 = arith.constant 0 : index
    %49 = vector.load %arg12[%c0_31, %c0_32] : memref<1x128xf32, #tpu.memory_space<vmem>>, vector<1x128xf32>
    tpu.vector_store %arg12[%c0_31, %c0_32], %48 {strides = array<i32>} : memref<1x128xf32, #tpu.memory_space<vmem>>, vector<1x128xf32>,
    return
  }
  func.func @transform_0(%arg0: i32) -> (i32, i32) {
    %c0_i32 = arith.constant 0 : i32
    %c0_i32_0 = arith.constant 0 : i32
    return %c0_i32, %arg0 : i32, i32
  }
  func.func @transform_1(%arg0: i32) -> (i32, i32) {
    %c0_i32 = arith.constant 0 : i32
    %c0_i32_0 = arith.constant 0 : i32
    %c0_i32_1 = arith.constant 0 : i32
    return %c0_i32, %c0_i32_0 : i32, i32
  }
  func.func @transform_2(%arg0: i32) -> (i32, i32) {
    %c0_i32 = arith.constant 0 : i32
    %c0_i32_0 = arith.constant 0 : i32
    %c0_i32_1 = arith.constant 0 : i32
    return %c0_i32, %c0_i32_0 : i32, i32
  }
  func.func @transform_3(%arg0: i32) -> (i32, i32) {
    %c0_i32 = arith.constant 0 : i32
    %c0_i32_0 = arith.constant 0 : i32
    %c0_i32_1 = arith.constant 0 : i32
    return %c0_i32, %c0_i32_0 : i32, i32
  }
  func.func @transform_4(%arg0: i32) -> (i32, i32) {
    %c0_i32 = arith.constant 0 : i32
    %c0_i32_0 = arith.constant 0 : i32
    %c0_i32_1 = arith.constant 0 : i32
    return %c0_i32, %c0_i32_0 : i32, i32
  }
  func.func @transform_5(%arg0: i32) -> (i32, i32) {
    %c0_i32 = arith.constant 0 : i32
    %c0_i32_0 = arith.constant 0 : i32
    %c0_i32_1 = arith.constant 0 : i32
    return %c0_i32, %c0_i32_0 : i32, i32
  }
  func.func @transform_6(%arg0: i32) -> (i32, i32) {
    %c0_i32 = arith.constant 0 : i32
    %c0_i32_0 = arith.constant 0 : i32
    %c0_i32_1 = arith.constant 0 : i32
    return %c0_i32, %c0_i32_0 : i32, i32
  }
  func.func @transform_7(%arg0: i32) -> (i32, i32) {
    %c0_i32 = arith.constant 0 : i32
    %c0_i32_0 = arith.constant 0 : i32
    %c0_i32_1 = arith.constant 0 : i32
    return %c0_i32, %c0_i32_0 : i32, i32
  }
  func.func @transform_8(%arg0: i32) -> (i32, i32) {
    %c0_i32 = arith.constant 0 : i32
    %c0_i32_0 = arith.constant 0 : i32
    %c0_i32_1 = arith.constant 0 : i32
    return %c0_i32, %c0_i32_0 : i32, i32
  }
  func.func @transform_9(%arg0: i32) -> (i32, i32) {
    %c0_i32 = arith.constant 0 : i32
    %c0_i32_0 = arith.constant 0 : i32
    %c0_i32_1 = arith.constant 0 : i32
    return %c0_i32, %c0_i32_0 : i32, i32
  }
  func.func @transform_10(%arg0: i32) -> (i32, i32) {
    %c0_i32 = arith.constant 0 : i32
    %c0_i32_0 = arith.constant 0 : i32
    %c0_i32_1 = arith.constant 0 : i32
    return %c0_i32, %c0_i32_0 : i32, i32
  }
  func.func @transform_11(%arg0: i32) -> (i32, i32) {
    %c0_i32 = arith.constant 0 : i32
    %c0_i32_0 = arith.constant 0 : i32
    return %c0_i32, %arg0 : i32, i32
  }
}

</mosaic_0001>

<llo_original>
// kernel: tpu_custom_call.1
$region0: #{tpu_custom_call.1}
  #allocation0 [shape = 'u32[]', space=smem, size = 0x4, offset = 0x4, fixed_abs, tag = 'smem constant byte address 0x4 - core index']
  #allocation1 [shape = 'u32[144,128]{1,0:T(1,128)}', space=vmem, size = 0x12000, scoped, tag = 'internal scratch']
  %s0 = inlined_call_operand.hbm [shape: bf16[32,384], index: 0, kind: input, shape index: {}]
  %s1 = inlined_call_operand.hbm [shape: bf16[128,32], index: 1, kind: input, shape index: {}]
  %s2 = inlined_call_operand.hbm [shape: f32[128,1], index: 2, kind: input, shape index: {}]
  %s3 = inlined_call_operand.hbm [shape: bf16[256,128], index: 3, kind: input, shape index: {}]
  %s4 = inlined_call_operand.hbm [shape: f32[256,1], index: 4, kind: input, shape index: {}]
  %s5 = inlined_call_operand.hbm [shape: bf16[512,256], index: 5, kind: input, shape index: {}]
  %s6 = inlined_call_operand.hbm [shape: f32[512,1], index: 6, kind: input, shape index: {}]
  %s7 = inlined_call_operand.hbm [shape: bf16[256,512], index: 7, kind: input, shape index: {}]
  %s8 = inlined_call_operand.hbm [shape: f32[256,1], index: 8, kind: input, shape index: {}]
  %s9 = inlined_call_operand.hbm [shape: bf16[8,256], index: 9, kind: input, shape index: {}]
  %s10 = inlined_call_operand.hbm [shape: f32[8,1], index: 10, kind: input, shape index: {}]
  %s11 = inlined_call_operand.hbm [shape: f32[1,384], index: 11, kind: output, shape index: {}]
  %s12 = sld [smem:[#allocation0]]
  $region121: #{tpu_custom_call.1} parent=0
    _
  %s14 = ssub.s32 1, %s12
  %s15 = scalar_select 0, %s14, %s12
  $region1: #{tpu_custom_call.1} parent=0
    #allocation2 [shape = 'u8[16384]{0}', space=vmem, size = 0x4000, scoped, tag = 'input window, operand 0']
    #allocation3 [shape = 's32[2]{0}', space=sflag, size = 0x8, scoped, tag = 'scoped memory for tpu_custom_call.1']
    #allocation4 [shape = 's32[2]{0}', space=sflag, size = 0x8, scoped, tag = 'scoped memory for tpu_custom_call.1']
    #allocation5 [shape = 'u8[32768]{0}', space=vmem, size = 0x8000, scoped, tag = 'input window, operand 1, single buffered']
    #allocation6 [shape = 's32[1]{0}', space=sflag, size = 0x4, scoped, tag = 'scoped memory for tpu_custom_call.1']
    #allocation7 [shape = 'u8[65536]{0}', space=vmem, size = 0x10000, scoped, tag = 'input window, operand 2, single buffered']
    #allocation8 [shape = 'u8[65536]{0}', space=vmem, size = 0x10000, scoped, tag = 'input window, operand 3, single buffered']
    #allocation9 [shape = 's32[1]{0}', space=sflag, size = 0x4, scoped, tag = 'scoped memory for tpu_custom_call.1']
    #allocation10 [shape = 'u8[131072]{0}', space=vmem, size = 0x20000, scoped, tag = 'input window, operand 4, single buffered']
    #allocation11 [shape = 'u8[262144]{0}', space=vmem, size = 0x40000, scoped, tag = 'input window, operand 5, single buffered']
    #allocation12 [shape = 's32[1]{0}', space=sflag, size = 0x4, scoped, tag = 'scoped memory for tpu_custom_call.1']
    #allocation13 [shape = 'u8[262144]{0}', space=vmem, size = 0x40000, scoped, tag = 'input window, operand 6, single buffered']
    #allocation14 [shape = 'u8[262144]{0}', space=vmem, size = 0x40000, scoped, tag = 'input window, operand 7, single buffered']
    #allocation15 [shape = 's32[1]{0}', space=sflag, size = 0x4, scoped, tag = 'scoped memory for tpu_custom_call.1']
    #allocation16 [shape = 'u8[131072]{0}', space=vmem, size = 0x20000, scoped, tag = 'input window, operand 8, single buffered']
    #allocation17 [shape = 'u8[4096]{0}', space=vmem, size = 0x1000, scoped, tag = 'input window, operand 9, single buffered']
    #allocation18 [shape = 's32[1]{0}', space=sflag, size = 0x4, scoped, tag = 'scoped memory for tpu_custom_call.1']
    #allocation19 [shape = 'u8[4096]{0}', space=vmem, size = 0x1000, scoped, tag = 'input window, operand 10, single buffered']
    #allocation20 [shape = 'u8[1024]{0}', space=vmem, size = 0x400, scoped, tag = 'output window, operand 0']
    %16 = vsyncpa [#allocation3], 0
    %s17 = scalar_lea.sflag [#allocation3], 1
    %18 = vsyncpa %s17, 0
    %19 = vsyncpa [#allocation6], 0
    %20 = vsyncpa [#allocation9], 0
    %21 = vsyncpa [#allocation12], 0
    %22 = vsyncpa [#allocation15], 0
    %23 = vsyncpa [#allocation18], 0
    %24 = vsyncpa [#allocation4], 0
    %s25 = scalar_lea.sflag [#allocation4], 1
    %26 = vsyncpa %s25, 0
    loop: start=0, step=1, limit=5
    $region2: #{tpu_custom_call.1} parent=1 // loop_pre_header
      _
    $region3: #{tpu_custom_call.1} parent=1 // loop_header
      %s28 = sphi 0, %s32
      %p29 = scmp.ge.s32.totalorder %s28, 5
      %s38 = sphi 0, %s40
      %s41 = sphi 0, %s38
      %s42 = sphi 0, %s41
      %s58 = sphi 0, %s42
      %s62 = sphi 0, %s62
      %s64 = sphi 0, %s62
      %s65 = sphi 0, %s64
      %s79 = sphi 0, %s65
      %s83 = sphi 0, %s83
      %s85 = sphi 0, %s83
      %s86 = sphi 0, %s85
      %s100 = sphi 0, %s86
      %s104 = sphi 0, %s104
      %s106 = sphi 0, %s104
      %s107 = sphi 0, %s106
      %s121 = sphi 0, %s107
      %s125 = sphi 0, %s125
      %s127 = sphi 0, %s125
      %s128 = sphi 0, %s127
      %s142 = sphi 0, %s128
      %s146 = sphi 0, %s146
      %s148 = sphi 0, %s146
      %s149 = sphi 0, %s148
      %s163 = sphi 0, %s149
      %s167 = sphi 0, %s167
      %s169 = sphi 0, %s167
      %s170 = sphi 0, %s169
      %s184 = sphi 0, %s170
      %s188 = sphi 0, %s188
      %s190 = sphi 0, %s188
      %s191 = sphi 0, %s190
      %s205 = sphi 0, %s191
      %s209 = sphi 0, %s209
      %s211 = sphi 0, %s209
      %s212 = sphi 0, %s211
      %s226 = sphi 0, %s212
      %s230 = sphi 0, %s230
      %s232 = sphi 0, %s230
      %s233 = sphi 0, %s232
      %s247 = sphi 0, %s233
      %s251 = sphi 0, %s251
      %s253 = sphi 0, %s251
      %s254 = sphi 0, %s253
      %s268 = sphi 0, %s254
      %s274 = sphi 0, %s276
      %s277 = sphi 0, %s274
      %s278 = sphi 0, %s277
      %s294 = sphi 0, %s278
    $region4: #{tpu_custom_call.1} parent=1 // loop_header_branch
      %31 = sbr.rel (%p29) target = $region8
    $region5: #{tpu_custom_call.1} parent=1 // loop_body
      %s33 = ssub.s32 %s28, 1
      %s34 = ssub.s32 %s28, 2
      %s35 = sadd.s32 %s28, 1
      %s36 = ssub.s32 %s28, %s35
      %p37 = scmp.eq.s32.totalorder %s36, 0
      %s39 = sadd.s32 %s38, 1
      %s40 = scalar_select %p37, %s38, %s39
      %p43 = pneg %p37
      %p44 = scmp.eq.s32.totalorder %s28, 2
      %p45 = por %p43, %p44
      %p46 = scmp.ne.s32.totalorder %s38, %s41
      %p47 = scmp.eq.s32.totalorder %s28, 0
      %p48 = por %p46, %p47
      %p49 = scmp.ne.s32.totalorder %s38, %s41
      %p50 = scmp.eq.s32.totalorder %s33, 2
      %p51 = por %p49, %p50
      %p52 = scmp.ne.s32.totalorder %s41, %s42
      %p53 = scmp.eq.s32.totalorder %s33, 0
      %p54 = por %p52, %p53
      %p55 = scmp.ne.s32.totalorder %s41, %s42
      %p56 = scmp.eq.s32.totalorder %s34, 2
      %p57 = por %p55, %p56
      %p59 = scmp.ne.s32.totalorder %s42, %s58
      %p60 = scmp.eq.s32.totalorder %s34, 0
      %p61 = por %p59, %p60
      %s63 = sadd.s32 %s62, 1
      %p66 = scmp.eq.s32.totalorder %s28, 2
      %p67 = scmp.ne.s32.totalorder %s62, %s64
      %p68 = scmp.eq.s32.totalorder %s28, 0
      %p69 = por %p67, %p68
      %p70 = scmp.ne.s32.totalorder %s62, %s64
      %p71 = scmp.eq.s32.totalorder %s33, 2
      %p72 = por %p70, %p71
      %p73 = scmp.ne.s32.totalorder %s64, %s65
      %p74 = scmp.eq.s32.totalorder %s33, 0
      %p75 = por %p73, %p74
      %p76 = scmp.ne.s32.totalorder %s64, %s65
      %p77 = scmp.eq.s32.totalorder %s34, 2
      %p78 = por %p76, %p77
      %p80 = scmp.ne.s32.totalorder %s65, %s79
      %p81 = scmp.eq.s32.totalorder %s34, 0
      %p82 = por %p80, %p81
      %s84 = sadd.s32 %s83, 1
      %p87 = scmp.eq.s32.totalorder %s28, 2
      %p88 = scmp.ne.s32.totalorder %s83, %s85
      %p89 = scmp.eq.s32.totalorder %s28, 0
      %p90 = por %p88, %p89
      %p91 = scmp.ne.s32.totalorder %s83, %s85
      %p92 = scmp.eq.s32.totalorder %s33, 2
      %p93 = por %p91, %p92
      %p94 = scmp.ne.s32.totalorder %s85, %s86
      %p95 = scmp.eq.s32.totalorder %s33, 0
      %p96 = por %p94, %p95
      %p97 = scmp.ne.s32.totalorder %s85, %s86
      %p98 = scmp.eq.s32.totalorder %s34, 2
      %p99 = por %p97, %p98
      %p101 = scmp.ne.s32.totalorder %s86, %s100
      %p102 = scmp.eq.s32.totalorder %s34, 0
      %p103 = por %p101, %p102
      %s105 = sadd.s32 %s104, 1
      %p108 = scmp.eq.s32.totalorder %s28, 2
      %p109 = scmp.ne.s32.totalorder %s104, %s106
      %p110 = scmp.eq.s32.totalorder %s28, 0
      %p111 = por %p109, %p110
      %p112 = scmp.ne.s32.totalorder %s104, %s106
      %p113 = scmp.eq.s32.totalorder %s33, 2
      %p114 = por %p112, %p113
      %p115 = scmp.ne.s32.totalorder %s106, %s107
      %p116 = scmp.eq.s32.totalorder %s33, 0
      %p117 = por %p115, %p116
      %p118 = scmp.ne.s32.totalorder %s106, %s107
      %p119 = scmp.eq.s32.totalorder %s34, 2
      %p120 = por %p118, %p119
      %p122 = scmp.ne.s32.totalorder %s107, %s121
      %p123 = scmp.eq.s32.totalorder %s34, 0
      %p124 = por %p122, %p123
      %s126 = sadd.s32 %s125, 1
      %p129 = scmp.eq.s32.totalorder %s28, 2
      %p130 = scmp.ne.s32.totalorder %s125, %s127
      %p131 = scmp.eq.s32.totalorder %s28, 0
      %p132 = por %p130, %p131
      %p133 = scmp.ne.s32.totalorder %s125, %s127
      %p134 = scmp.eq.s32.totalorder %s33, 2
      %p135 = por %p133, %p134
      %p136 = scmp.ne.s32.totalorder %s127, %s128
      %p137 = scmp.eq.s32.totalorder %s33, 0
      %p138 = por %p136, %p137
      %p139 = scmp.ne.s32.totalorder %s127, %s128
      %p140 = scmp.eq.s32.totalorder %s34, 2
      %p141 = por %p139, %p140
      %p143 = scmp.ne.s32.totalorder %s128, %s142
      %p144 = scmp.eq.s32.totalorder %s34, 0
      %p145 = por %p143, %p144
      %s147 = sadd.s32 %s146, 1
      %p150 = scmp.eq.s32.totalorder %s28, 2
      %p151 = scmp.ne.s32.totalorder %s146, %s148
      %p152 = scmp.eq.s32.totalorder %s28, 0
      %p153 = por %p151, %p152
      %p154 = scmp.ne.s32.totalorder %s146, %s148
      %p155 = scmp.eq.s32.totalorder %s33, 2
      %p156 = por %p154, %p155
      %p157 = scmp.ne.s32.totalorder %s148, %s149
      %p158 = scmp.eq.s32.totalorder %s33, 0
      %p159 = por %p157, %p158
      %p160 = scmp.ne.s32.totalorder %s148, %s149
      %p161 = scmp.eq.s32.totalorder %s34, 2
      %p162 = por %p160, %p161
      %p164 = scmp.ne.s32.totalorder %s149, %s163
      %p165 = scmp.eq.s32.totalorder %s34, 0
      %p166 = por %p164, %p165
      %s168 = sadd.s32 %s167, 1
      %p171 = scmp.eq.s32.totalorder %s28, 2
      %p172 = scmp.ne.s32.totalorder %s167, %s169
      %p173 = scmp.eq.s32.totalorder %s28, 0
      %p174 = por %p172, %p173
      %p175 = scmp.ne.s32.totalorder %s167, %s169
      %p176 = scmp.eq.s32.totalorder %s33, 2
      %p177 = por %p175, %p176
      %p178 = scmp.ne.s32.totalorder %s169, %s170
      %p179 = scmp.eq.s32.totalorder %s33, 0
      %p180 = por %p178, %p179
      %p181 = scmp.ne.s32.totalorder %s169, %s170
      %p182 = scmp.eq.s32.totalorder %s34, 2
      %p183 = por %p181, %p182
      %p185 = scmp.ne.s32.totalorder %s170, %s184
      %p186 = scmp.eq.s32.totalorder %s34, 0
      %p187 = por %p185, %p186
      %s189 = sadd.s32 %s188, 1
      %p192 = scmp.eq.s32.totalorder %s28, 2
      %p193 = scmp.ne.s32.totalorder %s188, %s190
      %p194 = scmp.eq.s32.totalorder %s28, 0
      %p195 = por %p193, %p194
      %p196 = scmp.ne.s32.totalorder %s188, %s190
      %p197 = scmp.eq.s32.totalorder %s33, 2
      %p198 = por %p196, %p197
      %p199 = scmp.ne.s32.totalorder %s190, %s191
      %p200 = scmp.eq.s32.totalorder %s33, 0
      %p201 = por %p199, %p200
      %p202 = scmp.ne.s32.totalorder %s190, %s191
      %p203 = scmp.eq.s32.totalorder %s34, 2
      %p204 = por %p202, %p203
      %p206 = scmp.ne.s32.totalorder %s191, %s205
      %p207 = scmp.eq.s32.totalorder %s34, 0
      %p208 = por %p206, %p207
      %s210 = sadd.s32 %s209, 1
      %p213 = scmp.eq.s32.totalorder %s28, 2
      %p214 = scmp.ne.s32.totalorder %s209, %s211
      %p215 = scmp.eq.s32.totalorder %s28, 0
      %p216 = por %p214, %p215
      %p217 = scmp.ne.s32.totalorder %s209, %s211
      %p218 = scmp.eq.s32.totalorder %s33, 2
      %p219 = por %p217, %p218
      %p220 = scmp.ne.s32.totalorder %s211, %s212
      %p221 = scmp.eq.s32.totalorder %s33, 0
      %p222 = por %p220, %p221
      %p223 = scmp.ne.s32.totalorder %s211, %s212
      %p224 = scmp.eq.s32.totalorder %s34, 2
      %p225 = por %p223, %p224
      %p227 = scmp.ne.s32.totalorder %s212, %s226
      %p228 = scmp.eq.s32.totalorder %s34, 0
      %p229 = por %p227, %p228
      %s231 = sadd.s32 %s230, 1
      %p234 = scmp.eq.s32.totalorder %s28, 2
      %p235 = scmp.ne.s32.totalorder %s230, %s232
      %p236 = scmp.eq.s32.totalorder %s28, 0
      %p237 = por %p235, %p236
      %p238 = scmp.ne.s32.totalorder %s230, %s232
      %p239 = scmp.eq.s32.totalorder %s33, 2
      %p240 = por %p238, %p239
      %p241 = scmp.ne.s32.totalorder %s232, %s233
      %p242 = scmp.eq.s32.totalorder %s33, 0
      %p243 = por %p241, %p242
      %p244 = scmp.ne.s32.totalorder %s232, %s233
      %p245 = scmp.eq.s32.totalorder %s34, 2
      %p246 = por %p244, %p245
      %p248 = scmp.ne.s32.totalorder %s233, %s247
      %p249 = scmp.eq.s32.totalorder %s34, 0
      %p250 = por %p248, %p249
      %s252 = sadd.s32 %s251, 1
      %p255 = scmp.eq.s32.totalorder %s28, 2
      %p256 = scmp.ne.s32.totalorder %s251, %s253
      %p257 = scmp.eq.s32.totalorder %s28, 0
      %p258 = por %p256, %p257
      %p259 = scmp.ne.s32.totalorder %s251, %s253
      %p260 = scmp.eq.s32.totalorder %s33, 2
      %p261 = por %p259, %p260
      %p262 = scmp.ne.s32.totalorder %s253, %s254
      %p263 = scmp.eq.s32.totalorder %s33, 0
      %p264 = por %p262, %p263
      %p265 = scmp.ne.s32.totalorder %s253, %s254
      %p266 = scmp.eq.s32.totalorder %s34, 2
      %p267 = por %p265, %p266
      %p269 = scmp.ne.s32.totalorder %s254, %s268
      %p270 = scmp.eq.s32.totalorder %s34, 0
      %p271 = por %p269, %p270
      %s272 = ssub.s32 %s28, %s35
      %p273 = scmp.eq.s32.totalorder %s272, 0
      %s275 = sadd.s32 %s274, 1
      %s276 = scalar_select %p273, %s274, %s275
      %p279 = pneg %p273
      %p280 = scmp.eq.s32.totalorder %s28, 2
      %p281 = por %p279, %p280
      %p282 = scmp.ne.s32.totalorder %s274, %s277
      %p283 = scmp.eq.s32.totalorder %s28, 0
      %p284 = por %p282, %p283
      %p285 = scmp.ne.s32.totalorder %s274, %s277
      %p286 = scmp.eq.s32.totalorder %s33, 2
      %p287 = por %p285, %p286
      %p288 = scmp.ne.s32.totalorder %s277, %s278
      %p289 = scmp.eq.s32.totalorder %s33, 0
      %p290 = por %p288, %p289
      %p291 = scmp.ne.s32.totalorder %s277, %s278
      %p292 = scmp.eq.s32.totalorder %s34, 2
      %p293 = por %p291, %p292
      %p295 = scmp.ne.s32.totalorder %s278, %s294
      %p296 = scmp.eq.s32.totalorder %s34, 0
      %p297 = por %p295, %p296
      %p298 = scmp.le.s32.totalorder 1, %s28
      %p299 = scmp.lt.s32.totalorder %s28, 4
      %p300 = pnand %p298, %p299
      %p301 = pneg %p300
      // Predicated region
      $region9: #{tpu_custom_call.1} parent=5 // pred_check
        _
      $region10: #{tpu_custom_call.1} parent=5 // pred_check_branch
        %303 = sbr.rel (%p300) target = $region12
      $region11: #{tpu_custom_call.1} parent=5 // pred_region
        %s304 = ssub.s32 %s28, 1
        // Predicated region
        $region13: #{tpu_custom_call.1} parent=11 // pred_check
          %p305 = pneg %p75
        $region14: #{tpu_custom_call.1} parent=11 // pred_check_branch
          %307 = sbr.rel (%p305) target = $region16
        $region15: #{tpu_custom_call.1} parent=11 // pred_region
          %s309 = ssub.s32 1024, 1024
          %310 = vsyncadd [#allocation6], %s309
          %s311 = sshll.u32 [#allocation5], 4
          %s312 = int_to_ptr.vmem [resolvable:$true] %s311
          %317 = dma.hbm_to_vmem [thread:$0]  %s1, 1024, %s312, [#allocation6], 64, 64, 4
        $region16: #{tpu_custom_call.1} parent=11 // pred_fallthru
          _
        // Predicated region
        $region17: #{tpu_custom_call.1} parent=11 // pred_check
          %p318 = pneg %p96
        $region18: #{tpu_custom_call.1} parent=11 // pred_check_branch
          %320 = sbr.rel (%p318) target = $region20
        $region19: #{tpu_custom_call.1} parent=11 // pred_region
          %s322 = ssub.s32 2048, 2048
          %323 = vsyncadd [#allocation6], %s322
          %s324 = sshll.u32 [#allocation7], 4
          %s325 = int_to_ptr.vmem [resolvable:$true] %s324
          %330 = dma.hbm_to_vmem [thread:$0]  %s2, 2048, %s325, [#allocation6], 128, 128, 8
        $region20: #{tpu_custom_call.1} parent=11 // pred_fallthru
          _
        // Predicated region
        $region21: #{tpu_custom_call.1} parent=11 // pred_check
          %p331 = pneg %p117
        $region22: #{tpu_custom_call.1} parent=11 // pred_check_branch
          %333 = sbr.rel (%p331) target = $region24
        $region23: #{tpu_custom_call.1} parent=11 // pred_region
          %s335 = ssub.s32 2048, 2048
          %336 = vsyncadd [#allocation9], %s335
          %s337 = sshll.u32 [#allocation8], 4
          %s338 = int_to_ptr.vmem [resolvable:$true] %s337
          %343 = dma.hbm_to_vmem [thread:$0]  %s3, 2048, %s338, [#allocation9], 64, 64, 4
        $region24: #{tpu_custom_call.1} parent=11 // pred_fallthru
          _
        // Predicated region
        $region25: #{tpu_custom_call.1} parent=11 // pred_check
          %p344 = pneg %p138
        $region26: #{tpu_custom_call.1} parent=11 // pred_check_branch
          %346 = sbr.rel (%p344) target = $region28
        $region27: #{tpu_custom_call.1} parent=11 // pred_region
          %s348 = ssub.s32 4096, 4096
          %349 = vsyncadd [#allocation9], %s348
          %s350 = sshll.u32 [#allocation10], 4
          %s351 = int_to_ptr.vmem [resolvable:$true] %s350
          %356 = dma.hbm_to_vmem [thread:$0]  %s4, 4096, %s351, [#allocation9], 128, 128, 8
        $region28: #{tpu_custom_call.1} parent=11 // pred_fallthru
          _
        // Predicated region
        $region29: #{tpu_custom_call.1} parent=11 // pred_check
          %p357 = pneg %p159
        $region30: #{tpu_custom_call.1} parent=11 // pred_check_branch
          %359 = sbr.rel (%p357) target = $region32
        $region31: #{tpu_custom_call.1} parent=11 // pred_region
          %s361 = ssub.s32 8192, 8192
          %362 = vsyncadd [#allocation12], %s361
          %s363 = sshll.u32 [#allocation11], 4
          %s364 = int_to_ptr.vmem [resolvable:$true] %s363
          %369 = dma.hbm_to_vmem [thread:$0]  %s5, 8192, %s364, [#allocation12], 128, 128, 8
        $region32: #{tpu_custom_call.1} parent=11 // pred_fallthru
          _
        // Predicated region
        $region33: #{tpu_custom_call.1} parent=11 // pred_check
          %p370 = pneg %p180
        $region34: #{tpu_custom_call.1} parent=11 // pred_check_branch
          %372 = sbr.rel (%p370) target = $region36
        $region35: #{tpu_custom_call.1} parent=11 // pred_region
          %s374 = ssub.s32 8192, 8192
          %375 = vsyncadd [#allocation12], %s374
          %s376 = sshll.u32 [#allocation13], 4
          %s377 = int_to_ptr.vmem [resolvable:$true] %s376
          %382 = dma.hbm_to_vmem [thread:$0]  %s6, 8192, %s377, [#allocation12], 128, 128, 8
        $region36: #{tpu_custom_call.1} parent=11 // pred_fallthru
          _
        // Predicated region
        $region37: #{tpu_custom_call.1} parent=11 // pred_check
          %p383 = pneg %p201
        $region38: #{tpu_custom_call.1} parent=11 // pred_check_branch
          %385 = sbr.rel (%p383) target = $region40
        $region39: #{tpu_custom_call.1} parent=11 // pred_region
          %s387 = ssub.s32 8192, 8192
          %388 = vsyncadd [#allocation15], %s387
          %s389 = sshll.u32 [#allocation14], 4
          %s390 = int_to_ptr.vmem [resolvable:$true] %s389
          %395 = dma.hbm_to_vmem [thread:$0]  %s7, 8192, %s390, [#allocation15], 256, 256, 16
        $region40: #{tpu_custom_call.1} parent=11 // pred_fallthru
          _
        // Predicated region
        $region41: #{tpu_custom_call.1} parent=11 // pred_check
          %p396 = pneg %p222
        $region42: #{tpu_custom_call.1} parent=11 // pred_check_branch
          %398 = sbr.rel (%p396) target = $region44
        $region43: #{tpu_custom_call.1} parent=11 // pred_region
          %s400 = ssub.s32 4096, 4096
          %401 = vsyncadd [#allocation15], %s400
          %s402 = sshll.u32 [#allocation16], 4
          %s403 = int_to_ptr.vmem [resolvable:$true] %s402
          %408 = dma.hbm_to_vmem [thread:$0]  %s8, 4096, %s403, [#allocation15], 128, 128, 8
        $region44: #{tpu_custom_call.1} parent=11 // pred_fallthru
          _
        // Predicated region
        $region45: #{tpu_custom_call.1} parent=11 // pred_check
          %p409 = pneg %p243
        $region46: #{tpu_custom_call.1} parent=11 // pred_check_branch
          %411 = sbr.rel (%p409) target = $region48
        $region47: #{tpu_custom_call.1} parent=11 // pred_region
          %s413 = ssub.s32 128, 128
          %414 = vsyncadd [#allocation18], %s413
          %s416 = sshll.u32 [#allocation17], 4
          %s417 = int_to_ptr.vmem [resolvable:$true] %s416
          %419 = dma.hbm_to_vmem [thread:$0]  %s9, 128, %s417, [#allocation18]
        $region48: #{tpu_custom_call.1} parent=11 // pred_fallthru
          _
        // Predicated region
        $region49: #{tpu_custom_call.1} parent=11 // pred_check
          %p420 = pneg %p264
        $region50: #{tpu_custom_call.1} parent=11 // pred_check_branch
          %422 = sbr.rel (%p420) target = $region52
        $region51: #{tpu_custom_call.1} parent=11 // pred_region
          %s424 = ssub.s32 128, 128
          %425 = vsyncadd [#allocation18], %s424
          %s427 = sshll.u32 [#allocation19], 4
          %s428 = int_to_ptr.vmem [resolvable:$true] %s427
          %430 = dma.hbm_to_vmem [thread:$0]  %s10, 128, %s428, [#allocation18]
        $region52: #{tpu_custom_call.1} parent=11 // pred_fallthru
          _
      $region12: #{tpu_custom_call.1} parent=5 // pred_fallthru
        _
      %p431 = scmp.lt.s32.totalorder %s28, 3
      // Predicated region
      $region53: #{tpu_custom_call.1} parent=5 // pred_check
        %p432 = pneg %p431
      $region54: #{tpu_custom_call.1} parent=5 // pred_check_branch
        %434 = sbr.rel (%p432) target = $region56
      $region55: #{tpu_custom_call.1} parent=5 // pred_region
        // Predicated region
        $region57: #{tpu_custom_call.1} parent=55 // pred_check
          %p435 = pneg %p48
        $region58: #{tpu_custom_call.1} parent=55 // pred_check_branch
          %437 = sbr.rel (%p435) target = $region60
        $region59: #{tpu_custom_call.1} parent=55 // pred_region
          %s438 = sand.u32 %s38, 1
          %s439 = scalar_lea.sflag [#allocation3], %s438
          %s440 = sand.u32 %s38, 1
          %s441 = smul.addr %s440, 16
          %s442 = scalar_lea.vmem [#allocation2], %s441
          %s444 = ssub.s32 256, 256
          %445 = vsyncadd %s439, %s444
          %s446 = smul.addr %s28, 64
          %s447 = scalar_lea.hbm %s0, %s446
          %s448 = sshll.u32 %s442, 4
          %s449 = int_to_ptr.vmem [resolvable:$true] %s448
          %454 = dma.hbm_to_vmem [thread:$0]  %s447, 256, %s449, %s439, 192, 64, 4
        $region60: #{tpu_custom_call.1} parent=55 // pred_fallthru
          _
      $region56: #{tpu_custom_call.1} parent=5 // pred_fallthru
        _
      %p455 = scmp.le.s32.totalorder 1, %s28
      %p456 = scmp.lt.s32.totalorder %s28, 4
      %p457 = pnand %p455, %p456
      %p458 = pneg %p457
      // Predicated region
      $region61: #{tpu_custom_call.1} parent=5 // pred_check
        _
      $region62: #{tpu_custom_call.1} parent=5 // pred_check_branch
        %460 = sbr.rel (%p457) target = $region64
      $region63: #{tpu_custom_call.1} parent=5 // pred_region
        %s461 = ssub.s32 %s28, 1
        %s462 = sand.u32 %s41, 1
        %s463 = scalar_lea.sflag [#allocation3], %s462
        %s464 = sand.u32 %s41, 1
        %s465 = smul.addr %s464, 16
        %s466 = scalar_lea.vmem [#allocation2], %s465
        // Predicated region
        $region65: #{tpu_custom_call.1} parent=63 // pred_check
          %p467 = pneg %p54
        $region66: #{tpu_custom_call.1} parent=63 // pred_check_branch
          %469 = sbr.rel (%p467) target = $region68
        $region67: #{tpu_custom_call.1} parent=63 // pred_region
          %470 = dma.done %s463, 256
        $region68: #{tpu_custom_call.1} parent=63 // pred_fallthru
          _
        // Predicated region
        $region69: #{tpu_custom_call.1} parent=63 // pred_check
          %p471 = pneg %p75
        $region70: #{tpu_custom_call.1} parent=63 // pred_check_branch
          %473 = sbr.rel (%p471) target = $region72
        $region71: #{tpu_custom_call.1} parent=63 // pred_region
          %474 = dma.done [#allocation6], 1024
        $region72: #{tpu_custom_call.1} parent=63 // pred_fallthru
          _
        // Predicated region
        $region73: #{tpu_custom_call.1} parent=63 // pred_check
          %p475 = pneg %p96
        $region74: #{tpu_custom_call.1} parent=63 // pred_check_branch
          %477 = sbr.rel (%p475) target = $region76
        $region75: #{tpu_custom_call.1} parent=63 // pred_region
          %478 = dma.done [#allocation6], 2048
        $region76: #{tpu_custom_call.1} parent=63 // pred_fallthru
          _
        // Predicated region
        $region77: #{tpu_custom_call.1} parent=63 // pred_check
          %p479 = pneg %p117
        $region78: #{tpu_custom_call.1} parent=63 // pred_check_branch
          %481 = sbr.rel (%p479) target = $region80
        $region79: #{tpu_custom_call.1} parent=63 // pred_region
          %482 = dma.done [#allocation9], 2048
        $region80: #{tpu_custom_call.1} parent=63 // pred_fallthru
          _
        // Predicated region
        $region81: #{tpu_custom_call.1} parent=63 // pred_check
          %p483 = pneg %p138
        $region82: #{tpu_custom_call.1} parent=63 // pred_check_branch
          %485 = sbr.rel (%p483) target = $region84
        $region83: #{tpu_custom_call.1} parent=63 // pred_region
          %486 = dma.done [#allocation9], 4096
        $region84: #{tpu_custom_call.1} parent=63 // pred_fallthru
          _
        // Predicated region
        $region85: #{tpu_custom_call.1} parent=63 // pred_check
          %p487 = pneg %p159
        $region86: #{tpu_custom_call.1} parent=63 // pred_check_branch
          %489 = sbr.rel (%p487) target = $region88
        $region87: #{tpu_custom_call.1} parent=63 // pred_region
          %490 = dma.done [#allocation12], 8192
        $region88: #{tpu_custom_call.1} parent=63 // pred_fallthru
          _
        // Predicated region
        $region89: #{tpu_custom_call.1} parent=63 // pred_check
          %p491 = pneg %p180
        $region90: #{tpu_custom_call.1} parent=63 // pred_check_branch
          %493 = sbr.rel (%p491) target = $region92
        $region91: #{tpu_custom_call.1} parent=63 // pred_region
          %494 = dma.done [#allocation12], 8192
        $region92: #{tpu_custom_call.1} parent=63 // pred_fallthru
          _
        // Predicated region
        $region93: #{tpu_custom_call.1} parent=63 // pred_check
          %p495 = pneg %p201
        $region94: #{tpu_custom_call.1} parent=63 // pred_check_branch
          %497 = sbr.rel (%p495) target = $region96
        $region95: #{tpu_custom_call.1} parent=63 // pred_region
          %498 = dma.done [#allocation15], 8192
        $region96: #{tpu_custom_call.1} parent=63 // pred_fallthru
          _
        // Predicated region
        $region97: #{tpu_custom_call.1} parent=63 // pred_check
          %p499 = pneg %p222
        $region98: #{tpu_custom_call.1} parent=63 // pred_check_branch
          %501 = sbr.rel (%p499) target = $region100
        $region99: #{tpu_custom_call.1} parent=63 // pred_region
          %502 = dma.done [#allocation15], 4096
        $region100: #{tpu_custom_call.1} parent=63 // pred_fallthru
          _
        // Predicated region
        $region101: #{tpu_custom_call.1} parent=63 // pred_check
          %p503 = pneg %p243
        $region102: #{tpu_custom_call.1} parent=63 // pred_check_branch
          %505 = sbr.rel (%p503) target = $region104
        $region103: #{tpu_custom_call.1} parent=63 // pred_region
          %506 = dma.done [#allocation18], 128
        $region104: #{tpu_custom_call.1} parent=63 // pred_fallthru
          _
        // Predicated region
        $region105: #{tpu_custom_call.1} parent=63 // pred_check
          %p507 = pneg %p264
        $region106: #{tpu_custom_call.1} parent=63 // pred_check_branch
          %509 = sbr.rel (%p507) target = $region108
        $region107: #{tpu_custom_call.1} parent=63 // pred_region
          %510 = dma.done [#allocation18], 128
        $region108: #{tpu_custom_call.1} parent=63 // pred_fallthru
          _
        %s511 = sand.u32 %s41, 1
        %s512 = scalar_lea.sflag [#allocation3], %s511
        %s513 = sand.u32 %s41, 1
        %s514 = smul.addr %s513, 16
        %s515 = scalar_lea.vmem [#allocation2], %s514
        %p516 = pneg %p54
        %p517 = pneg %p51
        %p518 = pneg %p75
        %p519 = pneg %p72
        %p520 = pneg %p96
        %p521 = pneg %p93
        %p522 = pneg %p117
        %p523 = pneg %p114
        %p524 = pneg %p138
        %p525 = pneg %p135
        %p526 = pneg %p159
        %p527 = pneg %p156
        %p528 = pneg %p180
        %p529 = pneg %p177
        %p530 = pneg %p201
        %p531 = pneg %p198
        %p532 = pneg %p222
        %p533 = pneg %p219
        %p534 = pneg %p243
        %p535 = pneg %p240
        %p536 = pneg %p264
        %p537 = pneg %p261
        %p538 = pneg %p290
        %p539 = pneg %p287
        %s540 = sand.u32 %s277, 1
        %s541 = scalar_lea.sflag [#allocation4], %s540
        %s542 = sand.u32 %s277, 1
        %s543 = scalar_lea.vmem [#allocation20], %s542
        %v546 = vld [vmem:[%s466] sm:$0xf]
        %v547 = vld [vmem:[%s466 + $0x4] sm:$0xf]
        %v548 = vld [vmem:[%s466 + $0x8] sm:$0xf]
        %v549 = vld [vmem:[%s466 + $0xc] sm:$0xf]
        %v550 = vld [vmem:[#allocation5] sm:$0xf]
        %v551 = vld [vmem:[#allocation5 + $0x4] sm:$0xf]
        %v552 = vld [vmem:[#allocation5 + $0x8] sm:$0xf]
        %v553 = vld [vmem:[#allocation5 + $0xc] sm:$0xf]
        %v554 = vld [vmem:[#allocation5 + $0x10] sm:$0xf]
        %v555 = vld [vmem:[#allocation5 + $0x14] sm:$0xf]
        %v556 = vld [vmem:[#allocation5 + $0x18] sm:$0xf]
        %v557 = vld [vmem:[#allocation5 + $0x1c] sm:$0xf]
        %v558 = vld [vmem:[#allocation5 + $0x20] sm:$0xf]
        %v559 = vld [vmem:[#allocation5 + $0x24] sm:$0xf]
        %v560 = vld [vmem:[#allocation5 + $0x28] sm:$0xf]
        %v561 = vld [vmem:[#allocation5 + $0x2c] sm:$0xf]
        %v562 = vld [vmem:[#allocation5 + $0x30] sm:$0xf]
        %v563 = vld [vmem:[#allocation5 + $0x34] sm:$0xf]
        %v564 = vld [vmem:[#allocation5 + $0x38] sm:$0xf]
        %v565 = vld [vmem:[#allocation5 + $0x3c] sm:$0xf]
        %v566 = vld [vmem:[#allocation7] sm:$0xff]
        %v567 = vld [vmem:[#allocation7 + $0x8] sm:$0xff]
        %v568 = vld [vmem:[#allocation7 + $0x10] sm:$0xff]
        %v569 = vld [vmem:[#allocation7 + $0x18] sm:$0xff]
        %v570 = vld [vmem:[#allocation7 + $0x20] sm:$0xff]
        %v571 = vld [vmem:[#allocation7 + $0x28] sm:$0xff]
        %v572 = vld [vmem:[#allocation7 + $0x30] sm:$0xff]
        %v573 = vld [vmem:[#allocation7 + $0x38] sm:$0xff]
        %v574 = vld [vmem:[#allocation7 + $0x40] sm:$0xff]
        %v575 = vld [vmem:[#allocation7 + $0x48] sm:$0xff]
        %v576 = vld [vmem:[#allocation7 + $0x50] sm:$0xff]
        %v577 = vld [vmem:[#allocation7 + $0x58] sm:$0xff]
        %v578 = vld [vmem:[#allocation7 + $0x60] sm:$0xff]
        %v579 = vld [vmem:[#allocation7 + $0x68] sm:$0xff]
        %v580 = vld [vmem:[#allocation7 + $0x70] sm:$0xff]
        %v581 = vld [vmem:[#allocation7 + $0x78] sm:$0xff]
        %583 = vset.pattern.permute.xlu0 0
        %584 = vperm.xlu0 %583, %v566
        %v585 = vpop.permute.xlu0 %584
        %588 = vset.pattern.permute.xlu0 0
        %589 = vperm.xlu0 %588, %v567
        %v590 = vpop.permute.xlu0 %589
        %593 = vset.pattern.permute.xlu0 0
        %594 = vperm.xlu0 %593, %v568
        %v595 = vpop.permute.xlu0 %594
        %598 = vset.pattern.permute.xlu0 0
        %599 = vperm.xlu0 %598, %v569
        %v600 = vpop.permute.xlu0 %599
        %603 = vset.pattern.permute.xlu0 0
        %604 = vperm.xlu0 %603, %v570
        %v605 = vpop.permute.xlu0 %604
        %608 = vset.pattern.permute.xlu0 0
        %609 = vperm.xlu0 %608, %v571
        %v610 = vpop.permute.xlu0 %609
        %613 = vset.pattern.permute.xlu0 0
        %614 = vperm.xlu0 %613, %v572
        %v615 = vpop.permute.xlu0 %614
        %618 = vset.pattern.permute.xlu0 0
        %619 = vperm.xlu0 %618, %v573
        %v620 = vpop.permute.xlu0 %619
        %623 = vset.pattern.permute.xlu0 0
        %624 = vperm.xlu0 %623, %v574
        %v625 = vpop.permute.xlu0 %624
        %628 = vset.pattern.permute.xlu0 0
        %629 = vperm.xlu0 %628, %v575
        %v630 = vpop.permute.xlu0 %629
        %633 = vset.pattern.permute.xlu0 0
        %634 = vperm.xlu0 %633, %v576
        %v635 = vpop.permute.xlu0 %634
        %638 = vset.pattern.permute.xlu0 0
        %639 = vperm.xlu0 %638, %v577
        %v640 = vpop.permute.xlu0 %639
        %643 = vset.pattern.permute.xlu0 0
        %644 = vperm.xlu0 %643, %v578
        %v645 = vpop.permute.xlu0 %644
        %648 = vset.pattern.permute.xlu0 0
        %649 = vperm.xlu0 %648, %v579
        %v650 = vpop.permute.xlu0 %649
        %653 = vset.pattern.permute.xlu0 0
        %654 = vperm.xlu0 %653, %v580
        %v655 = vpop.permute.xlu0 %654
        %658 = vset.pattern.permute.xlu0 0
        %659 = vperm.xlu0 %658, %v581
        %v660 = vpop.permute.xlu0 %659
        %v678 = vunpack.c.l.b16 %v550
        %v679 = vunpack.c.l.b16 %v551
        %v680 = vunpack.c.l.b16 %v552
        %v681 = vunpack.c.l.b16 %v553
        %v682 = vunpack.c.l.b16 %v554
        %v683 = vunpack.c.l.b16 %v555
        %v684 = vunpack.c.l.b16 %v556
        %v685 = vunpack.c.l.b16 %v557
        %v686 = vunpack.c.l.b16 %v558
        %v687 = vunpack.c.l.b16 %v559
        %v688 = vunpack.c.l.b16 %v560
        %v689 = vunpack.c.l.b16 %v561
        %v690 = vunpack.c.l.b16 %v562
        %v691 = vunpack.c.l.b16 %v563
        %v692 = vunpack.c.l.b16 %v564
        %v693 = vunpack.c.l.b16 %v565
        %v694 = vpack.c.b16 %v679, %v678
        %v695 = vpack.c.b16 %v681, %v680
        %v696 = vpack.c.b16 %v683, %v682
        %v697 = vpack.c.b16 %v685, %v684
        %v698 = vpack.c.b16 %v687, %v686
        %v699 = vpack.c.b16 %v689, %v688
        %v700 = vpack.c.b16 %v691, %v690
        %v701 = vpack.c.b16 %v693, %v692
        %v706 = vunpack.c.l.b16 %v546
        %v707 = vunpack.c.l.b16 %v547
        %v708 = vunpack.c.l.b16 %v548
        %v709 = vunpack.c.l.b16 %v549
        %v710 = vpack.c.b16 %v707, %v706
        %v711 = vpack.c.b16 %v709, %v708
        %vm714 = vcmask 261120
        %v716 = vsel %vm714, %v694, 0
        %v719 = vsel %vm714, %v695, 0
        %v722 = vsel %vm714, %v696, 0
        %v725 = vsel %vm714, %v697, 0
        %v728 = vsel %vm714, %v698, 0
        %v731 = vsel %vm714, %v699, 0
        %v734 = vsel %vm714, %v700, 0
        %v737 = vsel %vm714, %v701, 0
        %739 = vmatprep.subr.bf16.mxu0 0
        %740 = vmatpush1.bf16.msra.mxu0 %v710
        %741 = vmatprep.subr.bf16.mxu0 0
        %742 = vmatpush1.bf16.msra.mxu0 %v711
        %743 = vmatprep.subr.bf16.mxu0 0
        %744 = vmatpush1.bf16.msra.mxu0 0
        %745 = vmatprep.subr.bf16.mxu0 0
        %746 = vmatpush1.bf16.msra.mxu0 0
        %747 = vmatprep.subr.bf16.mxu0 0
        %748 = vmatpush1.bf16.msra.mxu0 0
        %749 = vmatprep.subr.bf16.mxu0 0
        %750 = vmatpush1.bf16.msra.mxu0 0
        %751 = vmatprep.subr.bf16.mxu0 0
        %752 = vmatpush1.bf16.msra.mxu0 0
        %753 = vmatprep.subr.bf16.mxu0 0
        %754 = vmatpush1.bf16.msra.mxu0 0
        %755 = vmatprep.subr.bf16.mxu0 0
        %756 = vmatpush1.bf16.msra.mxu0 0
        %757 = vmatprep.subr.bf16.mxu0 0
        %758 = vmatpush1.bf16.msra.mxu0 0
        %759 = vmatprep.subr.bf16.mxu0 0
        %760 = vmatpush1.bf16.msra.mxu0 0
        %761 = vmatprep.subr.bf16.mxu0 0
        %762 = vmatpush1.bf16.msra.mxu0 0
        %763 = vmatprep.subr.bf16.mxu0 0
        %764 = vmatpush1.bf16.msra.mxu0 0
        %765 = vmatprep.subr.bf16.mxu0 0
        %766 = vmatpush1.bf16.msra.mxu0 0
        %767 = vmatprep.subr.bf16.mxu0 0
        %768 = vmatpush1.bf16.msra.mxu0 0
        %769 = vmatprep.subr.bf16.mxu0 0
        %770 = vmatpush1.bf16.msra.mxu0 0
        %771 = vmatprep.mubr.bf16.mxu0 0
        %772 = vmatmul.mubr.bf16.gmra.mrb[0].mxu0 %v716
        %v773 = vpop.f32.mrb[0].mxu0
        %v774 = vadd.f32 %v585, %v773
        %v775 = vpop.f32.mrb[0].mxu0
        %v776 = vpop.f32.mrb[0].mxu0
        %v777 = vadd.f32 %v590, %v776
        %v778 = vpop.f32.mrb[0].mxu0
        %779 = vmatprep.mubr.bf16.mxu0 0
        %780 = vmatmul.mubr.bf16.gmra.mrb[0].mxu0 %v719
        %v781 = vpop.f32.mrb[0].mxu0
        %v782 = vadd.f32 %v595, %v781
        %v783 = vpop.f32.mrb[0].mxu0
        %v784 = vpop.f32.mrb[0].mxu0
        %v785 = vadd.f32 %v600, %v784
        %v786 = vpop.f32.mrb[0].mxu0
        %787 = vmatprep.mubr.bf16.mxu0 0
        %788 = vmatmul.mubr.bf16.gmra.mrb[0].mxu0 %v722
        %v789 = vpop.f32.mrb[0].mxu0
        %v790 = vadd.f32 %v605, %v789
        %v791 = vpop.f32.mrb[0].mxu0
        %v792 = vpop.f32.mrb[0].mxu0
        %v793 = vadd.f32 %v610, %v792
        %v794 = vpop.f32.mrb[0].mxu0
        %795 = vmatprep.mubr.bf16.mxu0 0
        %796 = vmatmul.mubr.bf16.gmra.mrb[0].mxu0 %v725
        %v797 = vpop.f32.mrb[0].mxu0
        %v798 = vadd.f32 %v615, %v797
        %v799 = vpop.f32.mrb[0].mxu0
        %v800 = vpop.f32.mrb[0].mxu0
        %v801 = vadd.f32 %v620, %v800
        %v802 = vpop.f32.mrb[0].mxu0
        %803 = vmatprep.mubr.bf16.mxu0 0
        %804 = vmatmul.mubr.bf16.gmra.mrb[0].mxu0 %v728
        %v805 = vpop.f32.mrb[0].mxu0
        %v806 = vadd.f32 %v625, %v805
        %v807 = vpop.f32.mrb[0].mxu0
        %v808 = vpop.f32.mrb[0].mxu0
        %v809 = vadd.f32 %v630, %v808
        %v810 = vpop.f32.mrb[0].mxu0
        %811 = vmatprep.mubr.bf16.mxu0 0
        %812 = vmatmul.mubr.bf16.gmra.mrb[0].mxu0 %v731
        %v813 = vpop.f32.mrb[0].mxu0
        %v814 = vadd.f32 %v635, %v813
        %v815 = vpop.f32.mrb[0].mxu0
        %v816 = vpop.f32.mrb[0].mxu0
        %v817 = vadd.f32 %v640, %v816
        %v818 = vpop.f32.mrb[0].mxu0
        %819 = vmatprep.mubr.bf16.mxu0 0
        %820 = vmatmul.mubr.bf16.gmra.mrb[0].mxu0 %v734
        %v821 = vpop.f32.mrb[0].mxu0
        %v822 = vadd.f32 %v645, %v821
        %v823 = vpop.f32.mrb[0].mxu0
        %v824 = vpop.f32.mrb[0].mxu0
        %v825 = vadd.f32 %v650, %v824
        %v826 = vpop.f32.mrb[0].mxu0
        %827 = vmatprep.mubr.bf16.mxu0 0
        %828 = vmatmul.mubr.bf16.gmra.mrb[0].mxu0 %v737
        %v829 = vpop.f32.mrb[0].mxu0
        %v830 = vadd.f32 %v655, %v829
        %v831 = vpop.f32.mrb[0].mxu0
        %v832 = vpop.f32.mrb[0].mxu0
        %v833 = vadd.f32 %v660, %v832
        %v834 = vpop.f32.mrb[0].mxu0
        %835 = vdwg.mxu0
        %v836 = vpack.c.bf16 %v777, %v774
        %v837 = vpack.c.bf16 %v785, %v782
        %v838 = vpack.c.bf16 %v793, %v790
        %v839 = vpack.c.bf16 %v801, %v798
        %v840 = vpack.c.bf16 %v809, %v806
        %v841 = vpack.c.bf16 %v817, %v814
        %v842 = vpack.c.bf16 %v825, %v822
        %v843 = vpack.c.bf16 %v833, %v830
        %v844 = vmul.bf16 %v836, 1045249613
        %v845 = vmul.bf16 %v837, 1045249613
        %v846 = vmul.bf16 %v838, 1045249613
        %v847 = vmul.bf16 %v839, 1045249613
        %v848 = vmul.bf16 %v840, 1045249613
        %v849 = vmul.bf16 %v841, 1045249613
        %v850 = vmul.bf16 %v842, 1045249613
        %v851 = vmul.bf16 %v843, 1045249613
        %v852 = vmax.bf16 %v836, %v844
        %v853 = vmax.bf16 %v837, %v845
        %v854 = vmax.bf16 %v838, %v846
        %v855 = vmax.bf16 %v839, %v847
        %v856 = vmax.bf16 %v840, %v848
        %v857 = vmax.bf16 %v841, %v849
        %v858 = vmax.bf16 %v842, %v850
        %v859 = vmax.bf16 %v843, %v851
        %v860 = vld [vmem:[#allocation8] sm:$0xf]
        %v861 = vld [vmem:[#allocation8 + $0x4] sm:$0xf]
        %v862 = vld [vmem:[#allocation8 + $0x8] sm:$0xf]
        %v863 = vld [vmem:[#allocation8 + $0xc] sm:$0xf]
        %v864 = vld [vmem:[#allocation8 + $0x10] sm:$0xf]
        %v865 = vld [vmem:[#allocation8 + $0x14] sm:$0xf]
        %v866 = vld [vmem:[#allocation8 + $0x18] sm:$0xf]
        %v867 = vld [vmem:[#allocation8 + $0x1c] sm:$0xf]
        %v868 = vld [vmem:[#allocation8 + $0x20] sm:$0xf]
        %v869 = vld [vmem:[#allocation8 + $0x24] sm:$0xf]
        %v870 = vld [vmem:[#allocation8 + $0x28] sm:$0xf]
        %v871 = vld [vmem:[#allocation8 + $0x2c] sm:$0xf]
        %v872 = vld [vmem:[#allocation8 + $0x30] sm:$0xf]
        %v873 = vld [vmem:[#allocation8 + $0x34] sm:$0xf]
        %v874 = vld [vmem:[#allocation8 + $0x38] sm:$0xf]
        %v875 = vld [vmem:[#allocation8 + $0x3c] sm:$0xf]
        %v876 = vld [vmem:[#allocation8 + $0x40] sm:$0xf]
        %v877 = vld [vmem:[#allocation8 + $0x44] sm:$0xf]
        %v878 = vld [vmem:[#allocation8 + $0x48] sm:$0xf]
        %v879 = vld [vmem:[#allocation8 + $0x4c] sm:$0xf]
        %v880 = vld [vmem:[#allocation8 + $0x50] sm:$0xf]
        %v881 = vld [vmem:[#allocation8 + $0x54] sm:$0xf]
        %v882 = vld [vmem:[#allocation8 + $0x58] sm:$0xf]
        %v883 = vld [vmem:[#allocation8 + $0x5c] sm:$0xf]
        %v884 = vld [vmem:[#allocation8 + $0x60] sm:$0xf]
        %v885 = vld [vmem:[#allocation8 + $0x64] sm:$0xf]
        %v886 = vld [vmem:[#allocation8 + $0x68] sm:$0xf]
        %v887 = vld [vmem:[#allocation8 + $0x6c] sm:$0xf]
        %v888 = vld [vmem:[#allocation8 + $0x70] sm:$0xf]
        %v889 = vld [vmem:[#allocation8 + $0x74] sm:$0xf]
        %v890 = vld [vmem:[#allocation8 + $0x78] sm:$0xf]
        %v891 = vld [vmem:[#allocation8 + $0x7c] sm:$0xf]
        %v892 = vld [vmem:[#allocation10] sm:$0xff]
        %v893 = vld [vmem:[#allocation10 + $0x8] sm:$0xff]
        %v894 = vld [vmem:[#allocation10 + $0x10] sm:$0xff]
        %v895 = vld [vmem:[#allocation10 + $0x18] sm:$0xff]
        %v896 = vld [vmem:[#allocation10 + $0x20] sm:$0xff]
        %v897 = vld [vmem:[#allocation10 + $0x28] sm:$0xff]
        %v898 = vld [vmem:[#allocation10 + $0x30] sm:$0xff]
        %v899 = vld [vmem:[#allocation10 + $0x38] sm:$0xff]
        %v900 = vld [vmem:[#allocation10 + $0x40] sm:$0xff]
        %v901 = vld [vmem:[#allocation10 + $0x48] sm:$0xff]
        %v902 = vld [vmem:[#allocation10 + $0x50] sm:$0xff]
        %v903 = vld [vmem:[#allocation10 + $0x58] sm:$0xff]
        %v904 = vld [vmem:[#allocation10 + $0x60] sm:$0xff]
        %v905 = vld [vmem:[#allocation10 + $0x68] sm:$0xff]
        %v906 = vld [vmem:[#allocation10 + $0x70] sm:$0xff]
        %v907 = vld [vmem:[#allocation10 + $0x78] sm:$0xff]
        %v908 = vld [vmem:[#allocation10 + $0x80] sm:$0xff]
        %v909 = vld [vmem:[#allocation10 + $0x88] sm:$0xff]
        %v910 = vld [vmem:[#allocation10 + $0x90] sm:$0xff]
        %v911 = vld [vmem:[#allocation10 + $0x98] sm:$0xff]
        %v912 = vld [vmem:[#allocation10 + $0xa0] sm:$0xff]
        %v913 = vld [vmem:[#allocation10 + $0xa8] sm:$0xff]
        %v914 = vld [vmem:[#allocation10 + $0xb0] sm:$0xff]
        %v915 = vld [vmem:[#allocation10 + $0xb8] sm:$0xff]
        %v916 = vld [vmem:[#allocation10 + $0xc0] sm:$0xff]
        %v917 = vld [vmem:[#allocation10 + $0xc8] sm:$0xff]
        %v918 = vld [vmem:[#allocation10 + $0xd0] sm:$0xff]
        %v919 = vld [vmem:[#allocation10 + $0xd8] sm:$0xff]
        %v920 = vld [vmem:[#allocation10 + $0xe0] sm:$0xff]
        %v921 = vld [vmem:[#allocation10 + $0xe8] sm:$0xff]
        %v922 = vld [vmem:[#allocation10 + $0xf0] sm:$0xff]
        %v923 = vld [vmem:[#allocation10 + $0xf8] sm:$0xff]
        %925 = vset.pattern.permute.xlu0 0
        %926 = vperm.xlu0 %925, %v892
        %v927 = vpop.permute.xlu0 %926
        %930 = vset.pattern.permute.xlu0 0
        %931 = vperm.xlu0 %930, %v893
        %v932 = vpop.permute.xlu0 %931
        %935 = vset.pattern.permute.xlu0 0
        %936 = vperm.xlu0 %935, %v894
        %v937 = vpop.permute.xlu0 %936
        %940 = vset.pattern.permute.xlu0 0
        %941 = vperm.xlu0 %940, %v895
        %v942 = vpop.permute.xlu0 %941
        %945 = vset.pattern.permute.xlu0 0
        %946 = vperm.xlu0 %945, %v896
        %v947 = vpop.permute.xlu0 %946
        %950 = vset.pattern.permute.xlu0 0
        %951 = vperm.xlu0 %950, %v897
        %v952 = vpop.permute.xlu0 %951
        %955 = vset.pattern.permute.xlu0 0
        %956 = vperm.xlu0 %955, %v898
        %v957 = vpop.permute.xlu0 %956
        %960 = vset.pattern.permute.xlu0 0
        %961 = vperm.xlu0 %960, %v899
        %v962 = vpop.permute.xlu0 %961
        %965 = vset.pattern.permute.xlu0 0
        %966 = vperm.xlu0 %965, %v900
        %v967 = vpop.permute.xlu0 %966
        %970 = vset.pattern.permute.xlu0 0
        %971 = vperm.xlu0 %970, %v901
        %v972 = vpop.permute.xlu0 %971
        %975 = vset.pattern.permute.xlu0 0
        %976 = vperm.xlu0 %975, %v902
        %v977 = vpop.permute.xlu0 %976
        %980 = vset.pattern.permute.xlu0 0
        %981 = vperm.xlu0 %980, %v903
        %v982 = vpop.permute.xlu0 %981
        %985 = vset.pattern.permute.xlu0 0
        %986 = vperm.xlu0 %985, %v904
        %v987 = vpop.permute.xlu0 %986
        %990 = vset.pattern.permute.xlu0 0
        %991 = vperm.xlu0 %990, %v905
        %v992 = vpop.permute.xlu0 %991
        %995 = vset.pattern.permute.xlu0 0
        %996 = vperm.xlu0 %995, %v906
        %v997 = vpop.permute.xlu0 %996
        %1000 = vset.pattern.permute.xlu0 0
        %1001 = vperm.xlu0 %1000, %v907
        %v1002 = vpop.permute.xlu0 %1001
        %1005 = vset.pattern.permute.xlu0 0
        %1006 = vperm.xlu0 %1005, %v908
        %v1007 = vpop.permute.xlu0 %1006
        %1010 = vset.pattern.permute.xlu0 0
        %1011 = vperm.xlu0 %1010, %v909
        %v1012 = vpop.permute.xlu0 %1011
        %1015 = vset.pattern.permute.xlu0 0
        %1016 = vperm.xlu0 %1015, %v910
        %v1017 = vpop.permute.xlu0 %1016
        %1020 = vset.pattern.permute.xlu0 0
        %1021 = vperm.xlu0 %1020, %v911
        %v1022 = vpop.permute.xlu0 %1021
        %1025 = vset.pattern.permute.xlu0 0
        %1026 = vperm.xlu0 %1025, %v912
        %v1027 = vpop.permute.xlu0 %1026
        %1030 = vset.pattern.permute.xlu0 0
        %1031 = vperm.xlu0 %1030, %v913
        %v1032 = vpop.permute.xlu0 %1031
        %1035 = vset.pattern.permute.xlu0 0
        %1036 = vperm.xlu0 %1035, %v914
        %v1037 = vpop.permute.xlu0 %1036
        %1040 = vset.pattern.permute.xlu0 0
        %1041 = vperm.xlu0 %1040, %v915
        %v1042 = vpop.permute.xlu0 %1041
        %1045 = vset.pattern.permute.xlu0 0
        %1046 = vperm.xlu0 %1045, %v916
        %v1047 = vpop.permute.xlu0 %1046
        %1050 = vset.pattern.permute.xlu0 0
        %1051 = vperm.xlu0 %1050, %v917
        %v1052 = vpop.permute.xlu0 %1051
        %1055 = vset.pattern.permute.xlu0 0
        %1056 = vperm.xlu0 %1055, %v918
        %v1057 = vpop.permute.xlu0 %1056
        %1060 = vset.pattern.permute.xlu0 0
        %1061 = vperm.xlu0 %1060, %v919
        %v1062 = vpop.permute.xlu0 %1061
        %1065 = vset.pattern.permute.xlu0 0
        %1066 = vperm.xlu0 %1065, %v920
        %v1067 = vpop.permute.xlu0 %1066
        %1070 = vset.pattern.permute.xlu0 0
        %1071 = vperm.xlu0 %1070, %v921
        %v1072 = vpop.permute.xlu0 %1071
        %1075 = vset.pattern.permute.xlu0 0
        %1076 = vperm.xlu0 %1075, %v922
        %v1077 = vpop.permute.xlu0 %1076
        %1080 = vset.pattern.permute.xlu0 0
        %1081 = vperm.xlu0 %1080, %v923
        %v1082 = vpop.permute.xlu0 %1081
        %v1116 = vunpack.c.l.b16 %v860
        %v1117 = vunpack.c.l.b16 %v861
        %v1118 = vunpack.c.l.b16 %v862
        %v1119 = vunpack.c.l.b16 %v863
        %v1120 = vunpack.c.l.b16 %v864
        %v1121 = vunpack.c.l.b16 %v865
        %v1122 = vunpack.c.l.b16 %v866
        %v1123 = vunpack.c.l.b16 %v867
        %v1124 = vunpack.c.l.b16 %v868
        %v1125 = vunpack.c.l.b16 %v869
        %v1126 = vunpack.c.l.b16 %v870
        %v1127 = vunpack.c.l.b16 %v871
        %v1128 = vunpack.c.l.b16 %v872
        %v1129 = vunpack.c.l.b16 %v873
        %v1130 = vunpack.c.l.b16 %v874
        %v1131 = vunpack.c.l.b16 %v875
        %v1132 = vunpack.c.l.b16 %v876
        %v1133 = vunpack.c.l.b16 %v877
        %v1134 = vunpack.c.l.b16 %v878
        %v1135 = vunpack.c.l.b16 %v879
        %v1136 = vunpack.c.l.b16 %v880
        %v1137 = vunpack.c.l.b16 %v881
        %v1138 = vunpack.c.l.b16 %v882
        %v1139 = vunpack.c.l.b16 %v883
        %v1140 = vunpack.c.l.b16 %v884
        %v1141 = vunpack.c.l.b16 %v885
        %v1142 = vunpack.c.l.b16 %v886
        %v1143 = vunpack.c.l.b16 %v887
        %v1144 = vunpack.c.l.b16 %v888
        %v1145 = vunpack.c.l.b16 %v889
        %v1146 = vunpack.c.l.b16 %v890
        %v1147 = vunpack.c.l.b16 %v891
        %v1148 = vpack.c.b16 %v1117, %v1116
        %v1149 = vpack.c.b16 %v1119, %v1118
        %v1150 = vpack.c.b16 %v1121, %v1120
        %v1151 = vpack.c.b16 %v1123, %v1122
        %v1152 = vpack.c.b16 %v1125, %v1124
        %v1153 = vpack.c.b16 %v1127, %v1126
        %v1154 = vpack.c.b16 %v1129, %v1128
        %v1155 = vpack.c.b16 %v1131, %v1130
        %v1156 = vpack.c.b16 %v1133, %v1132
        %v1157 = vpack.c.b16 %v1135, %v1134
        %v1158 = vpack.c.b16 %v1137, %v1136
        %v1159 = vpack.c.b16 %v1139, %v1138
        %v1160 = vpack.c.b16 %v1141, %v1140
        %v1161 = vpack.c.b16 %v1143, %v1142
        %v1162 = vpack.c.b16 %v1145, %v1144
        %v1163 = vpack.c.b16 %v1147, %v1146
        %1180 = vmatprep.subr.bf16.mxu0 0
        %1181 = vmatpush1.bf16.msra.mxu0 %v852
        %1182 = vmatprep.subr.bf16.mxu0 0
        %1183 = vmatpush1.bf16.msra.mxu0 %v853
        %1184 = vmatprep.subr.bf16.mxu0 0
        %1185 = vmatpush1.bf16.msra.mxu0 %v854
        %1186 = vmatprep.subr.bf16.mxu0 0
        %1187 = vmatpush1.bf16.msra.mxu0 %v855
        %1188 = vmatprep.subr.bf16.mxu0 0
        %1189 = vmatpush1.bf16.msra.mxu0 %v856
        %1190 = vmatprep.subr.bf16.mxu0 0
        %1191 = vmatpush1.bf16.msra.mxu0 %v857
        %1192 = vmatprep.subr.bf16.mxu0 0
        %1193 = vmatpush1.bf16.msra.mxu0 %v858
        %1194 = vmatprep.subr.bf16.mxu0 0
        %1195 = vmatpush1.bf16.msra.mxu0 %v859
        %1196 = vmatprep.subr.bf16.mxu0 0
        %1197 = vmatpush1.bf16.msra.mxu0 0
        %1198 = vmatprep.subr.bf16.mxu0 0
        %1199 = vmatpush1.bf16.msra.mxu0 0
        %1200 = vmatprep.subr.bf16.mxu0 0
        %1201 = vmatpush1.bf16.msra.mxu0 0
        %1202 = vmatprep.subr.bf16.mxu0 0
        %1203 = vmatpush1.bf16.msra.mxu0 0
        %1204 = vmatprep.subr.bf16.mxu0 0
        %1205 = vmatpush1.bf16.msra.mxu0 0
        %1206 = vmatprep.subr.bf16.mxu0 0
        %1207 = vmatpush1.bf16.msra.mxu0 0
        %1208 = vmatprep.subr.bf16.mxu0 0
        %1209 = vmatpush1.bf16.msra.mxu0 0
        %1210 = vmatprep.subr.bf16.mxu0 0
        %1211 = vmatpush1.bf16.msra.mxu0 0
        %1212 = vmatprep.mubr.bf16.mxu0 0
        %1213 = vmatmul.mubr.bf16.gmra.mrb[0].mxu0 %v1148
        %v1214 = vpop.f32.mrb[0].mxu0
        %v1215 = vadd.f32 %v927, %v1214
        %v1216 = vpop.f32.mrb[0].mxu0
        %v1217 = vpop.f32.mrb[0].mxu0
        %v1218 = vadd.f32 %v932, %v1217
        %v1219 = vpop.f32.mrb[0].mxu0
        %1220 = vmatprep.mubr.bf16.mxu0 0
        %1221 = vmatmul.mubr.bf16.gmra.mrb[0].mxu0 %v1149
        %v1222 = vpop.f32.mrb[0].mxu0
        %v1223 = vadd.f32 %v937, %v1222
        %v1224 = vpop.f32.mrb[0].mxu0
        %v1225 = vpop.f32.mrb[0].mxu0
        %v1226 = vadd.f32 %v942, %v1225
        %v1227 = vpop.f32.mrb[0].mxu0
        %1228 = vmatprep.mubr.bf16.mxu0 0
        %1229 = vmatmul.mubr.bf16.gmra.mrb[0].mxu0 %v1150
        %v1230 = vpop.f32.mrb[0].mxu0
        %v1231 = vadd.f32 %v947, %v1230
        %v1232 = vpop.f32.mrb[0].mxu0
        %v1233 = vpop.f32.mrb[0].mxu0
        %v1234 = vadd.f32 %v952, %v1233
        %v1235 = vpop.f32.mrb[0].mxu0
        %1236 = vmatprep.mubr.bf16.mxu0 0
        %1237 = vmatmul.mubr.bf16.gmra.mrb[0].mxu0 %v1151
        %v1238 = vpop.f32.mrb[0].mxu0
        %v1239 = vadd.f32 %v957, %v1238
        %v1240 = vpop.f32.mrb[0].mxu0
        %v1241 = vpop.f32.mrb[0].mxu0
        %v1242 = vadd.f32 %v962, %v1241
        %v1243 = vpop.f32.mrb[0].mxu0
        %1244 = vmatprep.mubr.bf16.mxu0 0
        %1245 = vmatmul.mubr.bf16.gmra.mrb[0].mxu0 %v1152
        %v1246 = vpop.f32.mrb[0].mxu0
        %v1247 = vadd.f32 %v967, %v1246
        %v1248 = vpop.f32.mrb[0].mxu0
        %v1249 = vpop.f32.mrb[0].mxu0
        %v1250 = vadd.f32 %v972, %v1249
        %v1251 = vpop.f32.mrb[0].mxu0
        %1252 = vmatprep.mubr.bf16.mxu0 0
        %1253 = vmatmul.mubr.bf16.gmra.mrb[0].mxu0 %v1153
        %v1254 = vpop.f32.mrb[0].mxu0
        %v1255 = vadd.f32 %v977, %v1254
        %v1256 = vpop.f32.mrb[0].mxu0
        %v1257 = vpop.f32.mrb[0].mxu0
        %v1258 = vadd.f32 %v982, %v1257
        %v1259 = vpop.f32.mrb[0].mxu0
        %1260 = vmatprep.mubr.bf16.mxu0 0
        %1261 = vmatmul.mubr.bf16.gmra.mrb[0].mxu0 %v1154
        %v1262 = vpop.f32.mrb[0].mxu0
        %v1263 = vadd.f32 %v987, %v1262
        %v1264 = vpop.f32.mrb[0].mxu0
        %v1265 = vpop.f32.mrb[0].mxu0
        %v1266 = vadd.f32 %v992, %v1265
        %v1267 = vpop.f32.mrb[0].mxu0
        %1268 = vmatprep.mubr.bf16.mxu0 0
        %1269 = vmatmul.mubr.bf16.gmra.mrb[0].mxu0 %v1155
        %v1270 = vpop.f32.mrb[0].mxu0
        %v1271 = vadd.f32 %v997, %v1270
        %v1272 = vpop.f32.mrb[0].mxu0
        %v1273 = vpop.f32.mrb[0].mxu0
        %v1274 = vadd.f32 %v1002, %v1273
        %v1275 = vpop.f32.mrb[0].mxu0
        %1276 = vmatprep.mubr.bf16.mxu0 0
        %1277 = vmatmul.mubr.bf16.gmra.mrb[0].mxu0 %v1156
        %v1278 = vpop.f32.mrb[0].mxu0
        %v1279 = vadd.f32 %v1007, %v1278
        %v1280 = vpop.f32.mrb[0].mxu0
        %v1281 = vpop.f32.mrb[0].mxu0
        %v1282 = vadd.f32 %v1012, %v1281
        %v1283 = vpop.f32.mrb[0].mxu0
        %1284 = vmatprep.mubr.bf16.mxu0 0
        %1285 = vmatmul.mubr.bf16.gmra.mrb[0].mxu0 %v1157
        %v1286 = vpop.f32.mrb[0].mxu0
        %v1287 = vadd.f32 %v1017, %v1286
        %v1288 = vpop.f32.mrb[0].mxu0
        %v1289 = vpop.f32.mrb[0].mxu0
        %v1290 = vadd.f32 %v1022, %v1289
        %v1291 = vpop.f32.mrb[0].mxu0
        %1292 = vmatprep.mubr.bf16.mxu0 0
        %1293 = vmatmul.mubr.bf16.gmra.mrb[0].mxu0 %v1158
        %v1294 = vpop.f32.mrb[0].mxu0
        %v1295 = vadd.f32 %v1027, %v1294
        %v1296 = vpop.f32.mrb[0].mxu0
        %v1297 = vpop.f32.mrb[0].mxu0
        %v1298 = vadd.f32 %v1032, %v1297
        %v1299 = vpop.f32.mrb[0].mxu0
        %1300 = vmatprep.mubr.bf16.mxu0 0
        %1301 = vmatmul.mubr.bf16.gmra.mrb[0].mxu0 %v1159
        %v1302 = vpop.f32.mrb[0].mxu0
        %v1303 = vadd.f32 %v1037, %v1302
        %v1304 = vpop.f32.mrb[0].mxu0
        %v1305 = vpop.f32.mrb[0].mxu0
        %v1306 = vadd.f32 %v1042, %v1305
        %v1307 = vpop.f32.mrb[0].mxu0
        %1308 = vmatprep.mubr.bf16.mxu0 0
        %1309 = vmatmul.mubr.bf16.gmra.mrb[0].mxu0 %v1160
        %v1310 = vpop.f32.mrb[0].mxu0
        %v1311 = vadd.f32 %v1047, %v1310
        %v1312 = vpop.f32.mrb[0].mxu0
        %v1313 = vpop.f32.mrb[0].mxu0
        %v1314 = vadd.f32 %v1052, %v1313
        %v1315 = vpop.f32.mrb[0].mxu0
        %1316 = vmatprep.mubr.bf16.mxu0 0
        %1317 = vmatmul.mubr.bf16.gmra.mrb[0].mxu0 %v1161
        %v1318 = vpop.f32.mrb[0].mxu0
        %v1319 = vadd.f32 %v1057, %v1318
        %v1320 = vpop.f32.mrb[0].mxu0
        %v1321 = vpop.f32.mrb[0].mxu0
        %v1322 = vadd.f32 %v1062, %v1321
        %v1323 = vpop.f32.mrb[0].mxu0
        %1324 = vmatprep.mubr.bf16.mxu0 0
        %1325 = vmatmul.mubr.bf16.gmra.mrb[0].mxu0 %v1162
        %v1326 = vpop.f32.mrb[0].mxu0
        %v1327 = vadd.f32 %v1067, %v1326
        %v1328 = vpop.f32.mrb[0].mxu0
        %v1329 = vpop.f32.mrb[0].mxu0
        %v1330 = vadd.f32 %v1072, %v1329
        %v1331 = vpop.f32.mrb[0].mxu0
        %1332 = vmatprep.mubr.bf16.mxu0 0
        %1333 = vmatmul.mubr.bf16.gmra.mrb[0].mxu0 %v1163
        %v1334 = vpop.f32.mrb[0].mxu0
        %v1335 = vadd.f32 %v1077, %v1334
        %v1336 = vpop.f32.mrb[0].mxu0
        %v1337 = vpop.f32.mrb[0].mxu0
        %v1338 = vadd.f32 %v1082, %v1337
        %v1339 = vpop.f32.mrb[0].mxu0
        %1340 = vdwg.mxu0
        %v1341 = vpack.c.bf16 %v1218, %v1215
        %v1342 = vpack.c.bf16 %v1226, %v1223
        %v1343 = vpack.c.bf16 %v1234, %v1231
        %v1344 = vpack.c.bf16 %v1242, %v1239
        %v1345 = vpack.c.bf16 %v1250, %v1247
        %v1346 = vpack.c.bf16 %v1258, %v1255
        %v1347 = vpack.c.bf16 %v1266, %v1263
        %v1348 = vpack.c.bf16 %v1274, %v1271
        %v1349 = vpack.c.bf16 %v1282, %v1279
        %v1350 = vpack.c.bf16 %v1290, %v1287
        %v1351 = vpack.c.bf16 %v1298, %v1295
        %v1352 = vpack.c.bf16 %v1306, %v1303
        %v1353 = vpack.c.bf16 %v1314, %v1311
        %v1354 = vpack.c.bf16 %v1322, %v1319
        %v1355 = vpack.c.bf16 %v1330, %v1327
        %v1356 = vpack.c.bf16 %v1338, %v1335
        %v1357 = vmul.bf16 %v1341, 1045249613
        %v1358 = vmul.bf16 %v1342, 1045249613
        %v1359 = vmul.bf16 %v1343, 1045249613
        %v1360 = vmul.bf16 %v1344, 1045249613
        %v1361 = vmul.bf16 %v1345, 1045249613
        %v1362 = vmul.bf16 %v1346, 1045249613
        %v1363 = vmul.bf16 %v1347, 1045249613
        %v1364 = vmul.bf16 %v1348, 1045249613
        %v1365 = vmul.bf16 %v1349, 1045249613
        %v1366 = vmul.bf16 %v1350, 1045249613
        %v1367 = vmul.bf16 %v1351, 1045249613
        %v1368 = vmul.bf16 %v1352, 1045249613
        %v1369 = vmul.bf16 %v1353, 1045249613
        %v1370 = vmul.bf16 %v1354, 1045249613
        %v1371 = vmul.bf16 %v1355, 1045249613
        %v1372 = vmul.bf16 %v1356, 1045249613
        %v1373 = vmax.bf16 %v1341, %v1357
        %v1374 = vmax.bf16 %v1342, %v1358
        %v1375 = vmax.bf16 %v1343, %v1359
        %v1376 = vmax.bf16 %v1344, %v1360
        %v1377 = vmax.bf16 %v1345, %v1361
        %v1378 = vmax.bf16 %v1346, %v1362
        %v1379 = vmax.bf16 %v1347, %v1363
        %v1380 = vmax.bf16 %v1348, %v1364
        %v1381 = vmax.bf16 %v1349, %v1365
        %v1382 = vmax.bf16 %v1350, %v1366
        %v1383 = vmax.bf16 %v1351, %v1367
        %v1384 = vmax.bf16 %v1352, %v1368
        %v1385 = vmax.bf16 %v1353, %v1369
        %v1386 = vmax.bf16 %v1354, %v1370
        %v1387 = vmax.bf16 %v1355, %v1371
        %v1388 = vmax.bf16 %v1356, %v1372
        %v1389 = vld [vmem:[#allocation11] sm:$0xff]
        %v1390 = vld [vmem:[#allocation11 + $0x8] sm:$0xff]
        %v1391 = vld [vmem:[#allocation11 + $0x10] sm:$0xff]
        %v1392 = vld [vmem:[#allocation11 + $0x18] sm:$0xff]
        %v1393 = vld [vmem:[#allocation11 + $0x20] sm:$0xff]
        %v1394 = vld [vmem:[#allocation11 + $0x28] sm:$0xff]
        %v1395 = vld [vmem:[#allocation11 + $0x30] sm:$0xff]
        %v1396 = vld [vmem:[#allocation11 + $0x38] sm:$0xff]
        %v1397 = vld [vmem:[#allocation11 + $0x40] sm:$0xff]
        %v1398 = vld [vmem:[#allocation11 + $0x48] sm:$0xff]
        %v1399 = vld [vmem:[#allocation11 + $0x50] sm:$0xff]
        %v1400 = vld [vmem:[#allocation11 + $0x58] sm:$0xff]
        %v1401 = vld [vmem:[#allocation11 + $0x60] sm:$0xff]
        %v1402 = vld [vmem:[#allocation11 + $0x68] sm:$0xff]
        %v1403 = vld [vmem:[#allocation11 + $0x70] sm:$0xff]
        %v1404 = vld [vmem:[#allocation11 + $0x78] sm:$0xff]
        %v1405 = vld [vmem:[#allocation11 + $0x80] sm:$0xff]
        %v1406 = vld [vmem:[#allocation11 + $0x88] sm:$0xff]
        %v1407 = vld [vmem:[#allocation11 + $0x90] sm:$0xff]
        %v1408 = vld [vmem:[#allocation11 + $0x98] sm:$0xff]
        %v1409 = vld [vmem:[#allocation11 + $0xa0] sm:$0xff]
        %v1410 = vld [vmem:[#allocation11 + $0xa8] sm:$0xff]
        %v1411 = vld [vmem:[#allocation11 + $0xb0] sm:$0xff]
        %v1412 = vld [vmem:[#allocation11 + $0xb8] sm:$0xff]
        %v1413 = vld [vmem:[#allocation11 + $0xc0] sm:$0xff]
        %v1414 = vld [vmem:[#allocation11 + $0xc8] sm:$0xff]
        %v1415 = vld [vmem:[#allocation11 + $0xd0] sm:$0xff]
        %v1416 = vld [vmem:[#allocation11 + $0xd8] sm:$0xff]
        %v1417 = vld [vmem:[#allocation11 + $0xe0] sm:$0xff]
        %v1418 = vld [vmem:[#allocation11 + $0xe8] sm:$0xff]
        %v1419 = vld [vmem:[#allocation11 + $0xf0] sm:$0xff]
        %v1420 = vld [vmem:[#allocation11 + $0xf8] sm:$0xff]
        %v1421 = vld [vmem:[#allocation11 + $0x100] sm:$0xff]
        %v1422 = vld [vmem:[#allocation11 + $0x108] sm:$0xff]
        %v1423 = vld [vmem:[#allocation11 + $0x110] sm:$0xff]
        %v1424 = vld [vmem:[#allocation11 + $0x118] sm:$0xff]
        %v1425 = vld [vmem:[#allocation11 + $0x120] sm:$0xff]
        %v1426 = vld [vmem:[#allocation11 + $0x128] sm:$0xff]
        %v1427 = vld [vmem:[#allocation11 + $0x130] sm:$0xff]
        %v1428 = vld [vmem:[#allocation11 + $0x138] sm:$0xff]
        %v1429 = vld [vmem:[#allocation11 + $0x140] sm:$0xff]
        %v1430 = vld [vmem:[#allocation11 + $0x148] sm:$0xff]
        %v1431 = vld [vmem:[#allocation11 + $0x150] sm:$0xff]
        %v1432 = vld [vmem:[#allocation11 + $0x158] sm:$0xff]
        %v1433 = vld [vmem:[#allocation11 + $0x160] sm:$0xff]
        %v1434 = vld [vmem:[#allocation11 + $0x168] sm:$0xff]
        %v1435 = vld [vmem:[#allocation11 + $0x170] sm:$0xff]
        %v1436 = vld [vmem:[#allocation11 + $0x178] sm:$0xff]
        %v1437 = vld [vmem:[#allocation11 + $0x180] sm:$0xff]
        %v1438 = vld [vmem:[#allocation11 + $0x188] sm:$0xff]
        %v1439 = vld [vmem:[#allocation11 + $0x190] sm:$0xff]
        %v1440 = vld [vmem:[#allocation11 + $0x198] sm:$0xff]
        %v1441 = vld [vmem:[#allocation11 + $0x1a0] sm:$0xff]
        %v1442 = vld [vmem:[#allocation11 + $0x1a8] sm:$0xff]
        %v1443 = vld [vmem:[#allocation11 + $0x1b0] sm:$0xff]
        %v1444 = vld [vmem:[#allocation11 + $0x1b8] sm:$0xff]
        %v1445 = vld [vmem:[#allocation11 + $0x1c0] sm:$0xff]
        %v1446 = vld [vmem:[#allocation11 + $0x1c8] sm:$0xff]
        %v1447 = vld [vmem:[#allocation11 + $0x1d0] sm:$0xff]
        %v1448 = vld [vmem:[#allocation11 + $0x1d8] sm:$0xff]
        %v1449 = vld [vmem:[#allocation11 + $0x1e0] sm:$0xff]
        %v1450 = vld [vmem:[#allocation11 + $0x1e8] sm:$0xff]
        %v1451 = vld [vmem:[#allocation11 + $0x1f0] sm:$0xff]
        %v1452 = vld [vmem:[#allocation11 + $0x1f8] sm:$0xff]
        %v1453 = vld [vmem:[#allocation13] sm:$0xff]
        %v1454 = vld [vmem:[#allocation13 + $0x8] sm:$0xff]
        %v1455 = vld [vmem:[#allocation13 + $0x10] sm:$0xff]
        %v1456 = vld [vmem:[#allocation13 + $0x18] sm:$0xff]
        %v1457 = vld [vmem:[#allocation13 + $0x20] sm:$0xff]
        %v1458 = vld [vmem:[#allocation13 + $0x28] sm:$0xff]
        %v1459 = vld [vmem:[#allocation13 + $0x30] sm:$0xff]
        %v1460 = vld [vmem:[#allocation13 + $0x38] sm:$0xff]
        %v1461 = vld [vmem:[#allocation13 + $0x40] sm:$0xff]
        %v1462 = vld [vmem:[#allocation13 + $0x48] sm:$0xff]
        %v1463 = vld [vmem:[#allocation13 + $0x50] sm:$0xff]
        %v1464 = vld [vmem:[#allocation13 + $0x58] sm:$0xff]
        %v1465 = vld [vmem:[#allocation13 + $0x60] sm:$0xff]
        %v1466 = vld [vmem:[#allocation13 + $0x68] sm:$0xff]
        %v1467 = vld [vmem:[#allocation13 + $0x70] sm:$0xff]
        %v1468 = vld [vmem:[#allocation13 + $0x78] sm:$0xff]
        %v1469 = vld [vmem:[#allocation13 + $0x80] sm:$0xff]
        %v1470 = vld [vmem:[#allocation13 + $0x88] sm:$0xff]
        %v1471 = vld [vmem:[#allocation13 + $0x90] sm:$0xff]
        %v1472 = vld [vmem:[#allocation13 + $0x98] sm:$0xff]
        %v1473 = vld [vmem:[#allocation13 + $0xa0] sm:$0xff]
        %v1474 = vld [vmem:[#allocation13 + $0xa8] sm:$0xff]
        %v1475 = vld [vmem:[#allocation13 + $0xb0] sm:$0xff]
        %v1476 = vld [vmem:[#allocation13 + $0xb8] sm:$0xff]
        %v1477 = vld [vmem:[#allocation13 + $0xc0] sm:$0xff]
        %v1478 = vld [vmem:[#allocation13 + $0xc8] sm:$0xff]
        %v1479 = vld [vmem:[#allocation13 + $0xd0] sm:$0xff]
        %v1480 = vld [vmem:[#allocation13 + $0xd8] sm:$0xff]
        %v1481 = vld [vmem:[#allocation13 + $0xe0] sm:$0xff]
        %v1482 = vld [vmem:[#allocation13 + $0xe8] sm:$0xff]
        %v1483 = vld [vmem:[#allocation13 + $0xf0] sm:$0xff]
        %v1484 = vld [vmem:[#allocation13 + $0xf8] sm:$0xff]
        %v1485 = vld [vmem:[#allocation13 + $0x100] sm:$0xff]
        %v1486 = vld [vmem:[#allocation13 + $0x108] sm:$0xff]
        %v1487 = vld [vmem:[#allocation13 + $0x110] sm:$0xff]
        %v1488 = vld [vmem:[#allocation13 + $0x118] sm:$0xff]
        %v1489 = vld [vmem:[#allocation13 + $0x120] sm:$0xff]
        %v1490 = vld [vmem:[#allocation13 + $0x128] sm:$0xff]
        %v1491 = vld [vmem:[#allocation13 + $0x130] sm:$0xff]
        %v1492 = vld [vmem:[#allocation13 + $0x138] sm:$0xff]
        %v1493 = vld [vmem:[#allocation13 + $0x140] sm:$0xff]
        %v1494 = vld [vmem:[#allocation13 + $0x148] sm:$0xff]
        %v1495 = vld [vmem:[#allocation13 + $0x150] sm:$0xff]
        %v1496 = vld [vmem:[#allocation13 + $0x158] sm:$0xff]
        %v1497 = vld [vmem:[#allocation13 + $0x160] sm:$0xff]
        %v1498 = vld [vmem:[#allocation13 + $0x168] sm:$0xff]
        %v1499 = vld [vmem:[#allocation13 + $0x170] sm:$0xff]
        %v1500 = vld [vmem:[#allocation13 + $0x178] sm:$0xff]
        %v1501 = vld [vmem:[#allocation13 + $0x180] sm:$0xff]
        %v1502 = vld [vmem:[#allocation13 + $0x188] sm:$0xff]
        %v1503 = vld [vmem:[#allocation13 + $0x190] sm:$0xff]
        %v1504 = vld [vmem:[#allocation13 + $0x198] sm:$0xff]
        %v1505 = vld [vmem:[#allocation13 + $0x1a0] sm:$0xff]
        %v1506 = vld [vmem:[#allocation13 + $0x1a8] sm:$0xff]
        %v1507 = vld [vmem:[#allocation13 + $0x1b0] sm:$0xff]
        %v1508 = vld [vmem:[#allocation13 + $0x1b8] sm:$0xff]
        %v1509 = vld [vmem:[#allocation13 + $0x1c0] sm:$0xff]
        %v1510 = vld [vmem:[#allocation13 + $0x1c8] sm:$0xff]
        %v1511 = vld [vmem:[#allocation13 + $0x1d0] sm:$0xff]
        %v1512 = vld [vmem:[#allocation13 + $0x1d8] sm:$0xff]
        %v1513 = vld [vmem:[#allocation13 + $0x1e0] sm:$0xff]
        %v1514 = vld [vmem:[#allocation13 + $0x1e8] sm:$0xff]
        %v1515 = vld [vmem:[#allocation13 + $0x1f0] sm:$0xff]
        %v1516 = vld [vmem:[#allocation13 + $0x1f8] sm:$0xff]
        %1518 = vset.pattern.permute.xlu0 0
        %1519 = vperm.xlu0 %1518, %v1453
        %v1520 = vpop.permute.xlu0 %1519
        %1523 = vset.pattern.permute.xlu0 0
        %1524 = vperm.xlu0 %1523, %v1454
        %v1525 = vpop.permute.xlu0 %1524
        %1528 = vset.pattern.permute.xlu0 0
        %1529 = vperm.xlu0 %1528, %v1455
        %v1530 = vpop.permute.xlu0 %1529
        %1533 = vset.pattern.permute.xlu0 0
        %1534 = vperm.xlu0 %1533, %v1456
        %v1535 = vpop.permute.xlu0 %1534
        %1538 = vset.pattern.permute.xlu0 0
        %1539 = vperm.xlu0 %1538, %v1457
        %v1540 = vpop.permute.xlu0 %1539
        %1543 = vset.pattern.permute.xlu0 0
        %1544 = vperm.xlu0 %1543, %v1458
        %v1545 = vpop.permute.xlu0 %1544
        %1548 = vset.pattern.permute.xlu0 0
        %1549 = vperm.xlu0 %1548, %v1459
        %v1550 = vpop.permute.xlu0 %1549
        %1553 = vset.pattern.permute.xlu0 0
        %1554 = vperm.xlu0 %1553, %v1460
        %v1555 = vpop.permute.xlu0 %1554
        %1558 = vset.pattern.permute.xlu0 0
        %1559 = vperm.xlu0 %1558, %v1461
        %v1560 = vpop.permute.xlu0 %1559
        %1563 = vset.pattern.permute.xlu0 0
        %1564 = vperm.xlu0 %1563, %v1462
        %v1565 = vpop.permute.xlu0 %1564
        %1568 = vset.pattern.permute.xlu0 0
        %1569 = vperm.xlu0 %1568, %v1463
        %v1570 = vpop.permute.xlu0 %1569
        %1573 = vset.pattern.permute.xlu0 0
        %1574 = vperm.xlu0 %1573, %v1464
        %v1575 = vpop.permute.xlu0 %1574
        %1578 = vset.pattern.permute.xlu0 0
        %1579 = vperm.xlu0 %1578, %v1465
        %v1580 = vpop.permute.xlu0 %1579
        %1583 = vset.pattern.permute.xlu0 0
        %1584 = vperm.xlu0 %1583, %v1466
        %v1585 = vpop.permute.xlu0 %1584
        %1588 = vset.pattern.permute.xlu0 0
        %1589 = vperm.xlu0 %1588, %v1467
        %v1590 = vpop.permute.xlu0 %1589
        %1593 = vset.pattern.permute.xlu0 0
        %1594 = vperm.xlu0 %1593, %v1468
        %v1595 = vpop.permute.xlu0 %1594
        %1598 = vset.pattern.permute.xlu0 0
        %1599 = vperm.xlu0 %1598, %v1469
        %v1600 = vpop.permute.xlu0 %1599
        %1603 = vset.pattern.permute.xlu0 0
        %1604 = vperm.xlu0 %1603, %v1470
        %v1605 = vpop.permute.xlu0 %1604
        %1608 = vset.pattern.permute.xlu0 0
        %1609 = vperm.xlu0 %1608, %v1471
        %v1610 = vpop.permute.xlu0 %1609
        %1613 = vset.pattern.permute.xlu0 0
        %1614 = vperm.xlu0 %1613, %v1472
        %v1615 = vpop.permute.xlu0 %1614
        %1618 = vset.pattern.permute.xlu0 0
        %1619 = vperm.xlu0 %1618, %v1473
        %v1620 = vpop.permute.xlu0 %1619
        %1623 = vset.pattern.permute.xlu0 0
        %1624 = vperm.xlu0 %1623, %v1474
        %v1625 = vpop.permute.xlu0 %1624
        %1628 = vset.pattern.permute.xlu0 0
        %1629 = vperm.xlu0 %1628, %v1475
        %v1630 = vpop.permute.xlu0 %1629
        %1633 = vset.pattern.permute.xlu0 0
        %1634 = vperm.xlu0 %1633, %v1476
        %v1635 = vpop.permute.xlu0 %1634
        %1638 = vset.pattern.permute.xlu0 0
        %1639 = vperm.xlu0 %1638, %v1477
        %v1640 = vpop.permute.xlu0 %1639
        %1643 = vset.pattern.permute.xlu0 0
        %1644 = vperm.xlu0 %1643, %v1478
        %v1645 = vpop.permute.xlu0 %1644
        %1648 = vset.pattern.permute.xlu0 0
        %1649 = vperm.xlu0 %1648, %v1479
        %v1650 = vpop.permute.xlu0 %1649
        %1653 = vset.pattern.permute.xlu0 0
        %1654 = vperm.xlu0 %1653, %v1480
        %v1655 = vpop.permute.xlu0 %1654
        %1658 = vset.pattern.permute.xlu0 0
        %1659 = vperm.xlu0 %1658, %v1481
        %v1660 = vpop.permute.xlu0 %1659
        %1663 = vset.pattern.permute.xlu0 0
        %1664 = vperm.xlu0 %1663, %v1482
        %v1665 = vpop.permute.xlu0 %1664
        %1668 = vset.pattern.permute.xlu0 0
        %1669 = vperm.xlu0 %1668, %v1483
        %v1670 = vpop.permute.xlu0 %1669
        %1673 = vset.pattern.permute.xlu0 0
        %1674 = vperm.xlu0 %1673, %v1484
        %v1675 = vpop.permute.xlu0 %1674
        %1678 = vset.pattern.permute.xlu0 0
        %1679 = vperm.xlu0 %1678, %v1485
        %v1680 = vpop.permute.xlu0 %1679
        %1683 = vset.pattern.permute.xlu0 0
        %1684 = vperm.xlu0 %1683, %v1486
        %v1685 = vpop.permute.xlu0 %1684
        %1688 = vset.pattern.permute.xlu0 0
        %1689 = vperm.xlu0 %1688, %v1487
        %v1690 = vpop.permute.xlu0 %1689
        %1693 = vset.pattern.permute.xlu0 0
        %1694 = vperm.xlu0 %1693, %v1488
        %v1695 = vpop.permute.xlu0 %1694
        %1698 = vset.pattern.permute.xlu0 0
        %1699 = vperm.xlu0 %1698, %v1489
        %v1700 = vpop.permute.xlu0 %1699
        %1703 = vset.pattern.permute.xlu0 0
        %1704 = vperm.xlu0 %1703, %v1490
        %v1705 = vpop.permute.xlu0 %1704
        %1708 = vset.pattern.permute.xlu0 0
        %1709 = vperm.xlu0 %1708, %v1491
        %v1710 = vpop.permute.xlu0 %1709
        %1713 = vset.pattern.permute.xlu0 0
        %1714 = vperm.xlu0 %1713, %v1492
        %v1715 = vpop.permute.xlu0 %1714
        %1718 = vset.pattern.permute.xlu0 0
        %1719 = vperm.xlu0 %1718, %v1493
        %v1720 = vpop.permute.xlu0 %1719
        %1723 = vset.pattern.permute.xlu0 0
        %1724 = vperm.xlu0 %1723, %v1494
        %v1725 = vpop.permute.xlu0 %1724
        %1728 = vset.pattern.permute.xlu0 0
        %1729 = vperm.xlu0 %1728, %v1495
        %v1730 = vpop.permute.xlu0 %1729
        %1733 = vset.pattern.permute.xlu0 0
        %1734 = vperm.xlu0 %1733, %v1496
        %v1735 = vpop.permute.xlu0 %1734
        %1738 = vset.pattern.permute.xlu0 0
        %1739 = vperm.xlu0 %1738, %v1497
        %v1740 = vpop.permute.xlu0 %1739
        %1743 = vset.pattern.permute.xlu0 0
        %1744 = vperm.xlu0 %1743, %v1498
        %v1745 = vpop.permute.xlu0 %1744
        %1748 = vset.pattern.permute.xlu0 0
        %1749 = vperm.xlu0 %1748, %v1499
        %v1750 = vpop.permute.xlu0 %1749
        %1753 = vset.pattern.permute.xlu0 0
        %1754 = vperm.xlu0 %1753, %v1500
        %v1755 = vpop.permute.xlu0 %1754
        %1758 = vset.pattern.permute.xlu0 0
        %1759 = vperm.xlu0 %1758, %v1501
        %v1760 = vpop.permute.xlu0 %1759
        %1763 = vset.pattern.permute.xlu0 0
        %1764 = vperm.xlu0 %1763, %v1502
        %v1765 = vpop.permute.xlu0 %1764
        %1768 = vset.pattern.permute.xlu0 0
        %1769 = vperm.xlu0 %1768, %v1503
        %v1770 = vpop.permute.xlu0 %1769
        %1773 = vset.pattern.permute.xlu0 0
        %1774 = vperm.xlu0 %1773, %v1504
        %v1775 = vpop.permute.xlu0 %1774
        %1778 = vset.pattern.permute.xlu0 0
        %1779 = vperm.xlu0 %1778, %v1505
        %v1780 = vpop.permute.xlu0 %1779
        %1783 = vset.pattern.permute.xlu0 0
        %1784 = vperm.xlu0 %1783, %v1506
        %v1785 = vpop.permute.xlu0 %1784
        %1788 = vset.pattern.permute.xlu0 0
        %1789 = vperm.xlu0 %1788, %v1507
        %v1790 = vpop.permute.xlu0 %1789
        %1793 = vset.pattern.permute.xlu0 0
        %1794 = vperm.xlu0 %1793, %v1508
        %v1795 = vpop.permute.xlu0 %1794
        %1798 = vset.pattern.permute.xlu0 0
        %1799 = vperm.xlu0 %1798, %v1509
        %v1800 = vpop.permute.xlu0 %1799
        %1803 = vset.pattern.permute.xlu0 0
        %1804 = vperm.xlu0 %1803, %v1510
        %v1805 = vpop.permute.xlu0 %1804
        %1808 = vset.pattern.permute.xlu0 0
        %1809 = vperm.xlu0 %1808, %v1511
        %v1810 = vpop.permute.xlu0 %1809
        %1813 = vset.pattern.permute.xlu0 0
        %1814 = vperm.xlu0 %1813, %v1512
        %v1815 = vpop.permute.xlu0 %1814
        %1818 = vset.pattern.permute.xlu0 0
        %1819 = vperm.xlu0 %1818, %v1513
        %v1820 = vpop.permute.xlu0 %1819
        %1823 = vset.pattern.permute.xlu0 0
        %1824 = vperm.xlu0 %1823, %v1514
        %v1825 = vpop.permute.xlu0 %1824
        %1828 = vset.pattern.permute.xlu0 0
        %1829 = vperm.xlu0 %1828, %v1515
        %v1830 = vpop.permute.xlu0 %1829
        %1833 = vset.pattern.permute.xlu0 0
        %1834 = vperm.xlu0 %1833, %v1516
        %v1835 = vpop.permute.xlu0 %1834
        %v1901 = vunpack.c.l.b16 %v1389
        %v1902 = vunpack.c.h.b16 %v1389
        %v1903 = vunpack.c.l.b16 %v1390
        %v1904 = vunpack.c.h.b16 %v1390
        %v1905 = vunpack.c.l.b16 %v1391
        %v1906 = vunpack.c.h.b16 %v1391
        %v1907 = vunpack.c.l.b16 %v1392
        %v1908 = vunpack.c.h.b16 %v1392
        %v1909 = vunpack.c.l.b16 %v1393
        %v1910 = vunpack.c.h.b16 %v1393
        %v1911 = vunpack.c.l.b16 %v1394
        %v1912 = vunpack.c.h.b16 %v1394
        %v1913 = vunpack.c.l.b16 %v1395
        %v1914 = vunpack.c.h.b16 %v1395
        %v1915 = vunpack.c.l.b16 %v1396
        %v1916 = vunpack.c.h.b16 %v1396
        %v1917 = vunpack.c.l.b16 %v1397
        %v1918 = vunpack.c.h.b16 %v1397
        %v1919 = vunpack.c.l.b16 %v1398
        %v1920 = vunpack.c.h.b16 %v1398
        %v1921 = vunpack.c.l.b16 %v1399
        %v1922 = vunpack.c.h.b16 %v1399
        %v1923 = vunpack.c.l.b16 %v1400
        %v1924 = vunpack.c.h.b16 %v1400
        %v1925 = vunpack.c.l.b16 %v1401
        %v1926 = vunpack.c.h.b16 %v1401
        %v1927 = vunpack.c.l.b16 %v1402
        %v1928 = vunpack.c.h.b16 %v1402
        %v1929 = vunpack.c.l.b16 %v1403
        %v1930 = vunpack.c.h.b16 %v1403
        %v1931 = vunpack.c.l.b16 %v1404
        %v1932 = vunpack.c.h.b16 %v1404
        %v1933 = vunpack.c.l.b16 %v1405
        %v1934 = vunpack.c.h.b16 %v1405
        %v1935 = vunpack.c.l.b16 %v1406
        %v1936 = vunpack.c.h.b16 %v1406
        %v1937 = vunpack.c.l.b16 %v1407
        %v1938 = vunpack.c.h.b16 %v1407
        %v1939 = vunpack.c.l.b16 %v1408
        %v1940 = vunpack.c.h.b16 %v1408
        %v1941 = vunpack.c.l.b16 %v1409
        %v1942 = vunpack.c.h.b16 %v1409
        %v1943 = vunpack.c.l.b16 %v1410
        %v1944 = vunpack.c.h.b16 %v1410
        %v1945 = vunpack.c.l.b16 %v1411
        %v1946 = vunpack.c.h.b16 %v1411
        %v1947 = vunpack.c.l.b16 %v1412
        %v1948 = vunpack.c.h.b16 %v1412
        %v1949 = vunpack.c.l.b16 %v1413
        %v1950 = vunpack.c.h.b16 %v1413
        %v1951 = vunpack.c.l.b16 %v1414
        %v1952 = vunpack.c.h.b16 %v1414
        %v1953 = vunpack.c.l.b16 %v1415
        %v1954 = vunpack.c.h.b16 %v1415
        %v1955 = vunpack.c.l.b16 %v1416
        %v1956 = vunpack.c.h.b16 %v1416
        %v1957 = vunpack.c.l.b16 %v1417
        %v1958 = vunpack.c.h.b16 %v1417
        %v1959 = vunpack.c.l.b16 %v1418
        %v1960 = vunpack.c.h.b16 %v1418
        %v1961 = vunpack.c.l.b16 %v1419
        %v1962 = vunpack.c.h.b16 %v1419
        %v1963 = vunpack.c.l.b16 %v1420
        %v1964 = vunpack.c.h.b16 %v1420
        %v1965 = vunpack.c.l.b16 %v1421
        %v1966 = vunpack.c.h.b16 %v1421
        %v1967 = vunpack.c.l.b16 %v1422
        %v1968 = vunpack.c.h.b16 %v1422
        %v1969 = vunpack.c.l.b16 %v1423
        %v1970 = vunpack.c.h.b16 %v1423
        %v1971 = vunpack.c.l.b16 %v1424
        %v1972 = vunpack.c.h.b16 %v1424
        %v1973 = vunpack.c.l.b16 %v1425
        %v1974 = vunpack.c.h.b16 %v1425
        %v1975 = vunpack.c.l.b16 %v1426
        %v1976 = vunpack.c.h.b16 %v1426
        %v1977 = vunpack.c.l.b16 %v1427
        %v1978 = vunpack.c.h.b16 %v1427
        %v1979 = vunpack.c.l.b16 %v1428
        %v1980 = vunpack.c.h.b16 %v1428
        %v1981 = vunpack.c.l.b16 %v1429
        %v1982 = vunpack.c.h.b16 %v1429
        %v1983 = vunpack.c.l.b16 %v1430
        %v1984 = vunpack.c.h.b16 %v1430
        %v1985 = vunpack.c.l.b16 %v1431
        %v1986 = vunpack.c.h.b16 %v1431
        %v1987 = vunpack.c.l.b16 %v1432
        %v1988 = vunpack.c.h.b16 %v1432
        %v1989 = vunpack.c.l.b16 %v1433
        %v1990 = vunpack.c.h.b16 %v1433
        %v1991 = vunpack.c.l.b16 %v1434
        %v1992 = vunpack.c.h.b16 %v1434
        %v1993 = vunpack.c.l.b16 %v1435
        %v1994 = vunpack.c.h.b16 %v1435
        %v1995 = vunpack.c.l.b16 %v1436
        %v1996 = vunpack.c.h.b16 %v1436
        %v1997 = vunpack.c.l.b16 %v1437
        %v1998 = vunpack.c.h.b16 %v1437
        %v1999 = vunpack.c.l.b16 %v1438
        %v2000 = vunpack.c.h.b16 %v1438
        %v2001 = vunpack.c.l.b16 %v1439
        %v2002 = vunpack.c.h.b16 %v1439
        %v2003 = vunpack.c.l.b16 %v1440
        %v2004 = vunpack.c.h.b16 %v1440
        %v2005 = vunpack.c.l.b16 %v1441
        %v2006 = vunpack.c.h.b16 %v1441
        %v2007 = vunpack.c.l.b16 %v1442
        %v2008 = vunpack.c.h.b16 %v1442
        %v2009 = vunpack.c.l.b16 %v1443
        %v2010 = vunpack.c.h.b16 %v1443
        %v2011 = vunpack.c.l.b16 %v1444
        %v2012 = vunpack.c.h.b16 %v1444
        %v2013 = vunpack.c.l.b16 %v1445
        %v2014 = vunpack.c.h.b16 %v1445
        %v2015 = vunpack.c.l.b16 %v1446
        %v2016 = vunpack.c.h.b16 %v1446
        %v2017 = vunpack.c.l.b16 %v1447
        %v2018 = vunpack.c.h.b16 %v1447
        %v2019 = vunpack.c.l.b16 %v1448
        %v2020 = vunpack.c.h.b16 %v1448
        %v2021 = vunpack.c.l.b16 %v1449
        %v2022 = vunpack.c.h.b16 %v1449
        %v2023 = vunpack.c.l.b16 %v1450
        %v2024 = vunpack.c.h.b16 %v1450
        %v2025 = vunpack.c.l.b16 %v1451
        %v2026 = vunpack.c.h.b16 %v1451
        %v2027 = vunpack.c.l.b16 %v1452
        %v2028 = vunpack.c.h.b16 %v1452
        %v2029 = vpack.c.b16 %v1903, %v1901
        %v2030 = vpack.c.b16 %v1904, %v1902
        %v2031 = vpack.c.b16 %v1907, %v1905
        %v2032 = vpack.c.b16 %v1908, %v1906
        %v2033 = vpack.c.b16 %v1911, %v1909
        %v2034 = vpack.c.b16 %v1912, %v1910
        %v2035 = vpack.c.b16 %v1915, %v1913
        %v2036 = vpack.c.b16 %v1916, %v1914
        %v2037 = vpack.c.b16 %v1919, %v1917
        %v2038 = vpack.c.b16 %v1920, %v1918
        %v2039 = vpack.c.b16 %v1923, %v1921
        %v2040 = vpack.c.b16 %v1924, %v1922
        %v2041 = vpack.c.b16 %v1927, %v1925
        %v2042 = vpack.c.b16 %v1928, %v1926
        %v2043 = vpack.c.b16 %v1931, %v1929
        %v2044 = vpack.c.b16 %v1932, %v1930
        %v2045 = vpack.c.b16 %v1935, %v1933
        %v2046 = vpack.c.b16 %v1936, %v1934
        %v2047 = vpack.c.b16 %v1939, %v1937
        %v2048 = vpack.c.b16 %v1940, %v1938
        %v2049 = vpack.c.b16 %v1943, %v1941
        %v2050 = vpack.c.b16 %v1944, %v1942
        %v2051 = vpack.c.b16 %v1947, %v1945
        %v2052 = vpack.c.b16 %v1948, %v1946
        %v2053 = vpack.c.b16 %v1951, %v1949
        %v2054 = vpack.c.b16 %v1952, %v1950
        %v2055 = vpack.c.b16 %v1955, %v1953
        %v2056 = vpack.c.b16 %v1956, %v1954
        %v2057 = vpack.c.b16 %v1959, %v1957
        %v2058 = vpack.c.b16 %v1960, %v1958
        %v2059 = vpack.c.b16 %v1963, %v1961
        %v2060 = vpack.c.b16 %v1964, %v1962
        %v2061 = vpack.c.b16 %v1967, %v1965
        %v2062 = vpack.c.b16 %v1968, %v1966
        %v2063 = vpack.c.b16 %v1971, %v1969
        %v2064 = vpack.c.b16 %v1972, %v1970
        %v2065 = vpack.c.b16 %v1975, %v1973
        %v2066 = vpack.c.b16 %v1976, %v1974
        %v2067 = vpack.c.b16 %v1979, %v1977
        %v2068 = vpack.c.b16 %v1980, %v1978
        %v2069 = vpack.c.b16 %v1983, %v1981
        %v2070 = vpack.c.b16 %v1984, %v1982
        %v2071 = vpack.c.b16 %v1987, %v1985
        %v2072 = vpack.c.b16 %v1988, %v1986
        %v2073 = vpack.c.b16 %v1991, %v1989
        %v2074 = vpack.c.b16 %v1992, %v1990
        %v2075 = vpack.c.b16 %v1995, %v1993
        %v2076 = vpack.c.b16 %v1996, %v1994
        %v2077 = vpack.c.b16 %v1999, %v1997
        %v2078 = vpack.c.b16 %v2000, %v1998
        %v2079 = vpack.c.b16 %v2003, %v2001
        %v2080 = vpack.c.b16 %v2004, %v2002
        %v2081 = vpack.c.b16 %v2007, %v2005
        %v2082 = vpack.c.b16 %v2008, %v2006
        %v2083 = vpack.c.b16 %v2011, %v2009
        %v2084 = vpack.c.b16 %v2012, %v2010
        %v2085 = vpack.c.b16 %v2015, %v2013
        %v2086 = vpack.c.b16 %v2016, %v2014
        %v2087 = vpack.c.b16 %v2019, %v2017
        %v2088 = vpack.c.b16 %v2020, %v2018
        %v2089 = vpack.c.b16 %v2023, %v2021
        %v2090 = vpack.c.b16 %v2024, %v2022
        %v2091 = vpack.c.b16 %v2027, %v2025
        %v2092 = vpack.c.b16 %v2028, %v2026
        %2157 = vmatprep.subr.bf16.mxu0 0
        %2158 = vmatpush1.bf16.msra.mxu0 %v1373
        %2159 = vmatprep.subr.bf16.mxu0 0
        %2160 = vmatpush1.bf16.msra.mxu0 %v1374
        %2161 = vmatprep.subr.bf16.mxu0 0
        %2162 = vmatpush1.bf16.msra.mxu0 %v1375
        %2163 = vmatprep.subr.bf16.mxu0 0
        %2164 = vmatpush1.bf16.msra.mxu0 %v1376
        %2165 = vmatprep.subr.bf16.mxu0 0
        %2166 = vmatpush1.bf16.msra.mxu0 %v1377
        %2167 = vmatprep.subr.bf16.mxu0 0
        %2168 = vmatpush1.bf16.msra.mxu0 %v1378
        %2169 = vmatprep.subr.bf16.mxu0 0
        %2170 = vmatpush1.bf16.msra.mxu0 %v1379
        %2171 = vmatprep.subr.bf16.mxu0 0
        %2172 = vmatpush1.bf16.msra.mxu0 %v1380
        %2173 = vmatprep.subr.bf16.mxu0 0
        %2174 = vmatpush1.bf16.msra.mxu0 %v1381
        %2175 = vmatprep.subr.bf16.mxu0 0
        %2176 = vmatpush1.bf16.msra.mxu0 %v1382
        %2177 = vmatprep.subr.bf16.mxu0 0
        %2178 = vmatpush1.bf16.msra.mxu0 %v1383
        %2179 = vmatprep.subr.bf16.mxu0 0
        %2180 = vmatpush1.bf16.msra.mxu0 %v1384
        %2181 = vmatprep.subr.bf16.mxu0 0
        %2182 = vmatpush1.bf16.msra.mxu0 %v1385
        %2183 = vmatprep.subr.bf16.mxu0 0
        %2184 = vmatpush1.bf16.msra.mxu0 %v1386
        %2185 = vmatprep.subr.bf16.mxu0 0
        %2186 = vmatpush1.bf16.msra.mxu0 %v1387
        %2187 = vmatprep.subr.bf16.mxu0 0
        %2188 = vmatpush1.bf16.msra.mxu0 %v1388
        %2189 = vmatprep.mubr.bf16.mxu0 %v2030
        %2190 = vmatmul.mubr.bf16.gmra.mrb[0].mxu0 %v2029
        %v2191 = vpop.f32.mrb[0].mxu0
        %v2192 = vadd.f32 %v1520, %v2191
        %v2193 = vpop.f32.mrb[0].mxu0
        %v2194 = vpop.f32.mrb[0].mxu0
        %v2195 = vadd.f32 %v1525, %v2194
        %v2196 = vpop.f32.mrb[0].mxu0
        %2197 = vmatprep.mubr.bf16.mxu0 %v2032
        %2198 = vmatmul.mubr.bf16.gmra.mrb[0].mxu0 %v2031
        %v2199 = vpop.f32.mrb[0].mxu0
        %v2200 = vadd.f32 %v1530, %v2199
        %v2201 = vpop.f32.mrb[0].mxu0
        %v2202 = vpop.f32.mrb[0].mxu0
        %v2203 = vadd.f32 %v1535, %v2202
        %v2204 = vpop.f32.mrb[0].mxu0
        %2205 = vmatprep.mubr.bf16.mxu0 %v2034
        %2206 = vmatmul.mubr.bf16.gmra.mrb[0].mxu0 %v2033
        %v2207 = vpop.f32.mrb[0].mxu0
        %v2208 = vadd.f32 %v1540, %v2207
        %v2209 = vpop.f32.mrb[0].mxu0
        %v2210 = vpop.f32.mrb[0].mxu0
        %v2211 = vadd.f32 %v1545, %v2210
        %v2212 = vpop.f32.mrb[0].mxu0
        %2213 = vmatprep.mubr.bf16.mxu0 %v2036
        %2214 = vmatmul.mubr.bf16.gmra.mrb[0].mxu0 %v2035
        %v2215 = vpop.f32.mrb[0].mxu0
        %v2216 = vadd.f32 %v1550, %v2215
        %v2217 = vpop.f32.mrb[0].mxu0
        %v2218 = vpop.f32.mrb[0].mxu0
        %v2219 = vadd.f32 %v1555, %v2218
        %v2220 = vpop.f32.mrb[0].mxu0
        %2221 = vmatprep.mubr.bf16.mxu0 %v2038
        %2222 = vmatmul.mubr.bf16.gmra.mrb[0].mxu0 %v2037
        %v2223 = vpop.f32.mrb[0].mxu0
        %v2224 = vadd.f32 %v1560, %v2223
        %v2225 = vpop.f32.mrb[0].mxu0
        %v2226 = vpop.f32.mrb[0].mxu0
        %v2227 = vadd.f32 %v1565, %v2226
        %v2228 = vpop.f32.mrb[0].mxu0
        %2229 = vmatprep.mubr.bf16.mxu0 %v2040
        %2230 = vmatmul.mubr.bf16.gmra.mrb[0].mxu0 %v2039
        %v2231 = vpop.f32.mrb[0].mxu0
        %v2232 = vadd.f32 %v1570, %v2231
        %v2233 = vpop.f32.mrb[0].mxu0
        %v2234 = vpop.f32.mrb[0].mxu0
        %v2235 = vadd.f32 %v1575, %v2234
        %v2236 = vpop.f32.mrb[0].mxu0
        %2237 = vmatprep.mubr.bf16.mxu0 %v2042
        %2238 = vmatmul.mubr.bf16.gmra.mrb[0].mxu0 %v2041
        %v2239 = vpop.f32.mrb[0].mxu0
        %v2240 = vadd.f32 %v1580, %v2239
        %v2241 = vpop.f32.mrb[0].mxu0
        %v2242 = vpop.f32.mrb[0].mxu0
        %v2243 = vadd.f32 %v1585, %v2242
        %v2244 = vpop.f32.mrb[0].mxu0
        %2245 = vmatprep.mubr.bf16.mxu0 %v2044
        %2246 = vmatmul.mubr.bf16.gmra.mrb[0].mxu0 %v2043
        %v2247 = vpop.f32.mrb[0].mxu0
        %v2248 = vadd.f32 %v1590, %v2247
        %v2249 = vpop.f32.mrb[0].mxu0
        %v2250 = vpop.f32.mrb[0].mxu0
        %v2251 = vadd.f32 %v1595, %v2250
        %v2252 = vpop.f32.mrb[0].mxu0
        %2253 = vmatprep.mubr.bf16.mxu0 %v2046
        %2254 = vmatmul.mubr.bf16.gmra.mrb[0].mxu0 %v2045
        %v2255 = vpop.f32.mrb[0].mxu0
        %v2256 = vadd.f32 %v1600, %v2255
        %v2257 = vpop.f32.mrb[0].mxu0
        %v2258 = vpop.f32.mrb[0].mxu0
        %v2259 = vadd.f32 %v1605, %v2258
        %v2260 = vpop.f32.mrb[0].mxu0
        %2261 = vmatprep.mubr.bf16.mxu0 %v2048
        %2262 = vmatmul.mubr.bf16.gmra.mrb[0].mxu0 %v2047
        %v2263 = vpop.f32.mrb[0].mxu0
        %v2264 = vadd.f32 %v1610, %v2263
        %v2265 = vpop.f32.mrb[0].mxu0
        %v2266 = vpop.f32.mrb[0].mxu0
        %v2267 = vadd.f32 %v1615, %v2266
        %v2268 = vpop.f32.mrb[0].mxu0
        %2269 = vmatprep.mubr.bf16.mxu0 %v2050
        %2270 = vmatmul.mubr.bf16.gmra.mrb[0].mxu0 %v2049
        %v2271 = vpop.f32.mrb[0].mxu0
        %v2272 = vadd.f32 %v1620, %v2271
        %v2273 = vpop.f32.mrb[0].mxu0
        %v2274 = vpop.f32.mrb[0].mxu0
        %v2275 = vadd.f32 %v1625, %v2274
        %v2276 = vpop.f32.mrb[0].mxu0
        %2277 = vmatprep.mubr.bf16.mxu0 %v2052
        %2278 = vmatmul.mubr.bf16.gmra.mrb[0].mxu0 %v2051
        %v2279 = vpop.f32.mrb[0].mxu0
        %v2280 = vadd.f32 %v1630, %v2279
        %v2281 = vpop.f32.mrb[0].mxu0
        %v2282 = vpop.f32.mrb[0].mxu0
        %v2283 = vadd.f32 %v1635, %v2282
        %v2284 = vpop.f32.mrb[0].mxu0
        %2285 = vmatprep.mubr.bf16.mxu0 %v2054
        %2286 = vmatmul.mubr.bf16.gmra.mrb[0].mxu0 %v2053
        %v2287 = vpop.f32.mrb[0].mxu0
        %v2288 = vadd.f32 %v1640, %v2287
        %v2289 = vpop.f32.mrb[0].mxu0
        %v2290 = vpop.f32.mrb[0].mxu0
        %v2291 = vadd.f32 %v1645, %v2290
        %v2292 = vpop.f32.mrb[0].mxu0
        %2293 = vmatprep.mubr.bf16.mxu0 %v2056
        %2294 = vmatmul.mubr.bf16.gmra.mrb[0].mxu0 %v2055
        %v2295 = vpop.f32.mrb[0].mxu0
        %v2296 = vadd.f32 %v1650, %v2295
        %v2297 = vpop.f32.mrb[0].mxu0
        %v2298 = vpop.f32.mrb[0].mxu0
        %v2299 = vadd.f32 %v1655, %v2298
        %v2300 = vpop.f32.mrb[0].mxu0
        %2301 = vmatprep.mubr.bf16.mxu0 %v2058
        %2302 = vmatmul.mubr.bf16.gmra.mrb[0].mxu0 %v2057
        %v2303 = vpop.f32.mrb[0].mxu0
        %v2304 = vadd.f32 %v1660, %v2303
        %v2305 = vpop.f32.mrb[0].mxu0
        %v2306 = vpop.f32.mrb[0].mxu0
        %v2307 = vadd.f32 %v1665, %v2306
        %v2308 = vpop.f32.mrb[0].mxu0
        %2309 = vmatprep.mubr.bf16.mxu0 %v2060
        %2310 = vmatmul.mubr.bf16.gmra.mrb[0].mxu0 %v2059
        %v2311 = vpop.f32.mrb[0].mxu0
        %v2312 = vadd.f32 %v1670, %v2311
        %v2313 = vpop.f32.mrb[0].mxu0
        %v2314 = vpop.f32.mrb[0].mxu0
        %v2315 = vadd.f32 %v1675, %v2314
        %v2316 = vpop.f32.mrb[0].mxu0
        %2317 = vmatprep.mubr.bf16.mxu0 %v2062
        %2318 = vmatmul.mubr.bf16.gmra.mrb[0].mxu0 %v2061
        %v2319 = vpop.f32.mrb[0].mxu0
        %v2320 = vadd.f32 %v1680, %v2319
        %v2321 = vpop.f32.mrb[0].mxu0
        %v2322 = vpop.f32.mrb[0].mxu0
        %v2323 = vadd.f32 %v1685, %v2322
        %v2324 = vpop.f32.mrb[0].mxu0
        %2325 = vmatprep.mubr.bf16.mxu0 %v2064
        %2326 = vmatmul.mubr.bf16.gmra.mrb[0].mxu0 %v2063
        %v2327 = vpop.f32.mrb[0].mxu0
        %v2328 = vadd.f32 %v1690, %v2327
        %v2329 = vpop.f32.mrb[0].mxu0
        %v2330 = vpop.f32.mrb[0].mxu0
        %v2331 = vadd.f32 %v1695, %v2330
        %v2332 = vpop.f32.mrb[0].mxu0
        %2333 = vmatprep.mubr.bf16.mxu0 %v2066
        %2334 = vmatmul.mubr.bf16.gmra.mrb[0].mxu0 %v2065
        %v2335 = vpop.f32.mrb[0].mxu0
        %v2336 = vadd.f32 %v1700, %v2335
        %v2337 = vpop.f32.mrb[0].mxu0
        %v2338 = vpop.f32.mrb[0].mxu0
        %v2339 = vadd.f32 %v1705, %v2338
        %v2340 = vpop.f32.mrb[0].mxu0
        %2341 = vmatprep.mubr.bf16.mxu0 %v2068
        %2342 = vmatmul.mubr.bf16.gmra.mrb[0].mxu0 %v2067
        %v2343 = vpop.f32.mrb[0].mxu0
        %v2344 = vadd.f32 %v1710, %v2343
        %v2345 = vpop.f32.mrb[0].mxu0
        %v2346 = vpop.f32.mrb[0].mxu0
        %v2347 = vadd.f32 %v1715, %v2346
        %v2348 = vpop.f32.mrb[0].mxu0
        %2349 = vmatprep.mubr.bf16.mxu0 %v2070
        %2350 = vmatmul.mubr.bf16.gmra.mrb[0].mxu0 %v2069
        %v2351 = vpop.f32.mrb[0].mxu0
        %v2352 = vadd.f32 %v1720, %v2351
        %v2353 = vpop.f32.mrb[0].mxu0
        %v2354 = vpop.f32.mrb[0].mxu0
        %v2355 = vadd.f32 %v1725, %v2354
        %v2356 = vpop.f32.mrb[0].mxu0
        %2357 = vmatprep.mubr.bf16.mxu0 %v2072
        %2358 = vmatmul.mubr.bf16.gmra.mrb[0].mxu0 %v2071
        %v2359 = vpop.f32.mrb[0].mxu0
        %v2360 = vadd.f32 %v1730, %v2359
        %v2361 = vpop.f32.mrb[0].mxu0
        %v2362 = vpop.f32.mrb[0].mxu0
        %v2363 = vadd.f32 %v1735, %v2362
        %v2364 = vpop.f32.mrb[0].mxu0
        %2365 = vmatprep.mubr.bf16.mxu0 %v2074
        %2366 = vmatmul.mubr.bf16.gmra.mrb[0].mxu0 %v2073
        %v2367 = vpop.f32.mrb[0].mxu0
        %v2368 = vadd.f32 %v1740, %v2367
        %v2369 = vpop.f32.mrb[0].mxu0
        %v2370 = vpop.f32.mrb[0].mxu0
        %v2371 = vadd.f32 %v1745, %v2370
        %v2372 = vpop.f32.mrb[0].mxu0
        %2373 = vmatprep.mubr.bf16.mxu0 %v2076
        %2374 = vmatmul.mubr.bf16.gmra.mrb[0].mxu0 %v2075
        %v2375 = vpop.f32.mrb[0].mxu0
        %v2376 = vadd.f32 %v1750, %v2375
        %v2377 = vpop.f32.mrb[0].mxu0
        %v2378 = vpop.f32.mrb[0].mxu0
        %v2379 = vadd.f32 %v1755, %v2378
        %v2380 = vpop.f32.mrb[0].mxu0
        %2381 = vmatprep.mubr.bf16.mxu0 %v2078
        %2382 = vmatmul.mubr.bf16.gmra.mrb[0].mxu0 %v2077
        %v2383 = vpop.f32.mrb[0].mxu0
        %v2384 = vadd.f32 %v1760, %v2383
        %v2385 = vpop.f32.mrb[0].mxu0
        %v2386 = vpop.f32.mrb[0].mxu0
        %v2387 = vadd.f32 %v1765, %v2386
        %v2388 = vpop.f32.mrb[0].mxu0
        %2389 = vmatprep.mubr.bf16.mxu0 %v2080
        %2390 = vmatmul.mubr.bf16.gmra.mrb[0].mxu0 %v2079
        %v2391 = vpop.f32.mrb[0].mxu0
        %v2392 = vadd.f32 %v1770, %v2391
        %v2393 = vpop.f32.mrb[0].mxu0
        %v2394 = vpop.f32.mrb[0].mxu0
        %v2395 = vadd.f32 %v1775, %v2394
        %v2396 = vpop.f32.mrb[0].mxu0
        %2397 = vmatprep.mubr.bf16.mxu0 %v2082
        %2398 = vmatmul.mubr.bf16.gmra.mrb[0].mxu0 %v2081
        %v2399 = vpop.f32.mrb[0].mxu0
        %v2400 = vadd.f32 %v1780, %v2399
        %v2401 = vpop.f32.mrb[0].mxu0
        %v2402 = vpop.f32.mrb[0].mxu0
        %v2403 = vadd.f32 %v1785, %v2402
        %v2404 = vpop.f32.mrb[0].mxu0
        %2405 = vmatprep.mubr.bf16.mxu0 %v2084
        %2406 = vmatmul.mubr.bf16.gmra.mrb[0].mxu0 %v2083
        %v2407 = vpop.f32.mrb[0].mxu0
        %v2408 = vadd.f32 %v1790, %v2407
        %v2409 = vpop.f32.mrb[0].mxu0
        %v2410 = vpop.f32.mrb[0].mxu0
        %v2411 = vadd.f32 %v1795, %v2410
        %v2412 = vpop.f32.mrb[0].mxu0
        %2413 = vmatprep.mubr.bf16.mxu0 %v2086
        %2414 = vmatmul.mubr.bf16.gmra.mrb[0].mxu0 %v2085
        %v2415 = vpop.f32.mrb[0].mxu0
        %v2416 = vadd.f32 %v1800, %v2415
        %v2417 = vpop.f32.mrb[0].mxu0
        %v2418 = vpop.f32.mrb[0].mxu0
        %v2419 = vadd.f32 %v1805, %v2418
        %v2420 = vpop.f32.mrb[0].mxu0
        %2421 = vmatprep.mubr.bf16.mxu0 %v2088
        %2422 = vmatmul.mubr.bf16.gmra.mrb[0].mxu0 %v2087
        %v2423 = vpop.f32.mrb[0].mxu0
        %v2424 = vadd.f32 %v1810, %v2423
        %v2425 = vpop.f32.mrb[0].mxu0
        %v2426 = vpop.f32.mrb[0].mxu0
        %v2427 = vadd.f32 %v1815, %v2426
        %v2428 = vpop.f32.mrb[0].mxu0
        %2429 = vmatprep.mubr.bf16.mxu0 %v2090
        %2430 = vmatmul.mubr.bf16.gmra.mrb[0].mxu0 %v2089
        %v2431 = vpop.f32.mrb[0].mxu0
        %v2432 = vadd.f32 %v1820, %v2431
        %v2433 = vpop.f32.mrb[0].mxu0
        %v2434 = vpop.f32.mrb[0].mxu0
        %v2435 = vadd.f32 %v1825, %v2434
        %v2436 = vpop.f32.mrb[0].mxu0
        %2437 = vmatprep.mubr.bf16.mxu0 %v2092
        %2438 = vmatmul.mubr.bf16.gmra.mrb[0].mxu0 %v2091
        %v2439 = vpop.f32.mrb[0].mxu0
        %v2440 = vadd.f32 %v1830, %v2439
        %v2441 = vpop.f32.mrb[0].mxu0
        %v2442 = vpop.f32.mrb[0].mxu0
        %v2443 = vadd.f32 %v1835, %v2442
        %v2444 = vpop.f32.mrb[0].mxu0
        %2445 = vdwg.mxu0
        %v2446 = vpack.c.bf16 %v2195, %v2192
        %v2447 = vpack.c.bf16 %v2203, %v2200
        %v2448 = vpack.c.bf16 %v2211, %v2208
        %v2449 = vpack.c.bf16 %v2219, %v2216
        %v2450 = vpack.c.bf16 %v2227, %v2224
        %v2451 = vpack.c.bf16 %v2235, %v2232
        %v2452 = vpack.c.bf16 %v2243, %v2240
        %v2453 = vpack.c.bf16 %v2251, %v2248
        %v2454 = vpack.c.bf16 %v2259, %v2256
        %v2455 = vpack.c.bf16 %v2267, %v2264
        %v2456 = vpack.c.bf16 %v2275, %v2272
        %v2457 = vpack.c.bf16 %v2283, %v2280
        %v2458 = vpack.c.bf16 %v2291, %v2288
        %v2459 = vpack.c.bf16 %v2299, %v2296
        %v2460 = vpack.c.bf16 %v2307, %v2304
        %v2461 = vpack.c.bf16 %v2315, %v2312
        %v2462 = vpack.c.bf16 %v2323, %v2320
        %v2463 = vpack.c.bf16 %v2331, %v2328
        %v2464 = vpack.c.bf16 %v2339, %v2336
        %v2465 = vpack.c.bf16 %v2347, %v2344
        %v2466 = vpack.c.bf16 %v2355, %v2352
        %v2467 = vpack.c.bf16 %v2363, %v2360
        %v2468 = vpack.c.bf16 %v2371, %v2368
        %v2469 = vpack.c.bf16 %v2379, %v2376
        %v2470 = vpack.c.bf16 %v2387, %v2384
        %v2471 = vpack.c.bf16 %v2395, %v2392
        %v2472 = vpack.c.bf16 %v2403, %v2400
        %v2473 = vpack.c.bf16 %v2411, %v2408
        %v2474 = vpack.c.bf16 %v2419, %v2416
        %v2475 = vpack.c.bf16 %v2427, %v2424
        %v2476 = vpack.c.bf16 %v2435, %v2432
        %v2477 = vpack.c.bf16 %v2443, %v2440
        %v2478 = vmul.bf16 %v2446, 1045249613
        %v2479 = vmul.bf16 %v2447, 1045249613
        %v2480 = vmul.bf16 %v2448, 1045249613
        %v2481 = vmul.bf16 %v2449, 1045249613
        %v2482 = vmul.bf16 %v2450, 1045249613
        %v2483 = vmul.bf16 %v2451, 1045249613
        %v2484 = vmul.bf16 %v2452, 1045249613
        %v2485 = vmul.bf16 %v2453, 1045249613
        %v2486 = vmul.bf16 %v2454, 1045249613
        %v2487 = vmul.bf16 %v2455, 1045249613
        %v2488 = vmul.bf16 %v2456, 1045249613
        %v2489 = vmul.bf16 %v2457, 1045249613
        %v2490 = vmul.bf16 %v2458, 1045249613
        %v2491 = vmul.bf16 %v2459, 1045249613
        %v2492 = vmul.bf16 %v2460, 1045249613
        %v2493 = vmul.bf16 %v2461, 1045249613
        %v2494 = vmul.bf16 %v2462, 1045249613
        %v2495 = vmul.bf16 %v2463, 1045249613
        %v2496 = vmul.bf16 %v2464, 1045249613
        %v2497 = vmul.bf16 %v2465, 1045249613
        %v2498 = vmul.bf16 %v2466, 1045249613
        %v2499 = vmul.bf16 %v2467, 1045249613
        %v2500 = vmul.bf16 %v2468, 1045249613
        %v2501 = vmul.bf16 %v2469, 1045249613
        %v2502 = vmul.bf16 %v2470, 1045249613
        %v2503 = vmul.bf16 %v2471, 1045249613
        %v2504 = vmul.bf16 %v2472, 1045249613
        %v2505 = vmul.bf16 %v2473, 1045249613
        %v2506 = vmul.bf16 %v2474, 1045249613
        %v2507 = vmul.bf16 %v2475, 1045249613
        %v2508 = vmul.bf16 %v2476, 1045249613
        %v2509 = vmul.bf16 %v2477, 1045249613
        %v2510 = vmax.bf16 %v2446, %v2478
        %v2511 = vmax.bf16 %v2447, %v2479
        %v2512 = vmax.bf16 %v2448, %v2480
        %v2513 = vmax.bf16 %v2449, %v2481
        %v2514 = vmax.bf16 %v2450, %v2482
        %v2515 = vmax.bf16 %v2451, %v2483
        %v2516 = vmax.bf16 %v2452, %v2484
        %v2517 = vmax.bf16 %v2453, %v2485
        %v2518 = vmax.bf16 %v2454, %v2486
        %v2519 = vmax.bf16 %v2455, %v2487
        %v2520 = vmax.bf16 %v2456, %v2488
        %v2521 = vmax.bf16 %v2457, %v2489
        %v2522 = vmax.bf16 %v2458, %v2490
        %v2523 = vmax.bf16 %v2459, %v2491
        %v2524 = vmax.bf16 %v2460, %v2492
        %v2525 = vmax.bf16 %v2461, %v2493
        %v2526 = vmax.bf16 %v2462, %v2494
        %v2527 = vmax.bf16 %v2463, %v2495
        %v2528 = vmax.bf16 %v2464, %v2496
        %v2529 = vmax.bf16 %v2465, %v2497
        %v2530 = vmax.bf16 %v2466, %v2498
        %v2531 = vmax.bf16 %v2467, %v2499
        %v2532 = vmax.bf16 %v2468, %v2500
        %v2533 = vmax.bf16 %v2469, %v2501
        %v2534 = vmax.bf16 %v2470, %v2502
        %v2535 = vmax.bf16 %v2471, %v2503
        %v2536 = vmax.bf16 %v2472, %v2504
        %v2537 = vmax.bf16 %v2473, %v2505
        %v2538 = vmax.bf16 %v2474, %v2506
        %v2539 = vmax.bf16 %v2475, %v2507
        %v2540 = vmax.bf16 %v2476, %v2508
        %v2541 = vmax.bf16 %v2477, %v2509
        %v2542 = vld [vmem:[#allocation14] sm:$0xff]
        %v2543 = vld [vmem:[#allocation14 + $0x8] sm:$0xff]
        %v2544 = vld [vmem:[#allocation14 + $0x10] sm:$0xff]
        %v2545 = vld [vmem:[#allocation14 + $0x18] sm:$0xff]
        %v2546 = vld [vmem:[#allocation14 + $0x20] sm:$0xff]
        %v2547 = vld [vmem:[#allocation14 + $0x28] sm:$0xff]
        %v2548 = vld [vmem:[#allocation14 + $0x30] sm:$0xff]
        %v2549 = vld [vmem:[#allocation14 + $0x38] sm:$0xff]
        %v2550 = vld [vmem:[#allocation14 + $0x40] sm:$0xff]
        %v2551 = vld [vmem:[#allocation14 + $0x48] sm:$0xff]
        %v2552 = vld [vmem:[#allocation14 + $0x50] sm:$0xff]
        %v2553 = vld [vmem:[#allocation14 + $0x58] sm:$0xff]
        %v2554 = vld [vmem:[#allocation14 + $0x60] sm:$0xff]
        %v2555 = vld [vmem:[#allocation14 + $0x68] sm:$0xff]
        %v2556 = vld [vmem:[#allocation14 + $0x70] sm:$0xff]
        %v2557 = vld [vmem:[#allocation14 + $0x78] sm:$0xff]
        %v2558 = vld [vmem:[#allocation14 + $0x80] sm:$0xff]
        %v2559 = vld [vmem:[#allocation14 + $0x88] sm:$0xff]
        %v2560 = vld [vmem:[#allocation14 + $0x90] sm:$0xff]
        %v2561 = vld [vmem:[#allocation14 + $0x98] sm:$0xff]
        %v2562 = vld [vmem:[#allocation14 + $0xa0] sm:$0xff]
        %v2563 = vld [vmem:[#allocation14 + $0xa8] sm:$0xff]
        %v2564 = vld [vmem:[#allocation14 + $0xb0] sm:$0xff]
        %v2565 = vld [vmem:[#allocation14 + $0xb8] sm:$0xff]
        %v2566 = vld [vmem:[#allocation14 + $0xc0] sm:$0xff]
        %v2567 = vld [vmem:[#allocation14 + $0xc8] sm:$0xff]
        %v2568 = vld [vmem:[#allocation14 + $0xd0] sm:$0xff]
        %v2569 = vld [vmem:[#allocation14 + $0xd8] sm:$0xff]
        %v2570 = vld [vmem:[#allocation14 + $0xe0] sm:$0xff]
        %v2571 = vld [vmem:[#allocation14 + $0xe8] sm:$0xff]
        %v2572 = vld [vmem:[#allocation14 + $0xf0] sm:$0xff]
        %v2573 = vld [vmem:[#allocation14 + $0xf8] sm:$0xff]
        %v2574 = vld [vmem:[#allocation14 + $0x100] sm:$0xff]
        %v2575 = vld [vmem:[#allocation14 + $0x108] sm:$0xff]
        %v2576 = vld [vmem:[#allocation14 + $0x110] sm:$0xff]
        %v2577 = vld [vmem:[#allocation14 + $0x118] sm:$0xff]
        %v2578 = vld [vmem:[#allocation14 + $0x120] sm:$0xff]
        %v2579 = vld [vmem:[#allocation14 + $0x128] sm:$0xff]
        %v2580 = vld [vmem:[#allocation14 + $0x130] sm:$0xff]
        %v2581 = vld [vmem:[#allocation14 + $0x138] sm:$0xff]
        %v2582 = vld [vmem:[#allocation14 + $0x140] sm:$0xff]
        %v2583 = vld [vmem:[#allocation14 + $0x148] sm:$0xff]
        %v2584 = vld [vmem:[#allocation14 + $0x150] sm:$0xff]
        %v2585 = vld [vmem:[#allocation14 + $0x158] sm:$0xff]
        %v2586 = vld [vmem:[#allocation14 + $0x160] sm:$0xff]
        %v2587 = vld [vmem:[#allocation14 + $0x168] sm:$0xff]
        %v2588 = vld [vmem:[#allocation14 + $0x170] sm:$0xff]
        %v2589 = vld [vmem:[#allocation14 + $0x178] sm:$0xff]
        %v2590 = vld [vmem:[#allocation14 + $0x180] sm:$0xff]
        %v2591 = vld [vmem:[#allocation14 + $0x188] sm:$0xff]
        %v2592 = vld [vmem:[#allocation14 + $0x190] sm:$0xff]
        %v2593 = vld [vmem:[#allocation14 + $0x198] sm:$0xff]
        %v2594 = vld [vmem:[#allocation14 + $0x1a0] sm:$0xff]
        %v2595 = vld [vmem:[#allocation14 + $0x1a8] sm:$0xff]
        %v2596 = vld [vmem:[#allocation14 + $0x1b0] sm:$0xff]
        %v2597 = vld [vmem:[#allocation14 + $0x1b8] sm:$0xff]
        %v2598 = vld [vmem:[#allocation14 + $0x1c0] sm:$0xff]
        %v2599 = vld [vmem:[#allocation14 + $0x1c8] sm:$0xff]
        %v2600 = vld [vmem:[#allocation14 + $0x1d0] sm:$0xff]
        %v2601 = vld [vmem:[#allocation14 + $0x1d8] sm:$0xff]
        %v2602 = vld [vmem:[#allocation14 + $0x1e0] sm:$0xff]
        %v2603 = vld [vmem:[#allocation14 + $0x1e8] sm:$0xff]
        %v2604 = vld [vmem:[#allocation14 + $0x1f0] sm:$0xff]
        %v2605 = vld [vmem:[#allocation14 + $0x1f8] sm:$0xff]
        %v2606 = vld [vmem:[#allocation16] sm:$0xff]
        %v2607 = vld [vmem:[#allocation16 + $0x8] sm:$0xff]
        %v2608 = vld [vmem:[#allocation16 + $0x10] sm:$0xff]
        %v2609 = vld [vmem:[#allocation16 + $0x18] sm:$0xff]
        %v2610 = vld [vmem:[#allocation16 + $0x20] sm:$0xff]
        %v2611 = vld [vmem:[#allocation16 + $0x28] sm:$0xff]
        %v2612 = vld [vmem:[#allocation16 + $0x30] sm:$0xff]
        %v2613 = vld [vmem:[#allocation16 + $0x38] sm:$0xff]
        %v2614 = vld [vmem:[#allocation16 + $0x40] sm:$0xff]
        %v2615 = vld [vmem:[#allocation16 + $0x48] sm:$0xff]
        %v2616 = vld [vmem:[#allocation16 + $0x50] sm:$0xff]
        %v2617 = vld [vmem:[#allocation16 + $0x58] sm:$0xff]
        %v2618 = vld [vmem:[#allocation16 + $0x60] sm:$0xff]
        %v2619 = vld [vmem:[#allocation16 + $0x68] sm:$0xff]
        %v2620 = vld [vmem:[#allocation16 + $0x70] sm:$0xff]
        %v2621 = vld [vmem:[#allocation16 + $0x78] sm:$0xff]
        %v2622 = vld [vmem:[#allocation16 + $0x80] sm:$0xff]
        %v2623 = vld [vmem:[#allocation16 + $0x88] sm:$0xff]
        %v2624 = vld [vmem:[#allocation16 + $0x90] sm:$0xff]
        %v2625 = vld [vmem:[#allocation16 + $0x98] sm:$0xff]
        %v2626 = vld [vmem:[#allocation16 + $0xa0] sm:$0xff]
        %v2627 = vld [vmem:[#allocation16 + $0xa8] sm:$0xff]
        %v2628 = vld [vmem:[#allocation16 + $0xb0] sm:$0xff]
        %v2629 = vld [vmem:[#allocation16 + $0xb8] sm:$0xff]
        %v2630 = vld [vmem:[#allocation16 + $0xc0] sm:$0xff]
        %v2631 = vld [vmem:[#allocation16 + $0xc8] sm:$0xff]
        %v2632 = vld [vmem:[#allocation16 + $0xd0] sm:$0xff]
        %v2633 = vld [vmem:[#allocation16 + $0xd8] sm:$0xff]
        %v2634 = vld [vmem:[#allocation16 + $0xe0] sm:$0xff]
        %v2635 = vld [vmem:[#allocation16 + $0xe8] sm:$0xff]
        %v2636 = vld [vmem:[#allocation16 + $0xf0] sm:$0xff]
        %v2637 = vld [vmem:[#allocation16 + $0xf8] sm:$0xff]
        %2639 = vset.pattern.permute.xlu0 0
        %2640 = vperm.xlu0 %2639, %v2606
        %v2641 = vpop.permute.xlu0 %2640
        %2644 = vset.pattern.permute.xlu0 0
        %2645 = vperm.xlu0 %2644, %v2607
        %v2646 = vpop.permute.xlu0 %2645
        %2649 = vset.pattern.permute.xlu0 0
        %2650 = vperm.xlu0 %2649, %v2608
        %v2651 = vpop.permute.xlu0 %2650
        %2654 = vset.pattern.permute.xlu0 0
        %2655 = vperm.xlu0 %2654, %v2609
        %v2656 = vpop.permute.xlu0 %2655
        %2659 = vset.pattern.permute.xlu0 0
        %2660 = vperm.xlu0 %2659, %v2610
        %v2661 = vpop.permute.xlu0 %2660
        %2664 = vset.pattern.permute.xlu0 0
        %2665 = vperm.xlu0 %2664, %v2611
        %v2666 = vpop.permute.xlu0 %2665
        %2669 = vset.pattern.permute.xlu0 0
        %2670 = vperm.xlu0 %2669, %v2612
        %v2671 = vpop.permute.xlu0 %2670
        %2674 = vset.pattern.permute.xlu0 0
        %2675 = vperm.xlu0 %2674, %v2613
        %v2676 = vpop.permute.xlu0 %2675
        %2679 = vset.pattern.permute.xlu0 0
        %2680 = vperm.xlu0 %2679, %v2614
        %v2681 = vpop.permute.xlu0 %2680
        %2684 = vset.pattern.permute.xlu0 0
        %2685 = vperm.xlu0 %2684, %v2615
        %v2686 = vpop.permute.xlu0 %2685
        %2689 = vset.pattern.permute.xlu0 0
        %2690 = vperm.xlu0 %2689, %v2616
        %v2691 = vpop.permute.xlu0 %2690
        %2694 = vset.pattern.permute.xlu0 0
        %2695 = vperm.xlu0 %2694, %v2617
        %v2696 = vpop.permute.xlu0 %2695
        %2699 = vset.pattern.permute.xlu0 0
        %2700 = vperm.xlu0 %2699, %v2618
        %v2701 = vpop.permute.xlu0 %2700
        %2704 = vset.pattern.permute.xlu0 0
        %2705 = vperm.xlu0 %2704, %v2619
        %v2706 = vpop.permute.xlu0 %2705
        %2709 = vset.pattern.permute.xlu0 0
        %2710 = vperm.xlu0 %2709, %v2620
        %v2711 = vpop.permute.xlu0 %2710
        %2714 = vset.pattern.permute.xlu0 0
        %2715 = vperm.xlu0 %2714, %v2621
        %v2716 = vpop.permute.xlu0 %2715
        %2719 = vset.pattern.permute.xlu0 0
        %2720 = vperm.xlu0 %2719, %v2622
        %v2721 = vpop.permute.xlu0 %2720
        %2724 = vset.pattern.permute.xlu0 0
        %2725 = vperm.xlu0 %2724, %v2623
        %v2726 = vpop.permute.xlu0 %2725
        %2729 = vset.pattern.permute.xlu0 0
        %2730 = vperm.xlu0 %2729, %v2624
        %v2731 = vpop.permute.xlu0 %2730
        %2734 = vset.pattern.permute.xlu0 0
        %2735 = vperm.xlu0 %2734, %v2625
        %v2736 = vpop.permute.xlu0 %2735
        %2739 = vset.pattern.permute.xlu0 0
        %2740 = vperm.xlu0 %2739, %v2626
        %v2741 = vpop.permute.xlu0 %2740
        %2744 = vset.pattern.permute.xlu0 0
        %2745 = vperm.xlu0 %2744, %v2627
        %v2746 = vpop.permute.xlu0 %2745
        %2749 = vset.pattern.permute.xlu0 0
        %2750 = vperm.xlu0 %2749, %v2628
        %v2751 = vpop.permute.xlu0 %2750
        %2754 = vset.pattern.permute.xlu0 0
        %2755 = vperm.xlu0 %2754, %v2629
        %v2756 = vpop.permute.xlu0 %2755
        %2759 = vset.pattern.permute.xlu0 0
        %2760 = vperm.xlu0 %2759, %v2630
        %v2761 = vpop.permute.xlu0 %2760
        %2764 = vset.pattern.permute.xlu0 0
        %2765 = vperm.xlu0 %2764, %v2631
        %v2766 = vpop.permute.xlu0 %2765
        %2769 = vset.pattern.permute.xlu0 0
        %2770 = vperm.xlu0 %2769, %v2632
        %v2771 = vpop.permute.xlu0 %2770
        %2774 = vset.pattern.permute.xlu0 0
        %2775 = vperm.xlu0 %2774, %v2633
        %v2776 = vpop.permute.xlu0 %2775
        %2779 = vset.pattern.permute.xlu0 0
        %2780 = vperm.xlu0 %2779, %v2634
        %v2781 = vpop.permute.xlu0 %2780
        %2784 = vset.pattern.permute.xlu0 0
        %2785 = vperm.xlu0 %2784, %v2635
        %v2786 = vpop.permute.xlu0 %2785
        %2789 = vset.pattern.permute.xlu0 0
        %2790 = vperm.xlu0 %2789, %v2636
        %v2791 = vpop.permute.xlu0 %2790
        %2794 = vset.pattern.permute.xlu0 0
        %2795 = vperm.xlu0 %2794, %v2637
        %v2796 = vpop.permute.xlu0 %2795
        %v2862 = vunpack.c.l.b16 %v2542
        %v2863 = vunpack.c.h.b16 %v2542
        %v2864 = vunpack.c.l.b16 %v2543
        %v2865 = vunpack.c.h.b16 %v2543
        %v2866 = vunpack.c.l.b16 %v2544
        %v2867 = vunpack.c.h.b16 %v2544
        %v2868 = vunpack.c.l.b16 %v2545
        %v2869 = vunpack.c.h.b16 %v2545
        %v2870 = vunpack.c.l.b16 %v2546
        %v2871 = vunpack.c.h.b16 %v2546
        %v2872 = vunpack.c.l.b16 %v2547
        %v2873 = vunpack.c.h.b16 %v2547
        %v2874 = vunpack.c.l.b16 %v2548
        %v2875 = vunpack.c.h.b16 %v2548
        %v2876 = vunpack.c.l.b16 %v2549
        %v2877 = vunpack.c.h.b16 %v2549
        %v2878 = vunpack.c.l.b16 %v2550
        %v2879 = vunpack.c.h.b16 %v2550
        %v2880 = vunpack.c.l.b16 %v2551
        %v2881 = vunpack.c.h.b16 %v2551
        %v2882 = vunpack.c.l.b16 %v2552
        %v2883 = vunpack.c.h.b16 %v2552
        %v2884 = vunpack.c.l.b16 %v2553
        %v2885 = vunpack.c.h.b16 %v2553
        %v2886 = vunpack.c.l.b16 %v2554
        %v2887 = vunpack.c.h.b16 %v2554
        %v2888 = vunpack.c.l.b16 %v2555
        %v2889 = vunpack.c.h.b16 %v2555
        %v2890 = vunpack.c.l.b16 %v2556
        %v2891 = vunpack.c.h.b16 %v2556
        %v2892 = vunpack.c.l.b16 %v2557
        %v2893 = vunpack.c.h.b16 %v2557
        %v2894 = vunpack.c.l.b16 %v2558
        %v2895 = vunpack.c.h.b16 %v2558
        %v2896 = vunpack.c.l.b16 %v2559
        %v2897 = vunpack.c.h.b16 %v2559
        %v2898 = vunpack.c.l.b16 %v2560
        %v2899 = vunpack.c.h.b16 %v2560
        %v2900 = vunpack.c.l.b16 %v2561
        %v2901 = vunpack.c.h.b16 %v2561
        %v2902 = vunpack.c.l.b16 %v2562
        %v2903 = vunpack.c.h.b16 %v2562
        %v2904 = vunpack.c.l.b16 %v2563
        %v2905 = vunpack.c.h.b16 %v2563
        %v2906 = vunpack.c.l.b16 %v2564
        %v2907 = vunpack.c.h.b16 %v2564
        %v2908 = vunpack.c.l.b16 %v2565
        %v2909 = vunpack.c.h.b16 %v2565
        %v2910 = vunpack.c.l.b16 %v2566
        %v2911 = vunpack.c.h.b16 %v2566
        %v2912 = vunpack.c.l.b16 %v2567
        %v2913 = vunpack.c.h.b16 %v2567
        %v2914 = vunpack.c.l.b16 %v2568
        %v2915 = vunpack.c.h.b16 %v2568
        %v2916 = vunpack.c.l.b16 %v2569
        %v2917 = vunpack.c.h.b16 %v2569
        %v2918 = vunpack.c.l.b16 %v2570
        %v2919 = vunpack.c.h.b16 %v2570
        %v2920 = vunpack.c.l.b16 %v2571
        %v2921 = vunpack.c.h.b16 %v2571
        %v2922 = vunpack.c.l.b16 %v2572
        %v2923 = vunpack.c.h.b16 %v2572
        %v2924 = vunpack.c.l.b16 %v2573
        %v2925 = vunpack.c.h.b16 %v2573
        %v2926 = vunpack.c.l.b16 %v2574
        %v2927 = vunpack.c.h.b16 %v2574
        %v2928 = vunpack.c.l.b16 %v2575
        %v2929 = vunpack.c.h.b16 %v2575
        %v2930 = vunpack.c.l.b16 %v2576
        %v2931 = vunpack.c.h.b16 %v2576
        %v2932 = vunpack.c.l.b16 %v2577
        %v2933 = vunpack.c.h.b16 %v2577
        %v2934 = vunpack.c.l.b16 %v2578
        %v2935 = vunpack.c.h.b16 %v2578
        %v2936 = vunpack.c.l.b16 %v2579
        %v2937 = vunpack.c.h.b16 %v2579
        %v2938 = vunpack.c.l.b16 %v2580
        %v2939 = vunpack.c.h.b16 %v2580
        %v2940 = vunpack.c.l.b16 %v2581
        %v2941 = vunpack.c.h.b16 %v2581
        %v2942 = vunpack.c.l.b16 %v2582
        %v2943 = vunpack.c.h.b16 %v2582
        %v2944 = vunpack.c.l.b16 %v2583
        %v2945 = vunpack.c.h.b16 %v2583
        %v2946 = vunpack.c.l.b16 %v2584
        %v2947 = vunpack.c.h.b16 %v2584
        %v2948 = vunpack.c.l.b16 %v2585
        %v2949 = vunpack.c.h.b16 %v2585
        %v2950 = vunpack.c.l.b16 %v2586
        %v2951 = vunpack.c.h.b16 %v2586
        %v2952 = vunpack.c.l.b16 %v2587
        %v2953 = vunpack.c.h.b16 %v2587
        %v2954 = vunpack.c.l.b16 %v2588
        %v2955 = vunpack.c.h.b16 %v2588
        %v2956 = vunpack.c.l.b16 %v2589
        %v2957 = vunpack.c.h.b16 %v2589
        %v2958 = vunpack.c.l.b16 %v2590
        %v2959 = vunpack.c.h.b16 %v2590
        %v2960 = vunpack.c.l.b16 %v2591
        %v2961 = vunpack.c.h.b16 %v2591
        %v2962 = vunpack.c.l.b16 %v2592
        %v2963 = vunpack.c.h.b16 %v2592
        %v2964 = vunpack.c.l.b16 %v2593
        %v2965 = vunpack.c.h.b16 %v2593
        %v2966 = vunpack.c.l.b16 %v2594
        %v2967 = vunpack.c.h.b16 %v2594
        %v2968 = vunpack.c.l.b16 %v2595
        %v2969 = vunpack.c.h.b16 %v2595
        %v2970 = vunpack.c.l.b16 %v2596
        %v2971 = vunpack.c.h.b16 %v2596
        %v2972 = vunpack.c.l.b16 %v2597
        %v2973 = vunpack.c.h.b16 %v2597
        %v2974 = vunpack.c.l.b16 %v2598
        %v2975 = vunpack.c.h.b16 %v2598
        %v2976 = vunpack.c.l.b16 %v2599
        %v2977 = vunpack.c.h.b16 %v2599
        %v2978 = vunpack.c.l.b16 %v2600
        %v2979 = vunpack.c.h.b16 %v2600
        %v2980 = vunpack.c.l.b16 %v2601
        %v2981 = vunpack.c.h.b16 %v2601
        %v2982 = vunpack.c.l.b16 %v2602
        %v2983 = vunpack.c.h.b16 %v2602
        %v2984 = vunpack.c.l.b16 %v2603
        %v2985 = vunpack.c.h.b16 %v2603
        %v2986 = vunpack.c.l.b16 %v2604
        %v2987 = vunpack.c.h.b16 %v2604
        %v2988 = vunpack.c.l.b16 %v2605
        %v2989 = vunpack.c.h.b16 %v2605
        %v2990 = vpack.c.b16 %v2866, %v2862
        %v2991 = vpack.c.b16 %v2867, %v2863
        %v2992 = vpack.c.b16 %v2868, %v2864
        %v2993 = vpack.c.b16 %v2869, %v2865
        %v2994 = vpack.c.b16 %v2874, %v2870
        %v2995 = vpack.c.b16 %v2875, %v2871
        %v2996 = vpack.c.b16 %v2876, %v2872
        %v2997 = vpack.c.b16 %v2877, %v2873
        %v2998 = vpack.c.b16 %v2882, %v2878
        %v2999 = vpack.c.b16 %v2883, %v2879
        %v3000 = vpack.c.b16 %v2884, %v2880
        %v3001 = vpack.c.b16 %v2885, %v2881
        %v3002 = vpack.c.b16 %v2890, %v2886
        %v3003 = vpack.c.b16 %v2891, %v2887
        %v3004 = vpack.c.b16 %v2892, %v2888
        %v3005 = vpack.c.b16 %v2893, %v2889
        %v3006 = vpack.c.b16 %v2898, %v2894
        %v3007 = vpack.c.b16 %v2899, %v2895
        %v3008 = vpack.c.b16 %v2900, %v2896
        %v3009 = vpack.c.b16 %v2901, %v2897
        %v3010 = vpack.c.b16 %v2906, %v2902
        %v3011 = vpack.c.b16 %v2907, %v2903
        %v3012 = vpack.c.b16 %v2908, %v2904
        %v3013 = vpack.c.b16 %v2909, %v2905
        %v3014 = vpack.c.b16 %v2914, %v2910
        %v3015 = vpack.c.b16 %v2915, %v2911
        %v3016 = vpack.c.b16 %v2916, %v2912
        %v3017 = vpack.c.b16 %v2917, %v2913
        %v3018 = vpack.c.b16 %v2922, %v2918
        %v3019 = vpack.c.b16 %v2923, %v2919
        %v3020 = vpack.c.b16 %v2924, %v2920
        %v3021 = vpack.c.b16 %v2925, %v2921
        %v3022 = vpack.c.b16 %v2930, %v2926
        %v3023 = vpack.c.b16 %v2931, %v2927
        %v3024 = vpack.c.b16 %v2932, %v2928
        %v3025 = vpack.c.b16 %v2933, %v2929
        %v3026 = vpack.c.b16 %v2938, %v2934
        %v3027 = vpack.c.b16 %v2939, %v2935
        %v3028 = vpack.c.b16 %v2940, %v2936
        %v3029 = vpack.c.b16 %v2941, %v2937
        %v3030 = vpack.c.b16 %v2946, %v2942
        %v3031 = vpack.c.b16 %v2947, %v2943
        %v3032 = vpack.c.b16 %v2948, %v2944
        %v3033 = vpack.c.b16 %v2949, %v2945
        %v3034 = vpack.c.b16 %v2954, %v2950
        %v3035 = vpack.c.b16 %v2955, %v2951
        %v3036 = vpack.c.b16 %v2956, %v2952
        %v3037 = vpack.c.b16 %v2957, %v2953
        %v3038 = vpack.c.b16 %v2962, %v2958
        %v3039 = vpack.c.b16 %v2963, %v2959
        %v3040 = vpack.c.b16 %v2964, %v2960
        %v3041 = vpack.c.b16 %v2965, %v2961
        %v3042 = vpack.c.b16 %v2970, %v2966
        %v3043 = vpack.c.b16 %v2971, %v2967
        %v3044 = vpack.c.b16 %v2972, %v2968
        %v3045 = vpack.c.b16 %v2973, %v2969
        %v3046 = vpack.c.b16 %v2978, %v2974
        %v3047 = vpack.c.b16 %v2979, %v2975
        %v3048 = vpack.c.b16 %v2980, %v2976
        %v3049 = vpack.c.b16 %v2981, %v2977
        %v3050 = vpack.c.b16 %v2986, %v2982
        %v3051 = vpack.c.b16 %v2987, %v2983
        %v3052 = vpack.c.b16 %v2988, %v2984
        %v3053 = vpack.c.b16 %v2989, %v2985
        %3118 = vmatprep.subr.bf16.mxu0 0
        %3119 = vmatpush1.bf16.msra.mxu0 %v2510
        %3120 = vmatprep.subr.bf16.mxu0 0
        %3121 = vmatpush1.bf16.msra.mxu0 %v2511
        %3122 = vmatprep.subr.bf16.mxu0 0
        %3123 = vmatpush1.bf16.msra.mxu0 %v2512
        %3124 = vmatprep.subr.bf16.mxu0 0
        %3125 = vmatpush1.bf16.msra.mxu0 %v2513
        %3126 = vmatprep.subr.bf16.mxu0 0
        %3127 = vmatpush1.bf16.msra.mxu0 %v2514
        %3128 = vmatprep.subr.bf16.mxu0 0
        %3129 = vmatpush1.bf16.msra.mxu0 %v2515
        %3130 = vmatprep.subr.bf16.mxu0 0
        %3131 = vmatpush1.bf16.msra.mxu0 %v2516
        %3132 = vmatprep.subr.bf16.mxu0 0
        %3133 = vmatpush1.bf16.msra.mxu0 %v2517
        %3134 = vmatprep.subr.bf16.mxu0 0
        %3135 = vmatpush1.bf16.msra.mxu0 %v2518
        %3136 = vmatprep.subr.bf16.mxu0 0
        %3137 = vmatpush1.bf16.msra.mxu0 %v2519
        %3138 = vmatprep.subr.bf16.mxu0 0
        %3139 = vmatpush1.bf16.msra.mxu0 %v2520
        %3140 = vmatprep.subr.bf16.mxu0 0
        %3141 = vmatpush1.bf16.msra.mxu0 %v2521
        %3142 = vmatprep.subr.bf16.mxu0 0
        %3143 = vmatpush1.bf16.msra.mxu0 %v2522
        %3144 = vmatprep.subr.bf16.mxu0 0
        %3145 = vmatpush1.bf16.msra.mxu0 %v2523
        %3146 = vmatprep.subr.bf16.mxu0 0
        %3147 = vmatpush1.bf16.msra.mxu0 %v2524
        %3148 = vmatprep.subr.bf16.mxu0 0
        %3149 = vmatpush1.bf16.msra.mxu0 %v2525
        %3150 = vmatprep.mubr.bf16.mxu0 %v2991
        %3151 = vmatmul.mubr.bf16.gmra.mrb[0].mxu0 %v2990
        %v3152 = vpop.f32.mrb[0].mxu0
        %v3153 = vadd.f32 %v2641, %v3152
        %v3154 = vpop.f32.mrb[0].mxu0
        %v3155 = vpop.f32.mrb[0].mxu0
        %v3156 = vadd.f32 %v2646, %v3155
        %v3157 = vpop.f32.mrb[0].mxu0
        %3158 = vmatprep.mubr.bf16.mxu0 %v2995
        %3159 = vmatmul.mubr.bf16.gmra.mrb[0].mxu0 %v2994
        %v3160 = vpop.f32.mrb[0].mxu0
        %v3161 = vadd.f32 %v2651, %v3160
        %v3162 = vpop.f32.mrb[0].mxu0
        %v3163 = vpop.f32.mrb[0].mxu0
        %v3164 = vadd.f32 %v2656, %v3163
        %v3165 = vpop.f32.mrb[0].mxu0
        %3166 = vmatprep.mubr.bf16.mxu0 %v2999
        %3167 = vmatmul.mubr.bf16.gmra.mrb[0].mxu0 %v2998
        %v3168 = vpop.f32.mrb[0].mxu0
        %v3169 = vadd.f32 %v2661, %v3168
        %v3170 = vpop.f32.mrb[0].mxu0
        %v3171 = vpop.f32.mrb[0].mxu0
        %v3172 = vadd.f32 %v2666, %v3171
        %v3173 = vpop.f32.mrb[0].mxu0
        %3174 = vmatprep.mubr.bf16.mxu0 %v3003
        %3175 = vmatmul.mubr.bf16.gmra.mrb[0].mxu0 %v3002
        %v3176 = vpop.f32.mrb[0].mxu0
        %v3177 = vadd.f32 %v2671, %v3176
        %v3178 = vpop.f32.mrb[0].mxu0
        %v3179 = vpop.f32.mrb[0].mxu0
        %v3180 = vadd.f32 %v2676, %v3179
        %v3181 = vpop.f32.mrb[0].mxu0
        %3182 = vmatprep.mubr.bf16.mxu0 %v3007
        %3183 = vmatmul.mubr.bf16.gmra.mrb[0].mxu0 %v3006
        %v3184 = vpop.f32.mrb[0].mxu0
        %v3185 = vadd.f32 %v2681, %v3184
        %v3186 = vpop.f32.mrb[0].mxu0
        %v3187 = vpop.f32.mrb[0].mxu0
        %v3188 = vadd.f32 %v2686, %v3187
        %v3189 = vpop.f32.mrb[0].mxu0
        %3190 = vmatprep.mubr.bf16.mxu0 %v3011
        %3191 = vmatmul.mubr.bf16.gmra.mrb[0].mxu0 %v3010
        %v3192 = vpop.f32.mrb[0].mxu0
        %v3193 = vadd.f32 %v2691, %v3192
        %v3194 = vpop.f32.mrb[0].mxu0
        %v3195 = vpop.f32.mrb[0].mxu0
        %v3196 = vadd.f32 %v2696, %v3195
        %v3197 = vpop.f32.mrb[0].mxu0
        %3198 = vmatprep.mubr.bf16.mxu0 %v3015
        %3199 = vmatmul.mubr.bf16.gmra.mrb[0].mxu0 %v3014
        %v3200 = vpop.f32.mrb[0].mxu0
        %v3201 = vadd.f32 %v2701, %v3200
        %v3202 = vpop.f32.mrb[0].mxu0
        %v3203 = vpop.f32.mrb[0].mxu0
        %v3204 = vadd.f32 %v2706, %v3203
        %v3205 = vpop.f32.mrb[0].mxu0
        %3206 = vmatprep.mubr.bf16.mxu0 %v3019
        %3207 = vmatmul.mubr.bf16.gmra.mrb[0].mxu0 %v3018
        %v3208 = vpop.f32.mrb[0].mxu0
        %v3209 = vadd.f32 %v2711, %v3208
        %v3210 = vpop.f32.mrb[0].mxu0
        %v3211 = vpop.f32.mrb[0].mxu0
        %v3212 = vadd.f32 %v2716, %v3211
        %v3213 = vpop.f32.mrb[0].mxu0
        %3214 = vmatprep.mubr.bf16.mxu0 %v3023
        %3215 = vmatmul.mubr.bf16.gmra.mrb[0].mxu0 %v3022
        %v3216 = vpop.f32.mrb[0].mxu0
        %v3217 = vadd.f32 %v2721, %v3216
        %v3218 = vpop.f32.mrb[0].mxu0
        %v3219 = vpop.f32.mrb[0].mxu0
        %v3220 = vadd.f32 %v2726, %v3219
        %v3221 = vpop.f32.mrb[0].mxu0
        %3222 = vmatprep.mubr.bf16.mxu0 %v3027
        %3223 = vmatmul.mubr.bf16.gmra.mrb[0].mxu0 %v3026
        %v3224 = vpop.f32.mrb[0].mxu0
        %v3225 = vadd.f32 %v2731, %v3224
        %v3226 = vpop.f32.mrb[0].mxu0
        %v3227 = vpop.f32.mrb[0].mxu0
        %v3228 = vadd.f32 %v2736, %v3227
        %v3229 = vpop.f32.mrb[0].mxu0
        %3230 = vmatprep.mubr.bf16.mxu0 %v3031
        %3231 = vmatmul.mubr.bf16.gmra.mrb[0].mxu0 %v3030
        %v3232 = vpop.f32.mrb[0].mxu0
        %v3233 = vadd.f32 %v2741, %v3232
        %v3234 = vpop.f32.mrb[0].mxu0
        %v3235 = vpop.f32.mrb[0].mxu0
        %v3236 = vadd.f32 %v2746, %v3235
        %v3237 = vpop.f32.mrb[0].mxu0
        %3238 = vmatprep.mubr.bf16.mxu0 %v3035
        %3239 = vmatmul.mubr.bf16.gmra.mrb[0].mxu0 %v3034
        %v3240 = vpop.f32.mrb[0].mxu0
        %v3241 = vadd.f32 %v2751, %v3240
        %v3242 = vpop.f32.mrb[0].mxu0
        %v3243 = vpop.f32.mrb[0].mxu0
        %v3244 = vadd.f32 %v2756, %v3243
        %v3245 = vpop.f32.mrb[0].mxu0
        %3246 = vmatprep.mubr.bf16.mxu0 %v3039
        %3247 = vmatmul.mubr.bf16.gmra.mrb[0].mxu0 %v3038
        %v3248 = vpop.f32.mrb[0].mxu0
        %v3249 = vadd.f32 %v2761, %v3248
        %v3250 = vpop.f32.mrb[0].mxu0
        %v3251 = vpop.f32.mrb[0].mxu0
        %v3252 = vadd.f32 %v2766, %v3251
        %v3253 = vpop.f32.mrb[0].mxu0
        %3254 = vmatprep.mubr.bf16.mxu0 %v3043
        %3255 = vmatmul.mubr.bf16.gmra.mrb[0].mxu0 %v3042
        %v3256 = vpop.f32.mrb[0].mxu0
        %v3257 = vadd.f32 %v2771, %v3256
        %v3258 = vpop.f32.mrb[0].mxu0
        %v3259 = vpop.f32.mrb[0].mxu0
        %v3260 = vadd.f32 %v2776, %v3259
        %v3261 = vpop.f32.mrb[0].mxu0
        %3262 = vmatprep.mubr.bf16.mxu0 %v3047
        %3263 = vmatmul.mubr.bf16.gmra.mrb[0].mxu0 %v3046
        %v3264 = vpop.f32.mrb[0].mxu0
        %v3265 = vadd.f32 %v2781, %v3264
        %v3266 = vpop.f32.mrb[0].mxu0
        %v3267 = vpop.f32.mrb[0].mxu0
        %v3268 = vadd.f32 %v2786, %v3267
        %v3269 = vpop.f32.mrb[0].mxu0
        %3270 = vmatprep.mubr.bf16.mxu0 %v3051
        %3271 = vmatmul.mubr.bf16.gmra.mrb[0].mxu0 %v3050
        %v3272 = vpop.f32.mrb[0].mxu0
        %v3273 = vadd.f32 %v2791, %v3272
        %v3274 = vpop.f32.mrb[0].mxu0
        %v3275 = vpop.f32.mrb[0].mxu0
        %v3276 = vadd.f32 %v2796, %v3275
        %v3277 = vpop.f32.mrb[0].mxu0
        %3278 = vdwg.mxu0
        %3279 = vmatprep.subr.bf16.mxu0 0
        %3280 = vmatpush1.bf16.msra.mxu0 %v2526
        %3281 = vmatprep.subr.bf16.mxu0 0
        %3282 = vmatpush1.bf16.msra.mxu0 %v2527
        %3283 = vmatprep.subr.bf16.mxu0 0
        %3284 = vmatpush1.bf16.msra.mxu0 %v2528
        %3285 = vmatprep.subr.bf16.mxu0 0
        %3286 = vmatpush1.bf16.msra.mxu0 %v2529
        %3287 = vmatprep.subr.bf16.mxu0 0
        %3288 = vmatpush1.bf16.msra.mxu0 %v2530
        %3289 = vmatprep.subr.bf16.mxu0 0
        %3290 = vmatpush1.bf16.msra.mxu0 %v2531
        %3291 = vmatprep.subr.bf16.mxu0 0
        %3292 = vmatpush1.bf16.msra.mxu0 %v2532
        %3293 = vmatprep.subr.bf16.mxu0 0
        %3294 = vmatpush1.bf16.msra.mxu0 %v2533
        %3295 = vmatprep.subr.bf16.mxu0 0
        %3296 = vmatpush1.bf16.msra.mxu0 %v2534
        %3297 = vmatprep.subr.bf16.mxu0 0
        %3298 = vmatpush1.bf16.msra.mxu0 %v2535
        %3299 = vmatprep.subr.bf16.mxu0 0
        %3300 = vmatpush1.bf16.msra.mxu0 %v2536
        %3301 = vmatprep.subr.bf16.mxu0 0
        %3302 = vmatpush1.bf16.msra.mxu0 %v2537
        %3303 = vmatprep.subr.bf16.mxu0 0
        %3304 = vmatpush1.bf16.msra.mxu0 %v2538
        %3305 = vmatprep.subr.bf16.mxu0 0
        %3306 = vmatpush1.bf16.msra.mxu0 %v2539
        %3307 = vmatprep.subr.bf16.mxu0 0
        %3308 = vmatpush1.bf16.msra.mxu0 %v2540
        %3309 = vmatprep.subr.bf16.mxu0 0
        %3310 = vmatpush1.bf16.msra.mxu0 %v2541
        %3311 = vmatprep.mubr.bf16.mxu0 %v2993
        %3312 = vmatmul.mubr.bf16.gmra.mrb[0].mxu0 %v2992
        %v3313 = vpop.f32.mrb[0].mxu0
        %v3314 = vadd.f32 %v3153, %v3313
        %v3315 = vpop.f32.mrb[0].mxu0
        %v3316 = vpop.f32.mrb[0].mxu0
        %v3317 = vadd.f32 %v3156, %v3316
        %v3318 = vpop.f32.mrb[0].mxu0
        %3319 = vmatprep.mubr.bf16.mxu0 %v2997
        %3320 = vmatmul.mubr.bf16.gmra.mrb[0].mxu0 %v2996
        %v3321 = vpop.f32.mrb[0].mxu0
        %v3322 = vadd.f32 %v3161, %v3321
        %v3323 = vpop.f32.mrb[0].mxu0
        %v3324 = vpop.f32.mrb[0].mxu0
        %v3325 = vadd.f32 %v3164, %v3324
        %v3326 = vpop.f32.mrb[0].mxu0
        %3327 = vmatprep.mubr.bf16.mxu0 %v3001
        %3328 = vmatmul.mubr.bf16.gmra.mrb[0].mxu0 %v3000
        %v3329 = vpop.f32.mrb[0].mxu0
        %v3330 = vadd.f32 %v3169, %v3329
        %v3331 = vpop.f32.mrb[0].mxu0
        %v3332 = vpop.f32.mrb[0].mxu0
        %v3333 = vadd.f32 %v3172, %v3332
        %v3334 = vpop.f32.mrb[0].mxu0
        %3335 = vmatprep.mubr.bf16.mxu0 %v3005
        %3336 = vmatmul.mubr.bf16.gmra.mrb[0].mxu0 %v3004
        %v3337 = vpop.f32.mrb[0].mxu0
        %v3338 = vadd.f32 %v3177, %v3337
        %v3339 = vpop.f32.mrb[0].mxu0
        %v3340 = vpop.f32.mrb[0].mxu0
        %v3341 = vadd.f32 %v3180, %v3340
        %v3342 = vpop.f32.mrb[0].mxu0
        %3343 = vmatprep.mubr.bf16.mxu0 %v3009
        %3344 = vmatmul.mubr.bf16.gmra.mrb[0].mxu0 %v3008
        %v3345 = vpop.f32.mrb[0].mxu0
        %v3346 = vadd.f32 %v3185, %v3345
        %v3347 = vpop.f32.mrb[0].mxu0
        %v3348 = vpop.f32.mrb[0].mxu0
        %v3349 = vadd.f32 %v3188, %v3348
        %v3350 = vpop.f32.mrb[0].mxu0
        %3351 = vmatprep.mubr.bf16.mxu0 %v3013
        %3352 = vmatmul.mubr.bf16.gmra.mrb[0].mxu0 %v3012
        %v3353 = vpop.f32.mrb[0].mxu0
        %v3354 = vadd.f32 %v3193, %v3353
        %v3355 = vpop.f32.mrb[0].mxu0
        %v3356 = vpop.f32.mrb[0].mxu0
        %v3357 = vadd.f32 %v3196, %v3356
        %v3358 = vpop.f32.mrb[0].mxu0
        %3359 = vmatprep.mubr.bf16.mxu0 %v3017
        %3360 = vmatmul.mubr.bf16.gmra.mrb[0].mxu0 %v3016
        %v3361 = vpop.f32.mrb[0].mxu0
        %v3362 = vadd.f32 %v3201, %v3361
        %v3363 = vpop.f32.mrb[0].mxu0
        %v3364 = vpop.f32.mrb[0].mxu0
        %v3365 = vadd.f32 %v3204, %v3364
        %v3366 = vpop.f32.mrb[0].mxu0
        %3367 = vmatprep.mubr.bf16.mxu0 %v3021
        %3368 = vmatmul.mubr.bf16.gmra.mrb[0].mxu0 %v3020
        %v3369 = vpop.f32.mrb[0].mxu0
        %v3370 = vadd.f32 %v3209, %v3369
        %v3371 = vpop.f32.mrb[0].mxu0
        %v3372 = vpop.f32.mrb[0].mxu0
        %v3373 = vadd.f32 %v3212, %v3372
        %v3374 = vpop.f32.mrb[0].mxu0
        %3375 = vmatprep.mubr.bf16.mxu0 %v3025
        %3376 = vmatmul.mubr.bf16.gmra.mrb[0].mxu0 %v3024
        %v3377 = vpop.f32.mrb[0].mxu0
        %v3378 = vadd.f32 %v3217, %v3377
        %v3379 = vpop.f32.mrb[0].mxu0
        %v3380 = vpop.f32.mrb[0].mxu0
        %v3381 = vadd.f32 %v3220, %v3380
        %v3382 = vpop.f32.mrb[0].mxu0
        %3383 = vmatprep.mubr.bf16.mxu0 %v3029
        %3384 = vmatmul.mubr.bf16.gmra.mrb[0].mxu0 %v3028
        %v3385 = vpop.f32.mrb[0].mxu0
        %v3386 = vadd.f32 %v3225, %v3385
        %v3387 = vpop.f32.mrb[0].mxu0
        %v3388 = vpop.f32.mrb[0].mxu0
        %v3389 = vadd.f32 %v3228, %v3388
        %v3390 = vpop.f32.mrb[0].mxu0
        %3391 = vmatprep.mubr.bf16.mxu0 %v3033
        %3392 = vmatmul.mubr.bf16.gmra.mrb[0].mxu0 %v3032
        %v3393 = vpop.f32.mrb[0].mxu0
        %v3394 = vadd.f32 %v3233, %v3393
        %v3395 = vpop.f32.mrb[0].mxu0
        %v3396 = vpop.f32.mrb[0].mxu0
        %v3397 = vadd.f32 %v3236, %v3396
        %v3398 = vpop.f32.mrb[0].mxu0
        %3399 = vmatprep.mubr.bf16.mxu0 %v3037
        %3400 = vmatmul.mubr.bf16.gmra.mrb[0].mxu0 %v3036
        %v3401 = vpop.f32.mrb[0].mxu0
        %v3402 = vadd.f32 %v3241, %v3401
        %v3403 = vpop.f32.mrb[0].mxu0
        %v3404 = vpop.f32.mrb[0].mxu0
        %v3405 = vadd.f32 %v3244, %v3404
        %v3406 = vpop.f32.mrb[0].mxu0
        %3407 = vmatprep.mubr.bf16.mxu0 %v3041
        %3408 = vmatmul.mubr.bf16.gmra.mrb[0].mxu0 %v3040
        %v3409 = vpop.f32.mrb[0].mxu0
        %v3410 = vadd.f32 %v3249, %v3409
        %v3411 = vpop.f32.mrb[0].mxu0
        %v3412 = vpop.f32.mrb[0].mxu0
        %v3413 = vadd.f32 %v3252, %v3412
        %v3414 = vpop.f32.mrb[0].mxu0
        %3415 = vmatprep.mubr.bf16.mxu0 %v3045
        %3416 = vmatmul.mubr.bf16.gmra.mrb[0].mxu0 %v3044
        %v3417 = vpop.f32.mrb[0].mxu0
        %v3418 = vadd.f32 %v3257, %v3417
        %v3419 = vpop.f32.mrb[0].mxu0
        %v3420 = vpop.f32.mrb[0].mxu0
        %v3421 = vadd.f32 %v3260, %v3420
        %v3422 = vpop.f32.mrb[0].mxu0
        %3423 = vmatprep.mubr.bf16.mxu0 %v3049
        %3424 = vmatmul.mubr.bf16.gmra.mrb[0].mxu0 %v3048
        %v3425 = vpop.f32.mrb[0].mxu0
        %v3426 = vadd.f32 %v3265, %v3425
        %v3427 = vpop.f32.mrb[0].mxu0
        %v3428 = vpop.f32.mrb[0].mxu0
        %v3429 = vadd.f32 %v3268, %v3428
        %v3430 = vpop.f32.mrb[0].mxu0
        %3431 = vmatprep.mubr.bf16.mxu0 %v3053
        %3432 = vmatmul.mubr.bf16.gmra.mrb[0].mxu0 %v3052
        %v3433 = vpop.f32.mrb[0].mxu0
        %v3434 = vadd.f32 %v3273, %v3433
        %v3435 = vpop.f32.mrb[0].mxu0
        %v3436 = vpop.f32.mrb[0].mxu0
        %v3437 = vadd.f32 %v3276, %v3436
        %v3438 = vpop.f32.mrb[0].mxu0
        %3439 = vdwg.mxu0
        %v3440 = vpack.c.bf16 %v3317, %v3314
        %v3441 = vpack.c.bf16 %v3325, %v3322
        %v3442 = vpack.c.bf16 %v3333, %v3330
        %v3443 = vpack.c.bf16 %v3341, %v3338
        %v3444 = vpack.c.bf16 %v3349, %v3346
        %v3445 = vpack.c.bf16 %v3357, %v3354
        %v3446 = vpack.c.bf16 %v3365, %v3362
        %v3447 = vpack.c.bf16 %v3373, %v3370
        %v3448 = vpack.c.bf16 %v3381, %v3378
        %v3449 = vpack.c.bf16 %v3389, %v3386
        %v3450 = vpack.c.bf16 %v3397, %v3394
        %v3451 = vpack.c.bf16 %v3405, %v3402
        %v3452 = vpack.c.bf16 %v3413, %v3410
        %v3453 = vpack.c.bf16 %v3421, %v3418
        %v3454 = vpack.c.bf16 %v3429, %v3426
        %v3455 = vpack.c.bf16 %v3437, %v3434
        %v3456 = vmul.bf16 %v3440, 1045249613
        %v3457 = vmul.bf16 %v3441, 1045249613
        %v3458 = vmul.bf16 %v3442, 1045249613
        %v3459 = vmul.bf16 %v3443, 1045249613
        %v3460 = vmul.bf16 %v3444, 1045249613
        %v3461 = vmul.bf16 %v3445, 1045249613
        %v3462 = vmul.bf16 %v3446, 1045249613
        %v3463 = vmul.bf16 %v3447, 1045249613
        %v3464 = vmul.bf16 %v3448, 1045249613
        %v3465 = vmul.bf16 %v3449, 1045249613
        %v3466 = vmul.bf16 %v3450, 1045249613
        %v3467 = vmul.bf16 %v3451, 1045249613
        %v3468 = vmul.bf16 %v3452, 1045249613
        %v3469 = vmul.bf16 %v3453, 1045249613
        %v3470 = vmul.bf16 %v3454, 1045249613
        %v3471 = vmul.bf16 %v3455, 1045249613
        %v3472 = vmax.bf16 %v3440, %v3456
        %v3473 = vmax.bf16 %v3441, %v3457
        %v3474 = vmax.bf16 %v3442, %v3458
        %v3475 = vmax.bf16 %v3443, %v3459
        %v3476 = vmax.bf16 %v3444, %v3460
        %v3477 = vmax.bf16 %v3445, %v3461
        %v3478 = vmax.bf16 %v3446, %v3462
        %v3479 = vmax.bf16 %v3447, %v3463
        %v3480 = vmax.bf16 %v3448, %v3464
        %v3481 = vmax.bf16 %v3449, %v3465
        %v3482 = vmax.bf16 %v3450, %v3466
        %v3483 = vmax.bf16 %v3451, %v3467
        %v3484 = vmax.bf16 %v3452, %v3468
        %v3485 = vmax.bf16 %v3453, %v3469
        %v3486 = vmax.bf16 %v3454, %v3470
        %v3487 = vmax.bf16 %v3455, %v3471
        %v3488 = vld [vmem:[#allocation17] sm:$0xff]
        %v3489 = vld [vmem:[#allocation19] sm:$0xff]
        %3491 = vset.pattern.permute.xlu0 0
        %3492 = vperm.xlu0 %3491, %v3489
        %v3493 = vpop.permute.xlu0 %3492
        %v3496 = vunpack.c.l.b16 %v3488
        %v3497 = vunpack.c.h.b16 %v3488
        %v3498 = vpack.c.b16 %v3496, %v3496
        %v3499 = vpack.c.b16 %v3497, %v3497
        %3502 = vmatprep.subr.bf16.mxu0 0
        %3503 = vmatpush1.bf16.msra.mxu0 %v3472
        %3504 = vmatprep.subr.bf16.mxu0 0
        %3505 = vmatpush1.bf16.msra.mxu0 %v3473
        %3506 = vmatprep.subr.bf16.mxu0 0
        %3507 = vmatpush1.bf16.msra.mxu0 %v3474
        %3508 = vmatprep.subr.bf16.mxu0 0
        %3509 = vmatpush1.bf16.msra.mxu0 %v3475
        %3510 = vmatprep.subr.bf16.mxu0 0
        %3511 = vmatpush1.bf16.msra.mxu0 %v3476
        %3512 = vmatprep.subr.bf16.mxu0 0
        %3513 = vmatpush1.bf16.msra.mxu0 %v3477
        %3514 = vmatprep.subr.bf16.mxu0 0
        %3515 = vmatpush1.bf16.msra.mxu0 %v3478
        %3516 = vmatprep.subr.bf16.mxu0 0
        %3517 = vmatpush1.bf16.msra.mxu0 %v3479
        %3518 = vmatprep.subr.bf16.mxu0 0
        %3519 = vmatpush1.bf16.msra.mxu0 %v3480
        %3520 = vmatprep.subr.bf16.mxu0 0
        %3521 = vmatpush1.bf16.msra.mxu0 %v3481
        %3522 = vmatprep.subr.bf16.mxu0 0
        %3523 = vmatpush1.bf16.msra.mxu0 %v3482
        %3524 = vmatprep.subr.bf16.mxu0 0
        %3525 = vmatpush1.bf16.msra.mxu0 %v3483
        %3526 = vmatprep.subr.bf16.mxu0 0
        %3527 = vmatpush1.bf16.msra.mxu0 %v3484
        %3528 = vmatprep.subr.bf16.mxu0 0
        %3529 = vmatpush1.bf16.msra.mxu0 %v3485
        %3530 = vmatprep.subr.bf16.mxu0 0
        %3531 = vmatpush1.bf16.msra.mxu0 %v3486
        %3532 = vmatprep.subr.bf16.mxu0 0
        %3533 = vmatpush1.bf16.msra.mxu0 %v3487
        %3534 = vmatprep.mubr.bf16.mxu0 %v3499
        %3535 = vmatmul.mubr.bf16.gmra.mrb[0].mxu0 %v3498
        %v3536 = vpop.f32.mrb[0].mxu0
        %v3537 = vadd.f32 %v3493, %v3536
        %v3538 = vpop.f32.mrb[0].mxu0
        %v3539 = vpop.f32.mrb[0].mxu0
        %v3540 = vpop.f32.mrb[0].mxu0
        %3541 = vdwg.mxu0
        %v3542 = vsub.f32 0.0, %v3537
        %v3543 = vmul.f32 %v3542, 1.442695
        %v3544 = vpow.pop %v3543
        %v3545 = vadd.f32 %v3544, 1.0
        %v3546 = vrcp.pop %v3545
        %3547 = vst [vmem:[%s543] sm:$0x1] %v3546
        %s3548 = sand.u32 %s277, 1
        %s3549 = scalar_lea.sflag [#allocation4], %s3548
        %s3550 = sand.u32 %s277, 1
        %s3551 = scalar_lea.vmem [#allocation20], %s3550
        // Predicated region
        $region109: #{tpu_custom_call.1} parent=63 // pred_check
          %p3552 = pneg %p287
        $region110: #{tpu_custom_call.1} parent=63 // pred_check_branch
          %3554 = sbr.rel (%p3552) target = $region112
        $region111: #{tpu_custom_call.1} parent=63 // pred_region
          %s3556 = ssub.s32 16, 16
          %3557 = vsyncadd %s3549, %s3556
          %s3558 = smul.addr %s33, 16
          %s3559 = scalar_lea.hbm %s11, %s3558
          %s3561 = sshll.u32 %s3551, 4
          %s3562 = int_to_ptr.vmem [resolvable:$true] %s3561
          %3564 = dma.vmem_to_hbm [thread:$0]  %s3562, 16, %s3559, %s3549
        $region112: #{tpu_custom_call.1} parent=63 // pred_fallthru
          _
      $region64: #{tpu_custom_call.1} parent=5 // pred_fallthru
        _
      %p3565 = scmp.le.s32.totalorder 2, %s28
      // Predicated region
      $region113: #{tpu_custom_call.1} parent=5 // pred_check
        %p3566 = pneg %p3565
      $region114: #{tpu_custom_call.1} parent=5 // pred_check_branch
        %3568 = sbr.rel (%p3566) target = $region116
      $region115: #{tpu_custom_call.1} parent=5 // pred_region
        %s3569 = ssub.s32 %s28, 2
        // Predicated region
        $region117: #{tpu_custom_call.1} parent=115 // pred_check
          %p3570 = pneg %p293
        $region118: #{tpu_custom_call.1} parent=115 // pred_check_branch
          %3572 = sbr.rel (%p3570) target = $region120
        $region119: #{tpu_custom_call.1} parent=115 // pred_region
          %s3573 = sand.u32 %s278, 1
          %s3574 = scalar_lea.sflag [#allocation4], %s3573
          %s3575 = sand.u32 %s278, 1
          %s3576 = scalar_lea.vmem [#allocation20], %s3575
          %3577 = dma.done %s3574, 16
        $region120: #{tpu_custom_call.1} parent=115 // pred_fallthru
          _
      $region116: #{tpu_custom_call.1} parent=5 // pred_fallthru
        _
    $region6: #{tpu_custom_call.1} parent=1 // loop_footer
      %s32 = sadd.s32 1, %s28
    $region7: #{tpu_custom_call.1} parent=1 // loop_footer_branch
      %27 = sbr.rel target = $region3
    $region8: #{tpu_custom_call.1} parent=1 // loop_exit
      _
    %3578 = vsyncpa [#allocation3], 1
    %s3579 = scalar_lea.sflag [#allocation3], 1
    %3580 = vsyncpa %s3579, 1
    %3581 = vsyncpa [#allocation6], 1
    %3582 = vsyncpa [#allocation9], 1
    %3583 = vsyncpa [#allocation12], 1
    %3584 = vsyncpa [#allocation15], 1
    %3585 = vsyncpa [#allocation18], 1
    %3586 = vsyncpa [#allocation4], 1
    %s3587 = scalar_lea.sflag [#allocation4], 1
    %3588 = vsyncpa %s3587, 1

</llo_original>
